<compile_context>
chip_gen: v5e
topology: v5e:2x2
jax: 0.10.0
libtpu: 0.0.40
codegen_flags: <defaults>
</compile_context>

<pallas_src>
import functools

import numpy as np
import jax
import jax.numpy as jnp
from jax.experimental import pallas as pl
from jax.experimental.pallas import tpu as pltpu


# Static GoogLeNet aux-head constants.
CONV_OC = 128                    # 1x1 conv output channels
POOL_K, POOL_S = 5, 3            # AvgPool2d(kernel_size=5, stride=3)
POOL_OHW = 16                    # 4x4 pooled map
FC1_OUT = 1024
K_FC1 = CONV_OC * POOL_OHW       # 2048 = 128 * 4 * 4
TK = 1024                        # fc1 K-tile (rows of fc1_w streamed per grid step)
KT = K_FC1 // TK                 # 2 grid steps
PIX_PER_TILE = TK // CONV_OC     # 8 pooled pixels per K-tile


def _avgpool_matrix(H, W, k, s):
    """Dense (H*W, OH*OW) average-pooling matrix (exact for 14x14, k=5, s=3)."""
    OH = (H - k) // s + 1
    OW = (W - k) // s + 1
    P = np.zeros((H * W, OH * OW), dtype=np.float32)
    inv = 1.0 / float(k * k)
    for i in range(OH):
        for j in range(OW):
            for r in range(k):
                for c in range(k):
                    P[(i * s + r) * W + (j * s + c), i * OW + j] = inv
    return P, OH, OW


# ----------------------------------------------------------------------------
# Fused kernel: avgpool + 1x1 conv + ReLU + flatten + fc1 + ReLU + fc2.
# Grid = (KT,) over fc1's contraction dim; bf16 fc1_w streams in (TK, 1024) tiles
# while everything else stays VMEM-resident across the grid.
# ----------------------------------------------------------------------------
def _aux_fused_kernel(x_ref, pool_t_ref, conv_w_ref, conv_b_ref,
                      fc1_w_ref, fc1_b_ref, fc2_w_ref, fc2_b_ref,
                      o_ref, act_sc, acc_sc, *, n_batch):
    k = pl.program_id(0)

    # ---- step 0 only: pool -> 1x1 conv -> ReLU, stored K-tiled; bias-init accumulator ----
    @pl.when(k == 0)
    def _prologue():
        pool_t = pool_t_ref[...]          # (16, H*W)
        conv_w = conv_w_ref[...]          # (C, 128)
        conv_b = conv_b_ref[...]          # (1, 128)
        for n in range(n_batch):          # N is tiny; static unroll
            # AvgPool(5,3): (16, H*W) @ (H*W, C)  (same order as the reference module)
            pooled = jnp.dot(pool_t, x_ref[n], preferred_element_type=jnp.float32)
            # 1x1 conv + bias + ReLU at every pooled pixel: (16, C) @ (C, 128)
            a_n = jnp.maximum(
                jnp.dot(pooled, conv_w, preferred_element_type=jnp.float32) + conv_b,
                0.0)                      # (16, 128), rows = pooled pixel hw, cols = oc
            # Two contiguous (8,128) stores per batch element (K-tiled activation layout).
            for kt in range(KT):
                act_sc[kt, n, :, :] = a_n[kt * PIX_PER_TILE:(kt + 1) * PIX_PER_TILE, :]
        # Fold the fc1 bias into the accumulator init.
        acc_sc[...] = jnp.broadcast_to(fc1_b_ref[...], acc_sc.shape)

    # ---- every step: accumulate one K-tile of fc1 (bf16 weights, f32 accumulate) ----
    chunk = act_sc[k]                     # (N, 8, 128) f32, this tile's pooled pixels
    part = acc_sc[...]                    # (N, 1024) f32
    for sl in range(PIX_PER_TILE):        # 8 small MXU dots, hidden under the tile DMA
        a_sl = chunk[:, sl, :].astype(jnp.bfloat16)                    # (N, 128)
        w_sl = fc1_w_ref[sl * CONV_OC:(sl + 1) * CONV_OC, :]           # (128, 1024) bf16
        part = part + jnp.dot(a_sl, w_sl, preferred_element_type=jnp.float32)
    acc_sc[...] = part

    # ---- last step: ReLU, fc2 (bf16 weights), store logits ----
    @pl.when(k == pl.num_programs(0) - 1)
    def _epilogue():
        h1 = jnp.maximum(acc_sc[...], 0.0)                             # (N, 1024) f32
        logits = jnp.dot(h1.astype(jnp.bfloat16), fc2_w_ref[...],
                         preferred_element_type=jnp.float32)           # (N, num_classes)
        o_ref[...] = (logits + fc2_b_ref[...]).astype(o_ref.dtype)


# ----------------------------------------------------------------------------
# Parameters in the PyTorch module's native shapes (synthetic, deterministic).
# ----------------------------------------------------------------------------
def make_params(in_channels, num_classes, key):
    k1, k2, k3, k4, k5, k6 = jax.random.split(key, 6)
    s = 0.02
    return {
        "conv_w": s * jax.random.normal(k1, (CONV_OC, in_channels, 1, 1), jnp.float32),
        "conv_b": s * jax.random.normal(k2, (CONV_OC,), jnp.float32),
        "fc1_w": s * jax.random.normal(k3, (FC1_OUT, K_FC1), jnp.float32),
        "fc1_b": s * jax.random.normal(k4, (FC1_OUT,), jnp.float32),
        "fc2_w": s * jax.random.normal(k5, (num_classes, FC1_OUT), jnp.float32),
        "fc2_b": s * jax.random.normal(k6, (num_classes,), jnp.float32),
    }


def prepare_params(params, H, W):
    """One-time offline layout plumbing (outside the hot path)."""
    C = params["conv_w"].shape[1]
    num_classes = params["fc2_w"].shape[0]
    pool_np, OH, OW = _avgpool_matrix(H, W, POOL_K, POOL_S)
    assert OH * OW == POOL_OHW, "aux head expects a 4x4 pooled map (14x14 input)"
    prep = {}
    prep["pool_t"] = jnp.asarray(pool_np.T)                              # (16, H*W) f32
    prep["conv_w"] = params["conv_w"].reshape(CONV_OC, C).T              # (C, 128) f32
    prep["conv_b"] = params["conv_b"].reshape(1, CONV_OC)                # (1, 128) f32
    # fc1: torch weight is (1024, 2048) with input index oc*16 + hw (C,H,W flatten).
    # Permute rows to (hw, oc)-major so they match the kernel's activation layout, split
    # into KT streaming tiles, and cast to bf16 (halves the dominant HBM read).
    w1 = params["fc1_w"].T                                               # (2048, 1024)
    w1 = w1.reshape(CONV_OC, POOL_OHW, FC1_OUT).transpose(1, 0, 2)       # (16, 128, 1024)
    prep["fc1_w"] = w1.reshape(KT, TK, FC1_OUT).astype(jnp.bfloat16)     # (2, 1024, 1024)
    prep["fc1_b"] = params["fc1_b"].reshape(1, FC1_OUT)                  # (1, 1024) f32
    # fc2: un-padded (1024, num_classes) bf16; bias stays f32.
    prep["fc2_w"] = params["fc2_w"].T.astype(jnp.bfloat16)               # (1024, nc)
    prep["fc2_b"] = params["fc2_b"].reshape(1, num_classes)              # (1, nc) f32
    return prep


# ----------------------------------------------------------------------------
# InceptionAux forward (single fused pallas_call).
# ----------------------------------------------------------------------------
@jax.jit
def inception_aux_forward(x, prep):
    # TODO(synk): dropout(p=0.5) is identity here (eval/inference mode); training-mode
    # stochastic dropout is not reproduced.
    N, C, H, W = x.shape
    HW = H * W
    num_classes = prep["fc2_w"].shape[1]
    # NCHW -> (N, H*W, C) pixel-major: one tiny layout op before the single fused kernel.
    x_pix = jnp.transpose(x, (0, 2, 3, 1)).reshape(N, HW, C).astype(jnp.float32)

    kernel = functools.partial(_aux_fused_kernel, n_batch=N)
    grid_spec = pltpu.PrefetchScalarGridSpec(
        num_scalar_prefetch=0,
        grid=(KT,),
        in_specs=[
            pl.BlockSpec((N, HW, C), lambda k: (0, 0, 0)),              # x (VMEM-resident)
            pl.BlockSpec((POOL_OHW, HW), lambda k: (0, 0)),             # pool matrix^T
            pl.BlockSpec((C, CONV_OC), lambda k: (0, 0)),               # conv_w
            pl.BlockSpec((1, CONV_OC), lambda k: (0, 0)),               # conv_b
            pl.BlockSpec((None, TK, FC1_OUT), lambda k: (k, 0, 0)),     # fc1_w K-tiles (bf16, streamed)
            pl.BlockSpec((1, FC1_OUT), lambda k: (0, 0)),               # fc1_b
            pl.BlockSpec((FC1_OUT, num_classes), lambda k: (0, 0)),     # fc2_w (bf16, un-padded)
            pl.BlockSpec((1, num_classes), lambda k: (0, 0)),           # fc2_b
        ],
        out_specs=pl.BlockSpec((N, num_classes), lambda k: (0, 0)),
        scratch_shapes=[
            pltpu.VMEM((KT, N, PIX_PER_TILE, CONV_OC), jnp.float32),    # K-tiled conv activation
            pltpu.VMEM((N, FC1_OUT), jnp.float32),                      # fc1 accumulator (bias-init)
        ],
    )
    return pl.pallas_call(
        kernel,
        out_shape=jax.ShapeDtypeStruct((N, num_classes), jnp.float32),
        grid_spec=grid_spec,
        compiler_params=pltpu.CompilerParams(
            dimension_semantics=("arbitrary",)),    # K axis is a reduction / carries state
    )(x_pix, prep["pool_t"], prep["conv_w"], prep["conv_b"],
      prep["fc1_w"], prep["fc1_b"], prep["fc2_w"], prep["fc2_b"])


# ----------------------------------------------------------------------------
# Pure-JAX f32 reference mirroring the PyTorch module exactly (eval mode).
# ----------------------------------------------------------------------------
def reference_forward(x, params):
    N, C, H, W = x.shape
    pool_np, OH, OW = _avgpool_matrix(H, W, POOL_K, POOL_S)
    pooled = (x.reshape(N * C, H * W) @ jnp.asarray(pool_np)).reshape(N, C, OH, OW)
    w = params["conv_w"].reshape(CONV_OC, C)
    conv = jnp.einsum("oc,nchw->nohw", w, pooled) + params["conv_b"][None, :, None, None]
    conv = jnp.maximum(conv, 0.0)
    flat = conv.reshape(N, CONV_OC * OH * OW)          # torch.flatten order (C, H, W)
    h1 = jnp.maximum(flat @ params["fc1_w"].T + params["fc1_b"], 0.0)
    return h1 @ params["fc2_w"].T + params["fc2_b"]


if __name__ == "__main__":
    # Spatial must be 14x14 so AvgPool2d(5,3) -> 4x4 matches fc1's 128*4*4 input dim.
    N, C, H, W = 2, 4, 14, 14
    num_classes = 10

    key = jax.random.PRNGKey(0)
    kx, kp = jax.random.split(key)
    x = jax.random.normal(kx, (N, C, H, W), jnp.float32)

    params = make_params(C, num_classes, kp)
    prep = prepare_params(params, H, W)

    out = inception_aux_forward(x, prep)
    out = jax.block_until_ready(out)

    ref = reference_forward(x, params)
    assert out.shape == (N, num_classes), out.shape
    assert bool(jnp.all(jnp.isfinite(out)))
    # bf16 weights vs f32 reference: tolerance relaxed to 1e-2 (per perf review).
    max_err = float(jnp.max(jnp.abs(out - ref)))
    assert max_err < 1e-2, f"max abs err vs f32 reference: {max_err}"
    print("KERNEL_OK")
</pallas_src>

<mosaic_0001>
module attributes {stable_mosaic.version = 11 : i64} {
  func.func @_aux_fused_kernel(%arg0: i32, %arg1: memref<2x196x4xf32, #tpu.memory_space<vmem>>, %arg2: memref<16x196xf32, #tpu.memory_space<vmem>>, %arg3: memref<4x128xf32, #tpu.memory_space<vmem>>, %arg4: memref<1x128xf32, #tpu.memory_space<vmem>>, %arg5: memref<1x1024x1024xbf16, #tpu.memory_space<vmem>>, %arg6: memref<1x1024xf32, #tpu.memory_space<vmem>>, %arg7: memref<1024x10xbf16, #tpu.memory_space<vmem>>, %arg8: memref<1x10xf32, #tpu.memory_space<vmem>>, %arg9: memref<2x10xf32, #tpu.memory_space<vmem>>, %arg10: memref<2x2x8x128xf32, #tpu.memory_space<vmem>>, %arg11: memref<2x1024xf32, #tpu.memory_space<vmem>>) attributes {dimension_semantics = [#tpu.dimension_semantics<arbitrary>], iteration_bounds = array<i64: 2>, scalar_prefetch = 0 : i64, scratch_operands = 2 : i64, tpu.core_type = #tpu.core_type<tc>, window_params = [{pipeline_mode = #tpu.pipeline_mode<synchronous>, transform_indices = @transform_0, window_bounds = array<i64: 2, 196, 4>}, {pipeline_mode = #tpu.pipeline_mode<synchronous>, transform_indices = @transform_1, window_bounds = array<i64: 16, 196>}, {pipeline_mode = #tpu.pipeline_mode<synchronous>, transform_indices = @transform_2, window_bounds = array<i64: 4, 128>}, {pipeline_mode = #tpu.pipeline_mode<synchronous>, transform_indices = @transform_3, window_bounds = array<i64: 1, 128>}, {transform_indices = @transform_4, window_bounds = array<i64: 1, 1024, 1024>}, {pipeline_mode = #tpu.pipeline_mode<synchronous>, transform_indices = @transform_5, window_bounds = array<i64: 1, 1024>}, {pipeline_mode = #tpu.pipeline_mode<synchronous>, transform_indices = @transform_6, window_bounds = array<i64: 1024, 10>}, {pipeline_mode = #tpu.pipeline_mode<synchronous>, transform_indices = @transform_7, window_bounds = array<i64: 1, 10>}, {pipeline_mode = #tpu.pipeline_mode<synchronous>, transform_indices = @transform_8, window_bounds = array<i64: 2, 10>}]} {
    %c0_i32 = arith.constant 0 : i32
    %0 = arith.cmpi eq, %arg0, %c0_i32 : i32
    %1 = arith.extui %0 : i1 to i32
    %c0_i32_0 = arith.constant 0 : i32
    %2 = arith.cmpi ne, %1, %c0_i32_0 : i32
    scf.if %2 {
      %c0_32 = arith.constant 0 : index
      %c0_33 = arith.constant 0 : index
      %67 = vector.load %arg2[%c0_32, %c0_33] : memref<16x196xf32, #tpu.memory_space<vmem>>, vector<16x196xf32>
      %c0_34 = arith.constant 0 : index
      %c0_35 = arith.constant 0 : index
      %68 = vector.load %arg3[%c0_34, %c0_35] : memref<4x128xf32, #tpu.memory_space<vmem>>, vector<4x128xf32>
      %c0_36 = arith.constant 0 : index
      %c0_37 = arith.constant 0 : index
      %69 = vector.load %arg4[%c0_36, %c0_37] : memref<1x128xf32, #tpu.memory_space<vmem>>, vector<1x128xf32>
      %c0_38 = arith.constant 0 : index
      %c0_39 = arith.constant 0 : index
      %c0_40 = arith.constant 0 : index
      %70 = vector.load %arg1[%c0_38, %c0_39, %c0_40] : memref<2x196x4xf32, #tpu.memory_space<vmem>>, vector<1x196x4xf32>
      %71 = vector.shape_cast %70 : vector<1x196x4xf32> to vector<196x4xf32>
      %cst_41 = arith.constant dense<0.000000e+00> : vector<16x4xf32>
      %72 = tpu.matmul %67, %71, %cst_41 {dimension_numbers = #tpu.dot_dimension_numbers<[1], [0], [0], [1], [0, 0, 1, 1], [], []>} : vector<16x196xf32>, vector<196x4xf32>, vector<16x4xf32> -> vector<16x4xf32>
      %cst_42 = arith.constant dense<0.000000e+00> : vector<16x128xf32>
      %73 = tpu.matmul %72, %68, %cst_42 {dimension_numbers = #tpu.dot_dimension_numbers<[1], [0], [0], [1], [0, 0, 1, 1], [], []>} : vector<16x4xf32>, vector<4x128xf32>, vector<16x128xf32> -> vector<16x128xf32>
      %74 = vector.broadcast %69 : vector<1x128xf32> to vector<16x128xf32>
      %75 = arith.addf %73, %74 : vector<16x128xf32>
      %cst_43 = arith.constant 0.000000e+00 : f32
      %76 = vector.broadcast %cst_43 : f32 to vector<16x128xf32>
      %77 = arith.maximumf %75, %76 : vector<16x128xf32>
      %78 = vector.extract_strided_slice %77 {offsets = [0, 0], sizes = [8, 128], strides = [1, 1]} : vector<16x128xf32> to vector<8x128xf32>
      %c0_44 = arith.constant 0 : index
      %c0_45 = arith.constant 0 : index
      %c0_46 = arith.constant 0 : index
      %c0_47 = arith.constant 0 : index
      %79 = vector.load %arg10[%c0_44, %c0_45, %c0_46, %c0_47] : memref<2x2x8x128xf32, #tpu.memory_space<vmem>>, vector<1x1x8x128xf32>
      %80 = vector.shape_cast %79 : vector<1x1x8x128xf32> to vector<8x128xf32>
      %81 = vector.shape_cast %78 : vector<8x128xf32> to vector<1x1x8x128xf32>
      tpu.vector_store %arg10[%c0_44, %c0_45, %c0_46, %c0_47], %81 {strides = array<i32>} : memref<2x2x8x128xf32, #tpu.memory_space<vmem>>, vector<1x1x8x128xf32>,
      %82 = vector.extract_strided_slice %77 {offsets = [8, 0], sizes = [8, 128], strides = [1, 1]} : vector<16x128xf32> to vector<8x128xf32>
      %c1 = arith.constant 1 : index
      %c0_48 = arith.constant 0 : index
      %c0_49 = arith.constant 0 : index
      %c0_50 = arith.constant 0 : index
      %83 = vector.load %arg10[%c1, %c0_48, %c0_49, %c0_50] : memref<2x2x8x128xf32, #tpu.memory_space<vmem>>, vector<1x1x8x128xf32>
      %84 = vector.shape_cast %83 : vector<1x1x8x128xf32> to vector<8x128xf32>
      %85 = vector.shape_cast %82 : vector<8x128xf32> to vector<1x1x8x128xf32>
      tpu.vector_store %arg10[%c1, %c0_48, %c0_49, %c0_50], %85 {strides = array<i32>} : memref<2x2x8x128xf32, #tpu.memory_space<vmem>>, vector<1x1x8x128xf32>,
      %c1_51 = arith.constant 1 : index
      %c0_52 = arith.constant 0 : index
      %c0_53 = arith.constant 0 : index
      %86 = vector.load %arg1[%c1_51, %c0_52, %c0_53] : memref<2x196x4xf32, #tpu.memory_space<vmem>>, vector<1x196x4xf32>
      %87 = vector.shape_cast %86 : vector<1x196x4xf32> to vector<196x4xf32>
      %cst_54 = arith.constant dense<0.000000e+00> : vector<16x4xf32>
      %88 = tpu.matmul %67, %87, %cst_54 {dimension_numbers = #tpu.dot_dimension_numbers<[1], [0], [0], [1], [0, 0, 1, 1], [], []>} : vector<16x196xf32>, vector<196x4xf32>, vector<16x4xf32> -> vector<16x4xf32>
      %cst_55 = arith.constant dense<0.000000e+00> : vector<16x128xf32>
      %89 = tpu.matmul %88, %68, %cst_55 {dimension_numbers = #tpu.dot_dimension_numbers<[1], [0], [0], [1], [0, 0, 1, 1], [], []>} : vector<16x4xf32>, vector<4x128xf32>, vector<16x128xf32> -> vector<16x128xf32>
      %90 = vector.broadcast %69 : vector<1x128xf32> to vector<16x128xf32>
      %91 = arith.addf %89, %90 : vector<16x128xf32>
      %cst_56 = arith.constant 0.000000e+00 : f32
      %92 = vector.broadcast %cst_56 : f32 to vector<16x128xf32>
      %93 = arith.maximumf %91, %92 : vector<16x128xf32>
      %94 = vector.extract_strided_slice %93 {offsets = [0, 0], sizes = [8, 128], strides = [1, 1]} : vector<16x128xf32> to vector<8x128xf32>
      %c0_57 = arith.constant 0 : index
      %c1_58 = arith.constant 1 : index
      %c0_59 = arith.constant 0 : index
      %c0_60 = arith.constant 0 : index
      %95 = vector.load %arg10[%c0_57, %c1_58, %c0_59, %c0_60] : memref<2x2x8x128xf32, #tpu.memory_space<vmem>>, vector<1x1x8x128xf32>
      %96 = vector.shape_cast %95 : vector<1x1x8x128xf32> to vector<8x128xf32>
      %97 = vector.shape_cast %94 : vector<8x128xf32> to vector<1x1x8x128xf32>
      tpu.vector_store %arg10[%c0_57, %c1_58, %c0_59, %c0_60], %97 {strides = array<i32>} : memref<2x2x8x128xf32, #tpu.memory_space<vmem>>, vector<1x1x8x128xf32>,
      %98 = vector.extract_strided_slice %93 {offsets = [8, 0], sizes = [8, 128], strides = [1, 1]} : vector<16x128xf32> to vector<8x128xf32>
      %c1_61 = arith.constant 1 : index
      %c1_62 = arith.constant 1 : index
      %c0_63 = arith.constant 0 : index
      %c0_64 = arith.constant 0 : index
      %99 = vector.load %arg10[%c1_61, %c1_62, %c0_63, %c0_64] : memref<2x2x8x128xf32, #tpu.memory_space<vmem>>, vector<1x1x8x128xf32>
      %100 = vector.shape_cast %99 : vector<1x1x8x128xf32> to vector<8x128xf32>
      %101 = vector.shape_cast %98 : vector<8x128xf32> to vector<1x1x8x128xf32>
      tpu.vector_store %arg10[%c1_61, %c1_62, %c0_63, %c0_64], %101 {strides = array<i32>} : memref<2x2x8x128xf32, #tpu.memory_space<vmem>>, vector<1x1x8x128xf32>,
      %c0_65 = arith.constant 0 : index
      %c0_66 = arith.constant 0 : index
      %102 = vector.load %arg6[%c0_65, %c0_66] : memref<1x1024xf32, #tpu.memory_space<vmem>>, vector<1x1024xf32>
      %103 = vector.shape_cast %102 : vector<1x1024xf32> to vector<1x1024xf32>
      %104 = vector.broadcast %103 : vector<1x1024xf32> to vector<2x1024xf32>
      %c0_67 = arith.constant 0 : index
      %c0_68 = arith.constant 0 : index
      %105 = vector.load %arg11[%c0_67, %c0_68] : memref<2x1024xf32, #tpu.memory_space<vmem>>, vector<2x1024xf32>
      tpu.vector_store %arg11[%c0_67, %c0_68], %104 {strides = array<i32>} : memref<2x1024xf32, #tpu.memory_space<vmem>>, vector<2x1024xf32>,
    } else {
    }
    %3 = arith.index_cast %arg0 : i32 to index
    %c0 = arith.constant 0 : index
    %c0_1 = arith.constant 0 : index
    %c0_2 = arith.constant 0 : index
    %4 = vector.load %arg10[%3, %c0, %c0_1, %c0_2] : memref<2x2x8x128xf32, #tpu.memory_space<vmem>>, vector<1x2x8x128xf32>
    %5 = vector.shape_cast %4 : vector<1x2x8x128xf32> to vector<2x8x128xf32>
    %c0_3 = arith.constant 0 : index
    %c0_4 = arith.constant 0 : index
    %6 = vector.load %arg11[%c0_3, %c0_4] : memref<2x1024xf32, #tpu.memory_space<vmem>>, vector<2x1024xf32>
    %7 = vector.extract_strided_slice %5 {offsets = [0, 0, 0], sizes = [2, 1, 128], strides = [1, 1, 1]} : vector<2x8x128xf32> to vector<2x1x128xf32>
    %8 = vector.shape_cast %7 : vector<2x1x128xf32> to vector<2x128xf32>
    %9 = arith.truncf %8 : vector<2x128xf32> to vector<2x128xbf16>
    %c0_5 = arith.constant 0 : index
    %c0_6 = arith.constant 0 : index
    %c0_7 = arith.constant 0 : index
    %10 = vector.load %arg5[%c0_5, %c0_6, %c0_7] : memref<1x1024x1024xbf16, #tpu.memory_space<vmem>>, vector<1x128x1024xbf16>
    %11 = vector.shape_cast %10 : vector<1x128x1024xbf16> to vector<128x1024xbf16>
    %cst = arith.constant dense<0.000000e+00> : vector<2x1024xf32>
    %12 = tpu.matmul %9, %11, %cst {dimension_numbers = #tpu.dot_dimension_numbers<[1], [0], [0], [1], [0, 0, 1, 1], [], []>} : vector<2x128xbf16>, vector<128x1024xbf16>, vector<2x1024xf32> -> vector<2x1024xf32>
    %13 = arith.addf %6, %12 : vector<2x1024xf32>
    %14 = vector.extract_strided_slice %5 {offsets = [0, 1, 0], sizes = [2, 1, 128], strides = [1, 1, 1]} : vector<2x8x128xf32> to vector<2x1x128xf32>
    %15 = vector.shape_cast %14 : vector<2x1x128xf32> to vector<2x128xf32>
    %16 = arith.truncf %15 : vector<2x128xf32> to vector<2x128xbf16>
    %c0_8 = arith.constant 0 : index
    %c128 = arith.constant 128 : index
    %c0_9 = arith.constant 0 : index
    %17 = vector.load %arg5[%c0_8, %c128, %c0_9] : memref<1x1024x1024xbf16, #tpu.memory_space<vmem>>, vector<1x128x1024xbf16>
    %18 = vector.shape_cast %17 : vector<1x128x1024xbf16> to vector<128x1024xbf16>
    %cst_10 = arith.constant dense<0.000000e+00> : vector<2x1024xf32>
    %19 = tpu.matmul %16, %18, %cst_10 {dimension_numbers = #tpu.dot_dimension_numbers<[1], [0], [0], [1], [0, 0, 1, 1], [], []>} : vector<2x128xbf16>, vector<128x1024xbf16>, vector<2x1024xf32> -> vector<2x1024xf32>
    %20 = arith.addf %13, %19 : vector<2x1024xf32>
    %21 = vector.extract_strided_slice %5 {offsets = [0, 2, 0], sizes = [2, 1, 128], strides = [1, 1, 1]} : vector<2x8x128xf32> to vector<2x1x128xf32>
    %22 = vector.shape_cast %21 : vector<2x1x128xf32> to vector<2x128xf32>
    %23 = arith.truncf %22 : vector<2x128xf32> to vector<2x128xbf16>
    %c0_11 = arith.constant 0 : index
    %c256 = arith.constant 256 : index
    %c0_12 = arith.constant 0 : index
    %24 = vector.load %arg5[%c0_11, %c256, %c0_12] : memref<1x1024x1024xbf16, #tpu.memory_space<vmem>>, vector<1x128x1024xbf16>
    %25 = vector.shape_cast %24 : vector<1x128x1024xbf16> to vector<128x1024xbf16>
    %cst_13 = arith.constant dense<0.000000e+00> : vector<2x1024xf32>
    %26 = tpu.matmul %23, %25, %cst_13 {dimension_numbers = #tpu.dot_dimension_numbers<[1], [0], [0], [1], [0, 0, 1, 1], [], []>} : vector<2x128xbf16>, vector<128x1024xbf16>, vector<2x1024xf32> -> vector<2x1024xf32>
    %27 = arith.addf %20, %26 : vector<2x1024xf32>
    %28 = vector.extract_strided_slice %5 {offsets = [0, 3, 0], sizes = [2, 1, 128], strides = [1, 1, 1]} : vector<2x8x128xf32> to vector<2x1x128xf32>
    %29 = vector.shape_cast %28 : vector<2x1x128xf32> to vector<2x128xf32>
    %30 = arith.truncf %29 : vector<2x128xf32> to vector<2x128xbf16>
    %c0_14 = arith.constant 0 : index
    %c384 = arith.constant 384 : index
    %c0_15 = arith.constant 0 : index
    %31 = vector.load %arg5[%c0_14, %c384, %c0_15] : memref<1x1024x1024xbf16, #tpu.memory_space<vmem>>, vector<1x128x1024xbf16>
    %32 = vector.shape_cast %31 : vector<1x128x1024xbf16> to vector<128x1024xbf16>
    %cst_16 = arith.constant dense<0.000000e+00> : vector<2x1024xf32>
    %33 = tpu.matmul %30, %32, %cst_16 {dimension_numbers = #tpu.dot_dimension_numbers<[1], [0], [0], [1], [0, 0, 1, 1], [], []>} : vector<2x128xbf16>, vector<128x1024xbf16>, vector<2x1024xf32> -> vector<2x1024xf32>
    %34 = arith.addf %27, %33 : vector<2x1024xf32>
    %35 = vector.extract_strided_slice %5 {offsets = [0, 4, 0], sizes = [2, 1, 128], strides = [1, 1, 1]} : vector<2x8x128xf32> to vector<2x1x128xf32>
    %36 = vector.shape_cast %35 : vector<2x1x128xf32> to vector<2x128xf32>
    %37 = arith.truncf %36 : vector<2x128xf32> to vector<2x128xbf16>
    %c0_17 = arith.constant 0 : index
    %c512 = arith.constant 512 : index
    %c0_18 = arith.constant 0 : index
    %38 = vector.load %arg5[%c0_17, %c512, %c0_18] : memref<1x1024x1024xbf16, #tpu.memory_space<vmem>>, vector<1x128x1024xbf16>
    %39 = vector.shape_cast %38 : vector<1x128x1024xbf16> to vector<128x1024xbf16>
    %cst_19 = arith.constant dense<0.000000e+00> : vector<2x1024xf32>
    %40 = tpu.matmul %37, %39, %cst_19 {dimension_numbers = #tpu.dot_dimension_numbers<[1], [0], [0], [1], [0, 0, 1, 1], [], []>} : vector<2x128xbf16>, vector<128x1024xbf16>, vector<2x1024xf32> -> vector<2x1024xf32>
    %41 = arith.addf %34, %40 : vector<2x1024xf32>
    %42 = vector.extract_strided_slice %5 {offsets = [0, 5, 0], sizes = [2, 1, 128], strides = [1, 1, 1]} : vector<2x8x128xf32> to vector<2x1x128xf32>
    %43 = vector.shape_cast %42 : vector<2x1x128xf32> to vector<2x128xf32>
    %44 = arith.truncf %43 : vector<2x128xf32> to vector<2x128xbf16>
    %c0_20 = arith.constant 0 : index
    %c640 = arith.constant 640 : index
    %c0_21 = arith.constant 0 : index
    %45 = vector.load %arg5[%c0_20, %c640, %c0_21] : memref<1x1024x1024xbf16, #tpu.memory_space<vmem>>, vector<1x128x1024xbf16>
    %46 = vector.shape_cast %45 : vector<1x128x1024xbf16> to vector<128x1024xbf16>
    %cst_22 = arith.constant dense<0.000000e+00> : vector<2x1024xf32>
    %47 = tpu.matmul %44, %46, %cst_22 {dimension_numbers = #tpu.dot_dimension_numbers<[1], [0], [0], [1], [0, 0, 1, 1], [], []>} : vector<2x128xbf16>, vector<128x1024xbf16>, vector<2x1024xf32> -> vector<2x1024xf32>
    %48 = arith.addf %41, %47 : vector<2x1024xf32>
    %49 = vector.extract_strided_slice %5 {offsets = [0, 6, 0], sizes = [2, 1, 128], strides = [1, 1, 1]} : vector<2x8x128xf32> to vector<2x1x128xf32>
    %50 = vector.shape_cast %49 : vector<2x1x128xf32> to vector<2x128xf32>
    %51 = arith.truncf %50 : vector<2x128xf32> to vector<2x128xbf16>
    %c0_23 = arith.constant 0 : index
    %c768 = arith.constant 768 : index
    %c0_24 = arith.constant 0 : index
    %52 = vector.load %arg5[%c0_23, %c768, %c0_24] : memref<1x1024x1024xbf16, #tpu.memory_space<vmem>>, vector<1x128x1024xbf16>
    %53 = vector.shape_cast %52 : vector<1x128x1024xbf16> to vector<128x1024xbf16>
    %cst_25 = arith.constant dense<0.000000e+00> : vector<2x1024xf32>
    %54 = tpu.matmul %51, %53, %cst_25 {dimension_numbers = #tpu.dot_dimension_numbers<[1], [0], [0], [1], [0, 0, 1, 1], [], []>} : vector<2x128xbf16>, vector<128x1024xbf16>, vector<2x1024xf32> -> vector<2x1024xf32>
    %55 = arith.addf %48, %54 : vector<2x1024xf32>
    %56 = vector.extract_strided_slice %5 {offsets = [0, 7, 0], sizes = [2, 1, 128], strides = [1, 1, 1]} : vector<2x8x128xf32> to vector<2x1x128xf32>
    %57 = vector.shape_cast %56 : vector<2x1x128xf32> to vector<2x128xf32>
    %58 = arith.truncf %57 : vector<2x128xf32> to vector<2x128xbf16>
    %c0_26 = arith.constant 0 : index
    %c896 = arith.constant 896 : index
    %c0_27 = arith.constant 0 : index
    %59 = vector.load %arg5[%c0_26, %c896, %c0_27] : memref<1x1024x1024xbf16, #tpu.memory_space<vmem>>, vector<1x128x1024xbf16>
    %60 = vector.shape_cast %59 : vector<1x128x1024xbf16> to vector<128x1024xbf16>
    %cst_28 = arith.constant dense<0.000000e+00> : vector<2x1024xf32>
    %61 = tpu.matmul %58, %60, %cst_28 {dimension_numbers = #tpu.dot_dimension_numbers<[1], [0], [0], [1], [0, 0, 1, 1], [], []>} : vector<2x128xbf16>, vector<128x1024xbf16>, vector<2x1024xf32> -> vector<2x1024xf32>
    %62 = arith.addf %55, %61 : vector<2x1024xf32>
    %c0_29 = arith.constant 0 : index
    %c0_30 = arith.constant 0 : index
    %63 = vector.load %arg11[%c0_29, %c0_30] : memref<2x1024xf32, #tpu.memory_space<vmem>>, vector<2x1024xf32>
    tpu.vector_store %arg11[%c0_29, %c0_30], %62 {strides = array<i32>} : memref<2x1024xf32, #tpu.memory_space<vmem>>, vector<2x1024xf32>,
    %c1_i32 = arith.constant 1 : i32
    %64 = arith.cmpi eq, %arg0, %c1_i32 : i32
    %65 = arith.extui %64 : i1 to i32
    %c0_i32_31 = arith.constant 0 : i32
    %66 = arith.cmpi ne, %65, %c0_i32_31 : i32
    scf.if %66 {
      %c0_32 = arith.constant 0 : index
      %c0_33 = arith.constant 0 : index
      %67 = vector.load %arg11[%c0_32, %c0_33] : memref<2x1024xf32, #tpu.memory_space<vmem>>, vector<2x1024xf32>
      %cst_34 = arith.constant 0.000000e+00 : f32
      %68 = vector.broadcast %cst_34 : f32 to vector<2x1024xf32>
      %69 = arith.maximumf %67, %68 : vector<2x1024xf32>
      %70 = arith.truncf %69 : vector<2x1024xf32> to vector<2x1024xbf16>
      %c0_35 = arith.constant 0 : index
      %c0_36 = arith.constant 0 : index
      %71 = vector.load %arg7[%c0_35, %c0_36] : memref<1024x10xbf16, #tpu.memory_space<vmem>>, vector<1024x10xbf16>
      %cst_37 = arith.constant dense<0.000000e+00> : vector<2x10xf32>
      %72 = tpu.matmul %70, %71, %cst_37 {dimension_numbers = #tpu.dot_dimension_numbers<[1], [0], [0], [1], [0, 0, 1, 1], [], []>} : vector<2x1024xbf16>, vector<1024x10xbf16>, vector<2x10xf32> -> vector<2x10xf32>
      %c0_38 = arith.constant 0 : index
      %c0_39 = arith.constant 0 : index
      %73 = vector.load %arg8[%c0_38, %c0_39] : memref<1x10xf32, #tpu.memory_space<vmem>>, vector<1x10xf32>
      %74 = vector.broadcast %73 : vector<1x10xf32> to vector<2x10xf32>
      %75 = arith.addf %72, %74 : vector<2x10xf32>
      %c0_40 = arith.constant 0 : index
      %c0_41 = arith.constant 0 : index
      %76 = vector.load %arg9[%c0_40, %c0_41] : memref<2x10xf32, #tpu.memory_space<vmem>>, vector<2x10xf32>
      tpu.vector_store %arg9[%c0_40, %c0_41], %75 {strides = array<i32>} : memref<2x10xf32, #tpu.memory_space<vmem>>, vector<2x10xf32>,
    } else {
    }
    return
  }
  func.func @transform_0(%arg0: i32) -> (i32, i32, i32) {
    %c0_i32 = arith.constant 0 : i32
    %c0_i32_0 = arith.constant 0 : i32
    %c0_i32_1 = arith.constant 0 : i32
    %c0_i32_2 = arith.constant 0 : i32
    return %c0_i32, %c0_i32_0, %c0_i32_1 : i32, i32, i32
  }
  func.func @transform_1(%arg0: i32) -> (i32, i32) {
    %c0_i32 = arith.constant 0 : i32
    %c0_i32_0 = arith.constant 0 : i32
    %c0_i32_1 = arith.constant 0 : i32
    return %c0_i32, %c0_i32_0 : i32, i32
  }
  func.func @transform_2(%arg0: i32) -> (i32, i32) {
    %c0_i32 = arith.constant 0 : i32
    %c0_i32_0 = arith.constant 0 : i32
    %c0_i32_1 = arith.constant 0 : i32
    return %c0_i32, %c0_i32_0 : i32, i32
  }
  func.func @transform_3(%arg0: i32) -> (i32, i32) {
    %c0_i32 = arith.constant 0 : i32
    %c0_i32_0 = arith.constant 0 : i32
    %c0_i32_1 = arith.constant 0 : i32
    return %c0_i32, %c0_i32_0 : i32, i32
  }
  func.func @transform_4(%arg0: i32) -> (i32, i32, i32) {
    %c0_i32 = arith.constant 0 : i32
    %c0_i32_0 = arith.constant 0 : i32
    %c0_i32_1 = arith.constant 0 : i32
    return %arg0, %c0_i32, %c0_i32_0 : i32, i32, i32
  }
  func.func @transform_5(%arg0: i32) -> (i32, i32) {
    %c0_i32 = arith.constant 0 : i32
    %c0_i32_0 = arith.constant 0 : i32
    %c0_i32_1 = arith.constant 0 : i32
    return %c0_i32, %c0_i32_0 : i32, i32
  }
  func.func @transform_6(%arg0: i32) -> (i32, i32) {
    %c0_i32 = arith.constant 0 : i32
    %c0_i32_0 = arith.constant 0 : i32
    %c0_i32_1 = arith.constant 0 : i32
    return %c0_i32, %c0_i32_0 : i32, i32
  }
  func.func @transform_7(%arg0: i32) -> (i32, i32) {
    %c0_i32 = arith.constant 0 : i32
    %c0_i32_0 = arith.constant 0 : i32
    %c0_i32_1 = arith.constant 0 : i32
    return %c0_i32, %c0_i32_0 : i32, i32
  }
  func.func @transform_8(%arg0: i32) -> (i32, i32) {
    %c0_i32 = arith.constant 0 : i32
    %c0_i32_0 = arith.constant 0 : i32
    %c0_i32_1 = arith.constant 0 : i32
    return %c0_i32, %c0_i32_0 : i32, i32
  }
}

</mosaic_0001>

<llo_original>
// kernel: inception_aux_forward.1
$region0: #{inception_aux_forward.1}
  #allocation0 [shape = 'u32[]', space=smem, size = 0x4, offset = 0x4, fixed_abs, tag = 'smem constant byte address 0x4 - core index']
  #allocation1 [shape = 'u32[72,128]{1,0:T(1,128)}', space=vmem, size = 0x9000, scoped, tag = 'internal scratch']
  #allocation2 [shape = 'f32[2,2,8,128]{3,2,1,0:T(8,128)}', space=vmem, size = 0x4000, scoped, tag = 'scratch operand']
  #allocation3 [shape = 'f32[2,1024]{1,0:T(2,128)}', space=vmem, size = 0x2000, scoped, tag = 'scratch operand']
  %s0 = inlined_call_operand.vmem [shape: f32[2,196,4], index: 0, kind: input, shape index: {}]
  %s1 = inlined_call_operand.hbm [shape: f32[16,196], index: 1, kind: input, shape index: {}]
  %s2 = inlined_call_operand.hbm [shape: f32[4,128], index: 2, kind: input, shape index: {}]
  %s3 = inlined_call_operand.hbm [shape: f32[1,128], index: 3, kind: input, shape index: {}]
  %s4 = inlined_call_operand.hbm [shape: bf16[2,1024,1024], index: 4, kind: input, shape index: {}]
  %s5 = inlined_call_operand.hbm [shape: f32[1,1024], index: 5, kind: input, shape index: {}]
  %s6 = inlined_call_operand.vmem [shape: bf16[1024,10], index: 6, kind: input, shape index: {}]
  %s7 = inlined_call_operand.hbm [shape: f32[1,10], index: 7, kind: input, shape index: {}]
  %s8 = inlined_call_operand.hbm [shape: f32[2,10], index: 8, kind: output, shape index: {}]
  %s9 = sld [smem:[#allocation0]]
  $region97: #{inception_aux_forward.1} parent=0
    _
  %s11 = ssub.s32 1, %s9
  %s12 = scalar_select 0, %s11, %s9
  $region1: #{inception_aux_forward.1} parent=0
    #allocation4 [shape = 'u8[16384]{0}', space=vmem, size = 0x4000, scoped, tag = 'input window, operand 1, single buffered']
    #allocation5 [shape = 's32[2]{0}', space=sflag, size = 0x8, scoped, tag = 'scoped memory for inception_aux_forward.1']
    #allocation6 [shape = 's32[2]{0}', space=sflag, size = 0x8, scoped, tag = 'scoped memory for inception_aux_forward.1']
    #allocation7 [shape = 'u8[2048]{0}', space=vmem, size = 0x800, scoped, tag = 'input window, operand 2, single buffered']
    #allocation8 [shape = 's32[1]{0}', space=sflag, size = 0x4, scoped, tag = 'scoped memory for inception_aux_forward.1']
    #allocation9 [shape = 'u8[512]{0}', space=vmem, size = 0x400, scoped, tag = 'input window, operand 3, single buffered']
    #allocation10 [shape = 'u8[4194304]{0}', space=vmem, size = 0x400000, scoped, tag = 'input window, operand 4']
    #allocation11 [shape = 's32[2]{0}', space=sflag, size = 0x8, scoped, tag = 'scoped memory for inception_aux_forward.1']
    #allocation12 [shape = 'u8[4096]{0}', space=vmem, size = 0x1000, scoped, tag = 'input window, operand 5, single buffered']
    #allocation13 [shape = 'u8[512]{0}', space=vmem, size = 0x400, scoped, tag = 'input window, operand 7, single buffered']
    #allocation14 [shape = 's32[1]{0}', space=sflag, size = 0x4, scoped, tag = 'scoped memory for inception_aux_forward.1']
    #allocation15 [shape = 'u8[1024]{0}', space=vmem, size = 0x400, scoped, tag = 'output window, operand 0, single buffered']
    %13 = vsyncpa [#allocation5], 0
    %14 = vsyncpa [#allocation8], 0
    %15 = vsyncpa [#allocation11], 0
    %s16 = scalar_lea.sflag [#allocation11], 1
    %17 = vsyncpa %s16, 0
    %18 = vsyncpa [#allocation14], 0
    %19 = vsyncpa [#allocation6], 0
    loop: start=0, step=1, limit=4
    $region2: #{inception_aux_forward.1} parent=1 // loop_pre_header
      _
    $region3: #{inception_aux_forward.1} parent=1 // loop_header
      %s21 = sphi 0, %s25
      %p22 = scmp.ge.s32.totalorder %s21, 4
      %s29 = sphi 0, %s29
      %s31 = sphi 0, %s29
      %s32 = sphi 0, %s31
      %s46 = sphi 0, %s32
      %s50 = sphi 0, %s50
      %s52 = sphi 0, %s50
      %s53 = sphi 0, %s52
      %s67 = sphi 0, %s53
      %s71 = sphi 0, %s71
      %s73 = sphi 0, %s71
      %s74 = sphi 0, %s73
      %s88 = sphi 0, %s74
      %s92 = sphi 0, %s92
      %s94 = sphi 0, %s92
      %s95 = sphi 0, %s94
      %s109 = sphi 0, %s95
      %s115 = sphi 0, %s117
      %s118 = sphi 0, %s115
      %s119 = sphi 0, %s118
      %s135 = sphi 0, %s119
      %s139 = sphi 0, %s139
      %s141 = sphi 0, %s139
      %s142 = sphi 0, %s141
      %s156 = sphi 0, %s142
      %s160 = sphi 0, %s160
      %s162 = sphi 0, %s160
      %s163 = sphi 0, %s162
      %s177 = sphi 0, %s163
      %s181 = sphi 0, %s181
      %s183 = sphi 0, %s181
      %s184 = sphi 0, %s183
      %s198 = sphi 0, %s184
      %s202 = sphi 0, %s202
      %s204 = sphi 0, %s202
      %s205 = sphi 0, %s204
      %s219 = sphi 0, %s205
    $region4: #{inception_aux_forward.1} parent=1 // loop_header_branch
      %24 = sbr.rel (%p22) target = $region8
    $region5: #{inception_aux_forward.1} parent=1 // loop_body
      %s26 = ssub.s32 %s21, 1
      %s27 = ssub.s32 %s21, 2
      %s28 = sadd.s32 %s21, 1
      %s30 = sadd.s32 %s29, 1
      %p33 = scmp.eq.s32.totalorder %s21, 1
      %p34 = scmp.ne.s32.totalorder %s29, %s31
      %p35 = scmp.eq.s32.totalorder %s21, 0
      %p36 = por %p34, %p35
      %p37 = scmp.ne.s32.totalorder %s29, %s31
      %p38 = scmp.eq.s32.totalorder %s26, 1
      %p39 = por %p37, %p38
      %p40 = scmp.ne.s32.totalorder %s31, %s32
      %p41 = scmp.eq.s32.totalorder %s26, 0
      %p42 = por %p40, %p41
      %p43 = scmp.ne.s32.totalorder %s31, %s32
      %p44 = scmp.eq.s32.totalorder %s27, 1
      %p45 = por %p43, %p44
      %p47 = scmp.ne.s32.totalorder %s32, %s46
      %p48 = scmp.eq.s32.totalorder %s27, 0
      %p49 = por %p47, %p48
      %s51 = sadd.s32 %s50, 1
      %p54 = scmp.eq.s32.totalorder %s21, 1
      %p55 = scmp.ne.s32.totalorder %s50, %s52
      %p56 = scmp.eq.s32.totalorder %s21, 0
      %p57 = por %p55, %p56
      %p58 = scmp.ne.s32.totalorder %s50, %s52
      %p59 = scmp.eq.s32.totalorder %s26, 1
      %p60 = por %p58, %p59
      %p61 = scmp.ne.s32.totalorder %s52, %s53
      %p62 = scmp.eq.s32.totalorder %s26, 0
      %p63 = por %p61, %p62
      %p64 = scmp.ne.s32.totalorder %s52, %s53
      %p65 = scmp.eq.s32.totalorder %s27, 1
      %p66 = por %p64, %p65
      %p68 = scmp.ne.s32.totalorder %s53, %s67
      %p69 = scmp.eq.s32.totalorder %s27, 0
      %p70 = por %p68, %p69
      %s72 = sadd.s32 %s71, 1
      %p75 = scmp.eq.s32.totalorder %s21, 1
      %p76 = scmp.ne.s32.totalorder %s71, %s73
      %p77 = scmp.eq.s32.totalorder %s21, 0
      %p78 = por %p76, %p77
      %p79 = scmp.ne.s32.totalorder %s71, %s73
      %p80 = scmp.eq.s32.totalorder %s26, 1
      %p81 = por %p79, %p80
      %p82 = scmp.ne.s32.totalorder %s73, %s74
      %p83 = scmp.eq.s32.totalorder %s26, 0
      %p84 = por %p82, %p83
      %p85 = scmp.ne.s32.totalorder %s73, %s74
      %p86 = scmp.eq.s32.totalorder %s27, 1
      %p87 = por %p85, %p86
      %p89 = scmp.ne.s32.totalorder %s74, %s88
      %p90 = scmp.eq.s32.totalorder %s27, 0
      %p91 = por %p89, %p90
      %s93 = sadd.s32 %s92, 1
      %p96 = scmp.eq.s32.totalorder %s21, 1
      %p97 = scmp.ne.s32.totalorder %s92, %s94
      %p98 = scmp.eq.s32.totalorder %s21, 0
      %p99 = por %p97, %p98
      %p100 = scmp.ne.s32.totalorder %s92, %s94
      %p101 = scmp.eq.s32.totalorder %s26, 1
      %p102 = por %p100, %p101
      %p103 = scmp.ne.s32.totalorder %s94, %s95
      %p104 = scmp.eq.s32.totalorder %s26, 0
      %p105 = por %p103, %p104
      %p106 = scmp.ne.s32.totalorder %s94, %s95
      %p107 = scmp.eq.s32.totalorder %s27, 1
      %p108 = por %p106, %p107
      %p110 = scmp.ne.s32.totalorder %s95, %s109
      %p111 = scmp.eq.s32.totalorder %s27, 0
      %p112 = por %p110, %p111
      %s113 = ssub.s32 %s21, %s28
      %p114 = scmp.eq.s32.totalorder %s113, 0
      %s116 = sadd.s32 %s115, 1
      %s117 = scalar_select %p114, %s115, %s116
      %p120 = pneg %p114
      %p121 = scmp.eq.s32.totalorder %s21, 1
      %p122 = por %p120, %p121
      %p123 = scmp.ne.s32.totalorder %s115, %s118
      %p124 = scmp.eq.s32.totalorder %s21, 0
      %p125 = por %p123, %p124
      %p126 = scmp.ne.s32.totalorder %s115, %s118
      %p127 = scmp.eq.s32.totalorder %s26, 1
      %p128 = por %p126, %p127
      %p129 = scmp.ne.s32.totalorder %s118, %s119
      %p130 = scmp.eq.s32.totalorder %s26, 0
      %p131 = por %p129, %p130
      %p132 = scmp.ne.s32.totalorder %s118, %s119
      %p133 = scmp.eq.s32.totalorder %s27, 1
      %p134 = por %p132, %p133
      %p136 = scmp.ne.s32.totalorder %s119, %s135
      %p137 = scmp.eq.s32.totalorder %s27, 0
      %p138 = por %p136, %p137
      %s140 = sadd.s32 %s139, 1
      %p143 = scmp.eq.s32.totalorder %s21, 1
      %p144 = scmp.ne.s32.totalorder %s139, %s141
      %p145 = scmp.eq.s32.totalorder %s21, 0
      %p146 = por %p144, %p145
      %p147 = scmp.ne.s32.totalorder %s139, %s141
      %p148 = scmp.eq.s32.totalorder %s26, 1
      %p149 = por %p147, %p148
      %p150 = scmp.ne.s32.totalorder %s141, %s142
      %p151 = scmp.eq.s32.totalorder %s26, 0
      %p152 = por %p150, %p151
      %p153 = scmp.ne.s32.totalorder %s141, %s142
      %p154 = scmp.eq.s32.totalorder %s27, 1
      %p155 = por %p153, %p154
      %p157 = scmp.ne.s32.totalorder %s142, %s156
      %p158 = scmp.eq.s32.totalorder %s27, 0
      %p159 = por %p157, %p158
      %s161 = sadd.s32 %s160, 1
      %p164 = scmp.eq.s32.totalorder %s21, 1
      %p165 = scmp.ne.s32.totalorder %s160, %s162
      %p166 = scmp.eq.s32.totalorder %s21, 0
      %p167 = por %p165, %p166
      %p168 = scmp.ne.s32.totalorder %s160, %s162
      %p169 = scmp.eq.s32.totalorder %s26, 1
      %p170 = por %p168, %p169
      %p171 = scmp.ne.s32.totalorder %s162, %s163
      %p172 = scmp.eq.s32.totalorder %s26, 0
      %p173 = por %p171, %p172
      %p174 = scmp.ne.s32.totalorder %s162, %s163
      %p175 = scmp.eq.s32.totalorder %s27, 1
      %p176 = por %p174, %p175
      %p178 = scmp.ne.s32.totalorder %s163, %s177
      %p179 = scmp.eq.s32.totalorder %s27, 0
      %p180 = por %p178, %p179
      %s182 = sadd.s32 %s181, 1
      %p185 = scmp.eq.s32.totalorder %s21, 1
      %p186 = scmp.ne.s32.totalorder %s181, %s183
      %p187 = scmp.eq.s32.totalorder %s21, 0
      %p188 = por %p186, %p187
      %p189 = scmp.ne.s32.totalorder %s181, %s183
      %p190 = scmp.eq.s32.totalorder %s26, 1
      %p191 = por %p189, %p190
      %p192 = scmp.ne.s32.totalorder %s183, %s184
      %p193 = scmp.eq.s32.totalorder %s26, 0
      %p194 = por %p192, %p193
      %p195 = scmp.ne.s32.totalorder %s183, %s184
      %p196 = scmp.eq.s32.totalorder %s27, 1
      %p197 = por %p195, %p196
      %p199 = scmp.ne.s32.totalorder %s184, %s198
      %p200 = scmp.eq.s32.totalorder %s27, 0
      %p201 = por %p199, %p200
      %s203 = sadd.s32 %s202, 1
      %p206 = scmp.eq.s32.totalorder %s21, 1
      %p207 = scmp.ne.s32.totalorder %s202, %s204
      %p208 = scmp.eq.s32.totalorder %s21, 0
      %p209 = por %p207, %p208
      %p210 = scmp.ne.s32.totalorder %s202, %s204
      %p211 = scmp.eq.s32.totalorder %s26, 1
      %p212 = por %p210, %p211
      %p213 = scmp.ne.s32.totalorder %s204, %s205
      %p214 = scmp.eq.s32.totalorder %s26, 0
      %p215 = por %p213, %p214
      %p216 = scmp.ne.s32.totalorder %s204, %s205
      %p217 = scmp.eq.s32.totalorder %s27, 1
      %p218 = por %p216, %p217
      %p220 = scmp.ne.s32.totalorder %s205, %s219
      %p221 = scmp.eq.s32.totalorder %s27, 0
      %p222 = por %p220, %p221
      %p223 = scmp.le.s32.totalorder 1, %s21
      %p224 = scmp.lt.s32.totalorder %s21, 3
      %p225 = pnand %p223, %p224
      %p226 = pneg %p225
      // Predicated region
      $region9: #{inception_aux_forward.1} parent=5 // pred_check
        _
      $region10: #{inception_aux_forward.1} parent=5 // pred_check_branch
        %228 = sbr.rel (%p225) target = $region12
      $region11: #{inception_aux_forward.1} parent=5 // pred_region
        %s229 = ssub.s32 %s21, 1
        // Predicated region
        $region13: #{inception_aux_forward.1} parent=11 // pred_check
          %p230 = pneg %p42
        $region14: #{inception_aux_forward.1} parent=11 // pred_check_branch
          %232 = sbr.rel (%p230) target = $region16
        $region15: #{inception_aux_forward.1} parent=11 // pred_region
          _
        $region16: #{inception_aux_forward.1} parent=11 // pred_fallthru
          _
        // Predicated region
        $region17: #{inception_aux_forward.1} parent=11 // pred_check
          %p233 = pneg %p63
        $region18: #{inception_aux_forward.1} parent=11 // pred_check_branch
          %235 = sbr.rel (%p233) target = $region20
        $region19: #{inception_aux_forward.1} parent=11 // pred_region
          %237 = vsyncadd [#allocation5], 0
          %s238 = sshll.u32 %s1, 4
          %s239 = int_to_ptr.hbm [resolvable:$true] %s238
          %s240 = sshll.u32 [#allocation4], 4
          %s241 = int_to_ptr.vmem [resolvable:$true] %s240
          %246 = dma.hbm_to_vmem [thread:$0]  %s239, 512, %s241, [#allocation5], 256, 256, 16
        $region20: #{inception_aux_forward.1} parent=11 // pred_fallthru
          _
        // Predicated region
        $region21: #{inception_aux_forward.1} parent=11 // pred_check
          %p247 = pneg %p84
        $region22: #{inception_aux_forward.1} parent=11 // pred_check_branch
          %249 = sbr.rel (%p247) target = $region24
        $region23: #{inception_aux_forward.1} parent=11 // pred_region
          %251 = vsyncadd [#allocation8], 0
          %s253 = sshll.u32 %s2, 4
          %s254 = int_to_ptr.hbm [resolvable:$true] %s253
          %s255 = sshll.u32 [#allocation7], 4
          %s256 = int_to_ptr.vmem [resolvable:$true] %s255
          %258 = dma.hbm_to_vmem [thread:$0]  %s254, 64, %s256, [#allocation8]
        $region24: #{inception_aux_forward.1} parent=11 // pred_fallthru
          _
        // Predicated region
        $region25: #{inception_aux_forward.1} parent=11 // pred_check
          %p259 = pneg %p105
        $region26: #{inception_aux_forward.1} parent=11 // pred_check_branch
          %261 = sbr.rel (%p259) target = $region28
        $region27: #{inception_aux_forward.1} parent=11 // pred_region
          %263 = vsyncadd [#allocation8], 0
          %s265 = sshll.u32 %s3, 4
          %s266 = int_to_ptr.hbm [resolvable:$true] %s265
          %s267 = sshll.u32 [#allocation9], 4
          %s268 = int_to_ptr.vmem [resolvable:$true] %s267
          %270 = dma.hbm_to_vmem [thread:$0]  %s266, 16, %s268, [#allocation8]
        $region28: #{inception_aux_forward.1} parent=11 // pred_fallthru
          _
        // Predicated region
        $region29: #{inception_aux_forward.1} parent=11 // pred_check
          %p271 = pneg %p152
        $region30: #{inception_aux_forward.1} parent=11 // pred_check_branch
          %273 = sbr.rel (%p271) target = $region32
        $region31: #{inception_aux_forward.1} parent=11 // pred_region
          %275 = vsyncadd [#allocation11], 0
          %s277 = sshll.u32 %s5, 4
          %s278 = int_to_ptr.hbm [resolvable:$true] %s277
          %s279 = sshll.u32 [#allocation12], 4
          %s280 = int_to_ptr.vmem [resolvable:$true] %s279
          %282 = dma.hbm_to_vmem [thread:$0]  %s278, 128, %s280, [#allocation11]
        $region32: #{inception_aux_forward.1} parent=11 // pred_fallthru
          _
        // Predicated region
        $region33: #{inception_aux_forward.1} parent=11 // pred_check
          %p283 = pneg %p173
        $region34: #{inception_aux_forward.1} parent=11 // pred_check_branch
          %285 = sbr.rel (%p283) target = $region36
        $region35: #{inception_aux_forward.1} parent=11 // pred_region
          _
        $region36: #{inception_aux_forward.1} parent=11 // pred_fallthru
          _
        // Predicated region
        $region37: #{inception_aux_forward.1} parent=11 // pred_check
          %p286 = pneg %p194
        $region38: #{inception_aux_forward.1} parent=11 // pred_check_branch
          %288 = sbr.rel (%p286) target = $region40
        $region39: #{inception_aux_forward.1} parent=11 // pred_region
          %290 = vsyncadd [#allocation14], 0
          %s292 = sshll.u32 %s7, 4
          %s293 = int_to_ptr.hbm [resolvable:$true] %s292
          %s294 = sshll.u32 [#allocation13], 4
          %s295 = int_to_ptr.vmem [resolvable:$true] %s294
          %297 = dma.hbm_to_vmem [thread:$0]  %s293, 16, %s295, [#allocation14]
        $region40: #{inception_aux_forward.1} parent=11 // pred_fallthru
          _
      $region12: #{inception_aux_forward.1} parent=5 // pred_fallthru
        _
      %p298 = scmp.lt.s32.totalorder %s21, 2
      // Predicated region
      $region41: #{inception_aux_forward.1} parent=5 // pred_check
        %p299 = pneg %p298
      $region42: #{inception_aux_forward.1} parent=5 // pred_check_branch
        %301 = sbr.rel (%p299) target = $region44
      $region43: #{inception_aux_forward.1} parent=5 // pred_region
        // Predicated region
        $region45: #{inception_aux_forward.1} parent=43 // pred_check
          %p302 = pneg %p125
        $region46: #{inception_aux_forward.1} parent=43 // pred_check_branch
          %304 = sbr.rel (%p302) target = $region48
        $region47: #{inception_aux_forward.1} parent=43 // pred_region
          %s305 = sand.u32 %s21, 1
          %s306 = scalar_lea.sflag [#allocation11], %s305
          %s307 = sand.u32 %s115, 1
          %s308 = smul.addr %s307, 4096
          %s309 = scalar_lea.vmem [#allocation10], %s308
          %311 = vsyncadd %s306, 0
          %s312 = smul.addr %s21, 1024
          %s313 = smul.addr %s312, 4
          %s314 = scalar_lea.hbm %s4, %s313
          %s315 = sshll.u32 %s314, 4
          %s316 = int_to_ptr.hbm [resolvable:$true] %s315
          %s317 = sshll.u32 %s309, 4
          %s318 = int_to_ptr.vmem [resolvable:$true] %s317
          %323 = dma.hbm_to_vmem [thread:$0]  %s316, 65536, %s318, %s306, 512, 512, 32
        $region48: #{inception_aux_forward.1} parent=43 // pred_fallthru
          _
      $region44: #{inception_aux_forward.1} parent=5 // pred_fallthru
        _
      %p324 = scmp.le.s32.totalorder 1, %s21
      %p325 = scmp.lt.s32.totalorder %s21, 3
      %p326 = pnand %p324, %p325
      %p327 = pneg %p326
      // Predicated region
      $region49: #{inception_aux_forward.1} parent=5 // pred_check
        _
      $region50: #{inception_aux_forward.1} parent=5 // pred_check_branch
        %329 = sbr.rel (%p326) target = $region52
      $region51: #{inception_aux_forward.1} parent=5 // pred_region
        %s330 = ssub.s32 %s21, 1
        // Predicated region
        $region53: #{inception_aux_forward.1} parent=51 // pred_check
          %p331 = pneg %p63
        $region54: #{inception_aux_forward.1} parent=51 // pred_check_branch
          %333 = sbr.rel (%p331) target = $region56
        $region55: #{inception_aux_forward.1} parent=51 // pred_region
          %335 = dma.done [#allocation5], 512
        $region56: #{inception_aux_forward.1} parent=51 // pred_fallthru
          _
        // Predicated region
        $region57: #{inception_aux_forward.1} parent=51 // pred_check
          %p336 = pneg %p84
        $region58: #{inception_aux_forward.1} parent=51 // pred_check_branch
          %338 = sbr.rel (%p336) target = $region60
        $region59: #{inception_aux_forward.1} parent=51 // pred_region
          %340 = dma.done [#allocation8], 64
        $region60: #{inception_aux_forward.1} parent=51 // pred_fallthru
          _
        // Predicated region
        $region61: #{inception_aux_forward.1} parent=51 // pred_check
          %p341 = pneg %p105
        $region62: #{inception_aux_forward.1} parent=51 // pred_check_branch
          %343 = sbr.rel (%p341) target = $region64
        $region63: #{inception_aux_forward.1} parent=51 // pred_region
          %345 = dma.done [#allocation8], 16
        $region64: #{inception_aux_forward.1} parent=51 // pred_fallthru
          _
        %s346 = sand.u32 %s26, 1
        %s347 = scalar_lea.sflag [#allocation11], %s346
        %s348 = sand.u32 %s118, 1
        %s349 = smul.addr %s348, 4096
        %s350 = scalar_lea.vmem [#allocation10], %s349
        // Predicated region
        $region65: #{inception_aux_forward.1} parent=51 // pred_check
          %p351 = pneg %p131
        $region66: #{inception_aux_forward.1} parent=51 // pred_check_branch
          %353 = sbr.rel (%p351) target = $region68
        $region67: #{inception_aux_forward.1} parent=51 // pred_region
          %355 = dma.done %s347, 65536
        $region68: #{inception_aux_forward.1} parent=51 // pred_fallthru
          _
        // Predicated region
        $region69: #{inception_aux_forward.1} parent=51 // pred_check
          %p356 = pneg %p152
        $region70: #{inception_aux_forward.1} parent=51 // pred_check_branch
          %358 = sbr.rel (%p356) target = $region72
        $region71: #{inception_aux_forward.1} parent=51 // pred_region
          %360 = dma.done [#allocation11], 128
        $region72: #{inception_aux_forward.1} parent=51 // pred_fallthru
          _
        // Predicated region
        $region73: #{inception_aux_forward.1} parent=51 // pred_check
          %p361 = pneg %p194
        $region74: #{inception_aux_forward.1} parent=51 // pred_check_branch
          %363 = sbr.rel (%p361) target = $region76
        $region75: #{inception_aux_forward.1} parent=51 // pred_region
          %365 = dma.done [#allocation14], 16
        $region76: #{inception_aux_forward.1} parent=51 // pred_fallthru
          _
        %p366 = pneg %p42
        %p367 = pneg %p39
        %p368 = pneg %p63
        %p369 = pneg %p60
        %p370 = pneg %p84
        %p371 = pneg %p81
        %p372 = pneg %p105
        %p373 = pneg %p102
        %s374 = sand.u32 %s26, 1
        %s375 = scalar_lea.sflag [#allocation11], %s374
        %s376 = sand.u32 %s118, 1
        %s377 = smul.addr %s376, 4096
        %s378 = scalar_lea.vmem [#allocation10], %s377
        %p379 = pneg %p131
        %p380 = pneg %p128
        %p381 = pneg %p152
        %p382 = pneg %p149
        %p383 = pneg %p173
        %p384 = pneg %p170
        %p385 = pneg %p194
        %p386 = pneg %p191
        %p387 = pneg %p215
        %p388 = pneg %p212
        %p389 = scmp.eq.s32.totalorder %s26, 0
        // Predicated region
        $region77: #{inception_aux_forward.1} parent=51 // pred_check
          %p390 = pneg %p389
        $region78: #{inception_aux_forward.1} parent=51 // pred_check_branch
          %392 = sbr.rel (%p390) target = $region80
        $region79: #{inception_aux_forward.1} parent=51 // pred_region
          %v393 = vld [vmem:[#allocation4] sm:$0xff]
          %v394 = vld [vmem:[#allocation4 + $0x8] sm:$0xff]
          %v395 = vld [vmem:[#allocation4 + $0x10] sm:$0xff]
          %v396 = vld [vmem:[#allocation4 + $0x18] sm:$0xff]
          %v397 = vld [vmem:[#allocation7] sm:$0xf]
          %v398 = vld [vmem:[#allocation9] sm:$0x1]
          %v399 = vld [vmem:[%s0] sm:$0xff]
          %v400 = vld [vmem:[%s0 + $0x8] sm:$0xff]
          %v401 = vld [vmem:[%s0 + $0x10] sm:$0xff]
          %v402 = vld [vmem:[%s0 + $0x18] sm:$0xff]
          %v403 = vld [vmem:[%s0 + $0x20] sm:$0xff]
          %v404 = vld [vmem:[%s0 + $0x28] sm:$0xff]
          %v405 = vld [vmem:[%s0 + $0x30] sm:$0xff]
          %v406 = vld [vmem:[%s0 + $0x38] sm:$0xff]
          %v407 = vld [vmem:[%s0 + $0x40] sm:$0xff]
          %v408 = vld [vmem:[%s0 + $0x48] sm:$0xff]
          %v409 = vld [vmem:[%s0 + $0x50] sm:$0xff]
          %v410 = vld [vmem:[%s0 + $0x58] sm:$0xff]
          %v411 = vld [vmem:[%s0 + $0x60] sm:$0xff]
          %v412 = vld [vmem:[%s0 + $0x68] sm:$0xff]
          %v413 = vld [vmem:[%s0 + $0x70] sm:$0xff]
          %v414 = vld [vmem:[%s0 + $0x78] sm:$0xff]
          %v415 = vld [vmem:[%s0 + $0x80] sm:$0xff]
          %v416 = vld [vmem:[%s0 + $0x88] sm:$0xff]
          %v417 = vld [vmem:[%s0 + $0x90] sm:$0xff]
          %v418 = vld [vmem:[%s0 + $0x98] sm:$0xff]
          %v419 = vld [vmem:[%s0 + $0xa0] sm:$0xff]
          %v420 = vld [vmem:[%s0 + $0xa8] sm:$0xff]
          %v421 = vld [vmem:[%s0 + $0xb0] sm:$0xff]
          %v422 = vld [vmem:[%s0 + $0xb8] sm:$0xff]
          %v423 = vld [vmem:[%s0 + $0xc0] sm:$0xf]
          %vm424 = vcmask 556032
          %v426 = vsel %vm424, %v394, 0
          %v429 = vsel %vm424, %v396, 0
          %vm431 = vcmask 1043456
          %v433 = vsel %vm431, %v423, 0
          %435 = vmatpush.msra.mxu0 %v414
          %436 = vmatpush.msra.mxu0 %v413
          %437 = vmatpush.msra.mxu0 %v412
          %438 = vmatpush.msra.mxu0 %v411
          %439 = vmatpush.msra.mxu0 %v410
          %440 = vmatpush.msra.mxu0 %v409
          %441 = vmatpush.msra.mxu0 %v408
          %442 = vmatpush.msra.mxu0 %v407
          %443 = vmatpush.msra.mxu0 %v406
          %444 = vmatpush.msra.mxu0 %v405
          %445 = vmatpush.msra.mxu0 %v404
          %446 = vmatpush.msra.mxu0 %v403
          %447 = vmatpush.msra.mxu0 %v402
          %448 = vmatpush.msra.mxu0 %v401
          %449 = vmatpush.msra.mxu0 %v400
          %450 = vmatpush.msra.mxu0 %v399
          %451 = vmatmul.f32.gmra.mxu0 %v393
          %v452 = vpop.f32.mrf.mxu0
          %v453 = vadd.f32 0.0, %v452
          %454 = vmatmul.f32.gmra.mxu0 %v395
          %v455 = vpop.f32.mrf.mxu0
          %v456 = vadd.f32 0.0, %v455
          %457 = vdwg.mxu0
          %458 = vmatpush.msra.mxu0 0.0
          %459 = vmatpush.msra.mxu0 0.0
          %460 = vmatpush.msra.mxu0 0.0
          %461 = vmatpush.msra.mxu0 0.0
          %462 = vmatpush.msra.mxu0 0.0
          %463 = vmatpush.msra.mxu0 0.0
          %464 = vmatpush.msra.mxu0 0.0
          %465 = vmatpush.msra.mxu0 %v433
          %466 = vmatpush.msra.mxu0 %v422
          %467 = vmatpush.msra.mxu0 %v421
          %468 = vmatpush.msra.mxu0 %v420
          %469 = vmatpush.msra.mxu0 %v419
          %470 = vmatpush.msra.mxu0 %v418
          %471 = vmatpush.msra.mxu0 %v417
          %472 = vmatpush.msra.mxu0 %v416
          %473 = vmatpush.msra.mxu0 %v415
          %474 = vmatmul.f32.gmra.mxu0 %v426
          %v475 = vpop.f32.mrf.mxu0
          %v476 = vadd.f32 %v453, %v475
          %477 = vmatmul.f32.gmra.mxu0 %v429
          %v478 = vpop.f32.mrf.mxu0
          %v479 = vadd.f32 %v456, %v478
          %480 = vdwg.mxu0
          %v482 = vperm.slane %v398, 0
          %vm484 = vcmask 31744
          %v486 = vsel %vm484, %v476, 0
          %v489 = vsel %vm484, %v479, 0
          %v492 = vsel %vm431, %v397, 0
          %494 = vmatpush.msra.mxu0 0.0
          %495 = vmatpush.msra.mxu0 0.0
          %496 = vmatpush.msra.mxu0 0.0
          %497 = vmatpush.msra.mxu0 0.0
          %498 = vmatpush.msra.mxu0 0.0
          %499 = vmatpush.msra.mxu0 0.0
          %500 = vmatpush.msra.mxu0 0.0
          %501 = vmatpush.msra.mxu0 0.0
          %502 = vmatpush.msra.mxu0 0.0
          %503 = vmatpush.msra.mxu0 0.0
          %504 = vmatpush.msra.mxu0 0.0
          %505 = vmatpush.msra.mxu0 0.0
          %506 = vmatpush.msra.mxu0 0.0
          %507 = vmatpush.msra.mxu0 0.0
          %508 = vmatpush.msra.mxu0 0.0
          %509 = vmatpush.msra.mxu0 %v492
          %510 = vmatmul.f32.gmra.mxu0 %v486
          %v511 = vpop.f32.mrf.mxu0
          %v512 = vadd.f32 %v482, %v511
          %513 = vmatmul.f32.gmra.mxu0 %v489
          %v514 = vpop.f32.mrf.mxu0
          %v515 = vadd.f32 %v482, %v514
          %516 = vdwg.mxu0
          %v517 = vmax.f32 %v512, 0.0
          %v518 = vmax.f32 %v515, 0.0
          %519 = vst [vmem:[#allocation2] sm:$0xff] %v517
          %s520 = scalar_lea.vmem [#allocation2], 16
          %521 = vst [vmem:[%s520] sm:$0xff] %v518
          %s522 = scalar_lea.vmem %s0, 200
          %v523 = vld [vmem:[%s522] sm:$0xff]
          %v524 = vld [vmem:[%s522 + $0x8] sm:$0xff]
          %v525 = vld [vmem:[%s522 + $0x10] sm:$0xff]
          %v526 = vld [vmem:[%s522 + $0x18] sm:$0xff]
          %v527 = vld [vmem:[%s522 + $0x20] sm:$0xff]
          %v528 = vld [vmem:[%s522 + $0x28] sm:$0xff]
          %v529 = vld [vmem:[%s522 + $0x30] sm:$0xff]
          %v530 = vld [vmem:[%s522 + $0x38] sm:$0xff]
          %v531 = vld [vmem:[%s522 + $0x40] sm:$0xff]
          %v532 = vld [vmem:[%s522 + $0x48] sm:$0xff]
          %v533 = vld [vmem:[%s522 + $0x50] sm:$0xff]
          %v534 = vld [vmem:[%s522 + $0x58] sm:$0xff]
          %v535 = vld [vmem:[%s522 + $0x60] sm:$0xff]
          %v536 = vld [vmem:[%s522 + $0x68] sm:$0xff]
          %v537 = vld [vmem:[%s522 + $0x70] sm:$0xff]
          %v538 = vld [vmem:[%s522 + $0x78] sm:$0xff]
          %v539 = vld [vmem:[%s522 + $0x80] sm:$0xff]
          %v540 = vld [vmem:[%s522 + $0x88] sm:$0xff]
          %v541 = vld [vmem:[%s522 + $0x90] sm:$0xff]
          %v542 = vld [vmem:[%s522 + $0x98] sm:$0xff]
          %v543 = vld [vmem:[%s522 + $0xa0] sm:$0xff]
          %v544 = vld [vmem:[%s522 + $0xa8] sm:$0xff]
          %v545 = vld [vmem:[%s522 + $0xb0] sm:$0xff]
          %v546 = vld [vmem:[%s522 + $0xb8] sm:$0xff]
          %v547 = vld [vmem:[%s522 + $0xc0] sm:$0xf]
          %v549 = vsel %vm431, %v547, 0
          %551 = vmatpush.msra.mxu0 %v538
          %552 = vmatpush.msra.mxu0 %v537
          %553 = vmatpush.msra.mxu0 %v536
          %554 = vmatpush.msra.mxu0 %v535
          %555 = vmatpush.msra.mxu0 %v534
          %556 = vmatpush.msra.mxu0 %v533
          %557 = vmatpush.msra.mxu0 %v532
          %558 = vmatpush.msra.mxu0 %v531
          %559 = vmatpush.msra.mxu0 %v530
          %560 = vmatpush.msra.mxu0 %v529
          %561 = vmatpush.msra.mxu0 %v528
          %562 = vmatpush.msra.mxu0 %v527
          %563 = vmatpush.msra.mxu0 %v526
          %564 = vmatpush.msra.mxu0 %v525
          %565 = vmatpush.msra.mxu0 %v524
          %566 = vmatpush.msra.mxu0 %v523
          %567 = vmatmul.f32.gmra.mxu0 %v393
          %v568 = vpop.f32.mrf.mxu0
          %v569 = vadd.f32 0.0, %v568
          %570 = vmatmul.f32.gmra.mxu0 %v395
          %v571 = vpop.f32.mrf.mxu0
          %v572 = vadd.f32 0.0, %v571
          %573 = vdwg.mxu0
          %574 = vmatpush.msra.mxu0 0.0
          %575 = vmatpush.msra.mxu0 0.0
          %576 = vmatpush.msra.mxu0 0.0
          %577 = vmatpush.msra.mxu0 0.0
          %578 = vmatpush.msra.mxu0 0.0
          %579 = vmatpush.msra.mxu0 0.0
          %580 = vmatpush.msra.mxu0 0.0
          %581 = vmatpush.msra.mxu0 %v549
          %582 = vmatpush.msra.mxu0 %v546
          %583 = vmatpush.msra.mxu0 %v545
          %584 = vmatpush.msra.mxu0 %v544
          %585 = vmatpush.msra.mxu0 %v543
          %586 = vmatpush.msra.mxu0 %v542
          %587 = vmatpush.msra.mxu0 %v541
          %588 = vmatpush.msra.mxu0 %v540
          %589 = vmatpush.msra.mxu0 %v539
          %590 = vmatmul.f32.gmra.mxu0 %v426
          %v591 = vpop.f32.mrf.mxu0
          %v592 = vadd.f32 %v569, %v591
          %593 = vmatmul.f32.gmra.mxu0 %v429
          %v594 = vpop.f32.mrf.mxu0
          %v595 = vadd.f32 %v572, %v594
          %596 = vdwg.mxu0
          %v598 = vsel %vm484, %v592, 0
          %v601 = vsel %vm484, %v595, 0
          %603 = vmatpush.msra.mxu0 0.0
          %604 = vmatpush.msra.mxu0 0.0
          %605 = vmatpush.msra.mxu0 0.0
          %606 = vmatpush.msra.mxu0 0.0
          %607 = vmatpush.msra.mxu0 0.0
          %608 = vmatpush.msra.mxu0 0.0
          %609 = vmatpush.msra.mxu0 0.0
          %610 = vmatpush.msra.mxu0 0.0
          %611 = vmatpush.msra.mxu0 0.0
          %612 = vmatpush.msra.mxu0 0.0
          %613 = vmatpush.msra.mxu0 0.0
          %614 = vmatpush.msra.mxu0 0.0
          %615 = vmatpush.msra.mxu0 0.0
          %616 = vmatpush.msra.mxu0 0.0
          %617 = vmatpush.msra.mxu0 0.0
          %618 = vmatpush.msra.mxu0 %v492
          %619 = vmatmul.f32.gmra.mxu0 %v598
          %v620 = vpop.f32.mrf.mxu0
          %v621 = vadd.f32 %v482, %v620
          %622 = vmatmul.f32.gmra.mxu0 %v601
          %v623 = vpop.f32.mrf.mxu0
          %v624 = vadd.f32 %v482, %v623
          %625 = vdwg.mxu0
          %v626 = vmax.f32 %v621, 0.0
          %v627 = vmax.f32 %v624, 0.0
          %s628 = scalar_lea.vmem [#allocation2], 8
          %629 = vst [vmem:[%s628] sm:$0xff] %v626
          %s630 = scalar_lea.vmem [#allocation2], 24
          %631 = vst [vmem:[%s630] sm:$0xff] %v627
          %v632 = vld [vmem:[#allocation12] sm:$0xff]
          %v634 = vperm.slane %v632, 0
          %v635 = vperm.slane %v632, 1
          %v636 = vperm.slane %v632, 2
          %v637 = vperm.slane %v632, 3
          %v638 = vperm.slane %v632, 4
          %v639 = vperm.slane %v632, 5
          %v640 = vperm.slane %v632, 6
          %v641 = vperm.slane %v632, 7
          %v642 = vrot.slane %v635, 6
          %v643 = vrot.slane %v636, 4
          %v644 = vrot.slane %v637, 2
          %v645 = vrot.slane %v639, 6
          %v646 = vrot.slane %v640, 4
          %v647 = vrot.slane %v641, 2
          %vm648 = vcmask 1041408
          %v649 = vsel %vm648, %v634, %v642
          %vm650 = vcmask 1045508
          %v651 = vsel %vm650, %v643, %v644
          %v652 = vsel %vm431, %v649, %v651
          %v653 = vsel %vm648, %v638, %v645
          %v654 = vsel %vm650, %v646, %v647
          %v655 = vsel %vm431, %v653, %v654
          %658 = vst [vmem:[#allocation3] sm:$0xff] %v652
          %659 = vst [vmem:[#allocation3 + $0x8] sm:$0xff] %v655
        $region80: #{inception_aux_forward.1} parent=51 // pred_fallthru
          _
        %s660 = smul.u32 %s26, 16
        %s661 = scalar_lea.vmem [#allocation2], %s660
        %v662 = vld [vmem:[%s661] sm:$0xff]
        %v663 = vld [vmem:[%s661 + $0x8] sm:$0xff]
        %v664 = vld [vmem:[#allocation3] sm:$0xff]
        %v665 = vld [vmem:[#allocation3 + $0x8] sm:$0xff]
        %v666 = vpack.c.bf16 %v662, %v662
        %v667 = vpack.c.bf16 %v663, %v663
        %v668 = vld [vmem:[%s350] sm:$0xff]
        %v669 = vld [vmem:[%s350 + $0x8] sm:$0xff]
        %v670 = vld [vmem:[%s350 + $0x10] sm:$0xff]
        %v671 = vld [vmem:[%s350 + $0x18] sm:$0xff]
        %v672 = vld [vmem:[%s350 + $0x20] sm:$0xff]
        %v673 = vld [vmem:[%s350 + $0x28] sm:$0xff]
        %v674 = vld [vmem:[%s350 + $0x30] sm:$0xff]
        %v675 = vld [vmem:[%s350 + $0x38] sm:$0xff]
        %v676 = vld [vmem:[%s350 + $0x40] sm:$0xff]
        %v677 = vld [vmem:[%s350 + $0x48] sm:$0xff]
        %v678 = vld [vmem:[%s350 + $0x50] sm:$0xff]
        %v679 = vld [vmem:[%s350 + $0x58] sm:$0xff]
        %v680 = vld [vmem:[%s350 + $0x60] sm:$0xff]
        %v681 = vld [vmem:[%s350 + $0x68] sm:$0xff]
        %v682 = vld [vmem:[%s350 + $0x70] sm:$0xff]
        %v683 = vld [vmem:[%s350 + $0x78] sm:$0xff]
        %v684 = vld [vmem:[%s350 + $0x80] sm:$0xff]
        %v685 = vld [vmem:[%s350 + $0x88] sm:$0xff]
        %v686 = vld [vmem:[%s350 + $0x90] sm:$0xff]
        %v687 = vld [vmem:[%s350 + $0x98] sm:$0xff]
        %v688 = vld [vmem:[%s350 + $0xa0] sm:$0xff]
        %v689 = vld [vmem:[%s350 + $0xa8] sm:$0xff]
        %v690 = vld [vmem:[%s350 + $0xb0] sm:$0xff]
        %v691 = vld [vmem:[%s350 + $0xb8] sm:$0xff]
        %v692 = vld [vmem:[%s350 + $0xc0] sm:$0xff]
        %v693 = vld [vmem:[%s350 + $0xc8] sm:$0xff]
        %v694 = vld [vmem:[%s350 + $0xd0] sm:$0xff]
        %v695 = vld [vmem:[%s350 + $0xd8] sm:$0xff]
        %v696 = vld [vmem:[%s350 + $0xe0] sm:$0xff]
        %v697 = vld [vmem:[%s350 + $0xe8] sm:$0xff]
        %v698 = vld [vmem:[%s350 + $0xf0] sm:$0xff]
        %v699 = vld [vmem:[%s350 + $0xf8] sm:$0xff]
        %v700 = vld [vmem:[%s350 + $0x100] sm:$0xff]
        %v701 = vld [vmem:[%s350 + $0x108] sm:$0xff]
        %v702 = vld [vmem:[%s350 + $0x110] sm:$0xff]
        %v703 = vld [vmem:[%s350 + $0x118] sm:$0xff]
        %v704 = vld [vmem:[%s350 + $0x120] sm:$0xff]
        %v705 = vld [vmem:[%s350 + $0x128] sm:$0xff]
        %v706 = vld [vmem:[%s350 + $0x130] sm:$0xff]
        %v707 = vld [vmem:[%s350 + $0x138] sm:$0xff]
        %v708 = vld [vmem:[%s350 + $0x140] sm:$0xff]
        %v709 = vld [vmem:[%s350 + $0x148] sm:$0xff]
        %v710 = vld [vmem:[%s350 + $0x150] sm:$0xff]
        %v711 = vld [vmem:[%s350 + $0x158] sm:$0xff]
        %v712 = vld [vmem:[%s350 + $0x160] sm:$0xff]
        %v713 = vld [vmem:[%s350 + $0x168] sm:$0xff]
        %v714 = vld [vmem:[%s350 + $0x170] sm:$0xff]
        %v715 = vld [vmem:[%s350 + $0x178] sm:$0xff]
        %v716 = vld [vmem:[%s350 + $0x180] sm:$0xff]
        %v717 = vld [vmem:[%s350 + $0x188] sm:$0xff]
        %v718 = vld [vmem:[%s350 + $0x190] sm:$0xff]
        %v719 = vld [vmem:[%s350 + $0x198] sm:$0xff]
        %v720 = vld [vmem:[%s350 + $0x1a0] sm:$0xff]
        %v721 = vld [vmem:[%s350 + $0x1a8] sm:$0xff]
        %v722 = vld [vmem:[%s350 + $0x1b0] sm:$0xff]
        %v723 = vld [vmem:[%s350 + $0x1b8] sm:$0xff]
        %v724 = vld [vmem:[%s350 + $0x1c0] sm:$0xff]
        %v725 = vld [vmem:[%s350 + $0x1c8] sm:$0xff]
        %v726 = vld [vmem:[%s350 + $0x1d0] sm:$0xff]
        %v727 = vld [vmem:[%s350 + $0x1d8] sm:$0xff]
        %v728 = vld [vmem:[%s350 + $0x1e0] sm:$0xff]
        %v729 = vld [vmem:[%s350 + $0x1e8] sm:$0xff]
        %v730 = vld [vmem:[%s350 + $0x1f0] sm:$0xff]
        %v731 = vld [vmem:[%s350 + $0x1f8] sm:$0xff]
        %v734 = vunpack.c.l.b16 %v666
        %v735 = vunpack.c.l.b16 %v667
        %v736 = vrot.slane %v735, 7
        %vm737 = vcmask 1041409
        %v738 = vsel %vm737, %v736, %v734
        %v739 = vpack.c.b16 %v738, %v738
        %v805 = vunpack.c.l.b16 %v668
        %v806 = vunpack.c.h.b16 %v668
        %v807 = vunpack.c.l.b16 %v669
        %v808 = vunpack.c.h.b16 %v669
        %v809 = vunpack.c.l.b16 %v670
        %v810 = vunpack.c.h.b16 %v670
        %v811 = vunpack.c.l.b16 %v671
        %v812 = vunpack.c.h.b16 %v671
        %v813 = vunpack.c.l.b16 %v672
        %v814 = vunpack.c.h.b16 %v672
        %v815 = vunpack.c.l.b16 %v673
        %v816 = vunpack.c.h.b16 %v673
        %v817 = vunpack.c.l.b16 %v674
        %v818 = vunpack.c.h.b16 %v674
        %v819 = vunpack.c.l.b16 %v675
        %v820 = vunpack.c.h.b16 %v675
        %v821 = vunpack.c.l.b16 %v676
        %v822 = vunpack.c.h.b16 %v676
        %v823 = vunpack.c.l.b16 %v677
        %v824 = vunpack.c.h.b16 %v677
        %v825 = vunpack.c.l.b16 %v678
        %v826 = vunpack.c.h.b16 %v678
        %v827 = vunpack.c.l.b16 %v679
        %v828 = vunpack.c.h.b16 %v679
        %v829 = vunpack.c.l.b16 %v680
        %v830 = vunpack.c.h.b16 %v680
        %v831 = vunpack.c.l.b16 %v681
        %v832 = vunpack.c.h.b16 %v681
        %v833 = vunpack.c.l.b16 %v682
        %v834 = vunpack.c.h.b16 %v682
        %v835 = vunpack.c.l.b16 %v683
        %v836 = vunpack.c.h.b16 %v683
        %v837 = vunpack.c.l.b16 %v684
        %v838 = vunpack.c.h.b16 %v684
        %v839 = vunpack.c.l.b16 %v685
        %v840 = vunpack.c.h.b16 %v685
        %v841 = vunpack.c.l.b16 %v686
        %v842 = vunpack.c.h.b16 %v686
        %v843 = vunpack.c.l.b16 %v687
        %v844 = vunpack.c.h.b16 %v687
        %v845 = vunpack.c.l.b16 %v688
        %v846 = vunpack.c.h.b16 %v688
        %v847 = vunpack.c.l.b16 %v689
        %v848 = vunpack.c.h.b16 %v689
        %v849 = vunpack.c.l.b16 %v690
        %v850 = vunpack.c.h.b16 %v690
        %v851 = vunpack.c.l.b16 %v691
        %v852 = vunpack.c.h.b16 %v691
        %v853 = vunpack.c.l.b16 %v692
        %v854 = vunpack.c.h.b16 %v692
        %v855 = vunpack.c.l.b16 %v693
        %v856 = vunpack.c.h.b16 %v693
        %v857 = vunpack.c.l.b16 %v694
        %v858 = vunpack.c.h.b16 %v694
        %v859 = vunpack.c.l.b16 %v695
        %v860 = vunpack.c.h.b16 %v695
        %v861 = vunpack.c.l.b16 %v696
        %v862 = vunpack.c.h.b16 %v696
        %v863 = vunpack.c.l.b16 %v697
        %v864 = vunpack.c.h.b16 %v697
        %v865 = vunpack.c.l.b16 %v698
        %v866 = vunpack.c.h.b16 %v698
        %v867 = vunpack.c.l.b16 %v699
        %v868 = vunpack.c.h.b16 %v699
        %v869 = vunpack.c.l.b16 %v700
        %v870 = vunpack.c.h.b16 %v700
        %v871 = vunpack.c.l.b16 %v701
        %v872 = vunpack.c.h.b16 %v701
        %v873 = vunpack.c.l.b16 %v702
        %v874 = vunpack.c.h.b16 %v702
        %v875 = vunpack.c.l.b16 %v703
        %v876 = vunpack.c.h.b16 %v703
        %v877 = vunpack.c.l.b16 %v704
        %v878 = vunpack.c.h.b16 %v704
        %v879 = vunpack.c.l.b16 %v705
        %v880 = vunpack.c.h.b16 %v705
        %v881 = vunpack.c.l.b16 %v706
        %v882 = vunpack.c.h.b16 %v706
        %v883 = vunpack.c.l.b16 %v707
        %v884 = vunpack.c.h.b16 %v707
        %v885 = vunpack.c.l.b16 %v708
        %v886 = vunpack.c.h.b16 %v708
        %v887 = vunpack.c.l.b16 %v709
        %v888 = vunpack.c.h.b16 %v709
        %v889 = vunpack.c.l.b16 %v710
        %v890 = vunpack.c.h.b16 %v710
        %v891 = vunpack.c.l.b16 %v711
        %v892 = vunpack.c.h.b16 %v711
        %v893 = vunpack.c.l.b16 %v712
        %v894 = vunpack.c.h.b16 %v712
        %v895 = vunpack.c.l.b16 %v713
        %v896 = vunpack.c.h.b16 %v713
        %v897 = vunpack.c.l.b16 %v714
        %v898 = vunpack.c.h.b16 %v714
        %v899 = vunpack.c.l.b16 %v715
        %v900 = vunpack.c.h.b16 %v715
        %v901 = vunpack.c.l.b16 %v716
        %v902 = vunpack.c.h.b16 %v716
        %v903 = vunpack.c.l.b16 %v717
        %v904 = vunpack.c.h.b16 %v717
        %v905 = vunpack.c.l.b16 %v718
        %v906 = vunpack.c.h.b16 %v718
        %v907 = vunpack.c.l.b16 %v719
        %v908 = vunpack.c.h.b16 %v719
        %v909 = vunpack.c.l.b16 %v720
        %v910 = vunpack.c.h.b16 %v720
        %v911 = vunpack.c.l.b16 %v721
        %v912 = vunpack.c.h.b16 %v721
        %v913 = vunpack.c.l.b16 %v722
        %v914 = vunpack.c.h.b16 %v722
        %v915 = vunpack.c.l.b16 %v723
        %v916 = vunpack.c.h.b16 %v723
        %v917 = vunpack.c.l.b16 %v724
        %v918 = vunpack.c.h.b16 %v724
        %v919 = vunpack.c.l.b16 %v725
        %v920 = vunpack.c.h.b16 %v725
        %v921 = vunpack.c.l.b16 %v726
        %v922 = vunpack.c.h.b16 %v726
        %v923 = vunpack.c.l.b16 %v727
        %v924 = vunpack.c.h.b16 %v727
        %v925 = vunpack.c.l.b16 %v728
        %v926 = vunpack.c.h.b16 %v728
        %v927 = vunpack.c.l.b16 %v729
        %v928 = vunpack.c.h.b16 %v729
        %v929 = vunpack.c.l.b16 %v730
        %v930 = vunpack.c.h.b16 %v730
        %v931 = vunpack.c.l.b16 %v731
        %v932 = vunpack.c.h.b16 %v731
        %v933 = vpack.c.b16 %v813, %v805
        %v934 = vpack.c.b16 %v814, %v806
        %v935 = vpack.c.b16 %v815, %v807
        %v936 = vpack.c.b16 %v816, %v808
        %v937 = vpack.c.b16 %v817, %v809
        %v938 = vpack.c.b16 %v818, %v810
        %v939 = vpack.c.b16 %v819, %v811
        %v940 = vpack.c.b16 %v820, %v812
        %v941 = vpack.c.b16 %v829, %v821
        %v942 = vpack.c.b16 %v830, %v822
        %v943 = vpack.c.b16 %v831, %v823
        %v944 = vpack.c.b16 %v832, %v824
        %v945 = vpack.c.b16 %v833, %v825
        %v946 = vpack.c.b16 %v834, %v826
        %v947 = vpack.c.b16 %v835, %v827
        %v948 = vpack.c.b16 %v836, %v828
        %v949 = vpack.c.b16 %v845, %v837
        %v950 = vpack.c.b16 %v846, %v838
        %v951 = vpack.c.b16 %v847, %v839
        %v952 = vpack.c.b16 %v848, %v840
        %v953 = vpack.c.b16 %v849, %v841
        %v954 = vpack.c.b16 %v850, %v842
        %v955 = vpack.c.b16 %v851, %v843
        %v956 = vpack.c.b16 %v852, %v844
        %v957 = vpack.c.b16 %v861, %v853
        %v958 = vpack.c.b16 %v862, %v854
        %v959 = vpack.c.b16 %v863, %v855
        %v960 = vpack.c.b16 %v864, %v856
        %v961 = vpack.c.b16 %v865, %v857
        %v962 = vpack.c.b16 %v866, %v858
        %v963 = vpack.c.b16 %v867, %v859
        %v964 = vpack.c.b16 %v868, %v860
        %v965 = vpack.c.b16 %v877, %v869
        %v966 = vpack.c.b16 %v878, %v870
        %v967 = vpack.c.b16 %v879, %v871
        %v968 = vpack.c.b16 %v880, %v872
        %v969 = vpack.c.b16 %v881, %v873
        %v970 = vpack.c.b16 %v882, %v874
        %v971 = vpack.c.b16 %v883, %v875
        %v972 = vpack.c.b16 %v884, %v876
        %v973 = vpack.c.b16 %v893, %v885
        %v974 = vpack.c.b16 %v894, %v886
        %v975 = vpack.c.b16 %v895, %v887
        %v976 = vpack.c.b16 %v896, %v888
        %v977 = vpack.c.b16 %v897, %v889
        %v978 = vpack.c.b16 %v898, %v890
        %v979 = vpack.c.b16 %v899, %v891
        %v980 = vpack.c.b16 %v900, %v892
        %v981 = vpack.c.b16 %v909, %v901
        %v982 = vpack.c.b16 %v910, %v902
        %v983 = vpack.c.b16 %v911, %v903
        %v984 = vpack.c.b16 %v912, %v904
        %v985 = vpack.c.b16 %v913, %v905
        %v986 = vpack.c.b16 %v914, %v906
        %v987 = vpack.c.b16 %v915, %v907
        %v988 = vpack.c.b16 %v916, %v908
        %v989 = vpack.c.b16 %v925, %v917
        %v990 = vpack.c.b16 %v926, %v918
        %v991 = vpack.c.b16 %v927, %v919
        %v992 = vpack.c.b16 %v928, %v920
        %v993 = vpack.c.b16 %v929, %v921
        %v994 = vpack.c.b16 %v930, %v922
        %v995 = vpack.c.b16 %v931, %v923
        %v996 = vpack.c.b16 %v932, %v924
        %1061 = vmatpush.bf16.msra.mxu0 %v989
        %1062 = vmatpush.bf16.msra.mxu0 %v981
        %1063 = vmatpush.bf16.msra.mxu0 %v973
        %1064 = vmatpush.bf16.msra.mxu0 %v965
        %1065 = vmatpush.bf16.msra.mxu0 %v957
        %1066 = vmatpush.bf16.msra.mxu0 %v949
        %1067 = vmatpush.bf16.msra.mxu0 %v941
        %1068 = vmatpush.bf16.msra.mxu0 %v933
        %1069 = vmatmul.bf16.gmra.mxu0 %v739
        %v1070 = vpop.f32.mrf.mxu0
        %v1071 = vadd.f32 0.0, %v1070
        %v1072 = vpop.f32.mrf.mxu0
        %1073 = vdwg.mxu0
        %1074 = vmatpush.bf16.msra.mxu0 %v990
        %1075 = vmatpush.bf16.msra.mxu0 %v982
        %1076 = vmatpush.bf16.msra.mxu0 %v974
        %1077 = vmatpush.bf16.msra.mxu0 %v966
        %1078 = vmatpush.bf16.msra.mxu0 %v958
        %1079 = vmatpush.bf16.msra.mxu0 %v950
        %1080 = vmatpush.bf16.msra.mxu0 %v942
        %1081 = vmatpush.bf16.msra.mxu0 %v934
        %1082 = vmatmul.bf16.gmra.mxu0 %v739
        %v1083 = vpop.f32.mrf.mxu0
        %v1084 = vadd.f32 0.0, %v1083
        %v1085 = vpop.f32.mrf.mxu0
        %1086 = vdwg.mxu0
        %1087 = vmatpush.bf16.msra.mxu0 %v991
        %1088 = vmatpush.bf16.msra.mxu0 %v983
        %1089 = vmatpush.bf16.msra.mxu0 %v975
        %1090 = vmatpush.bf16.msra.mxu0 %v967
        %1091 = vmatpush.bf16.msra.mxu0 %v959
        %1092 = vmatpush.bf16.msra.mxu0 %v951
        %1093 = vmatpush.bf16.msra.mxu0 %v943
        %1094 = vmatpush.bf16.msra.mxu0 %v935
        %1095 = vmatmul.bf16.gmra.mxu0 %v739
        %v1096 = vpop.f32.mrf.mxu0
        %v1097 = vadd.f32 0.0, %v1096
        %v1098 = vpop.f32.mrf.mxu0
        %1099 = vdwg.mxu0
        %1100 = vmatpush.bf16.msra.mxu0 %v992
        %1101 = vmatpush.bf16.msra.mxu0 %v984
        %1102 = vmatpush.bf16.msra.mxu0 %v976
        %1103 = vmatpush.bf16.msra.mxu0 %v968
        %1104 = vmatpush.bf16.msra.mxu0 %v960
        %1105 = vmatpush.bf16.msra.mxu0 %v952
        %1106 = vmatpush.bf16.msra.mxu0 %v944
        %1107 = vmatpush.bf16.msra.mxu0 %v936
        %1108 = vmatmul.bf16.gmra.mxu0 %v739
        %v1109 = vpop.f32.mrf.mxu0
        %v1110 = vadd.f32 0.0, %v1109
        %v1111 = vpop.f32.mrf.mxu0
        %1112 = vdwg.mxu0
        %1113 = vmatpush.bf16.msra.mxu0 %v993
        %1114 = vmatpush.bf16.msra.mxu0 %v985
        %1115 = vmatpush.bf16.msra.mxu0 %v977
        %1116 = vmatpush.bf16.msra.mxu0 %v969
        %1117 = vmatpush.bf16.msra.mxu0 %v961
        %1118 = vmatpush.bf16.msra.mxu0 %v953
        %1119 = vmatpush.bf16.msra.mxu0 %v945
        %1120 = vmatpush.bf16.msra.mxu0 %v937
        %1121 = vmatmul.bf16.gmra.mxu0 %v739
        %v1122 = vpop.f32.mrf.mxu0
        %v1123 = vadd.f32 0.0, %v1122
        %v1124 = vpop.f32.mrf.mxu0
        %1125 = vdwg.mxu0
        %1126 = vmatpush.bf16.msra.mxu0 %v994
        %1127 = vmatpush.bf16.msra.mxu0 %v986
        %1128 = vmatpush.bf16.msra.mxu0 %v978
        %1129 = vmatpush.bf16.msra.mxu0 %v970
        %1130 = vmatpush.bf16.msra.mxu0 %v962
        %1131 = vmatpush.bf16.msra.mxu0 %v954
        %1132 = vmatpush.bf16.msra.mxu0 %v946
        %1133 = vmatpush.bf16.msra.mxu0 %v938
        %1134 = vmatmul.bf16.gmra.mxu0 %v739
        %v1135 = vpop.f32.mrf.mxu0
        %v1136 = vadd.f32 0.0, %v1135
        %v1137 = vpop.f32.mrf.mxu0
        %1138 = vdwg.mxu0
        %1139 = vmatpush.bf16.msra.mxu0 %v995
        %1140 = vmatpush.bf16.msra.mxu0 %v987
        %1141 = vmatpush.bf16.msra.mxu0 %v979
        %1142 = vmatpush.bf16.msra.mxu0 %v971
        %1143 = vmatpush.bf16.msra.mxu0 %v963
        %1144 = vmatpush.bf16.msra.mxu0 %v955
        %1145 = vmatpush.bf16.msra.mxu0 %v947
        %1146 = vmatpush.bf16.msra.mxu0 %v939
        %1147 = vmatmul.bf16.gmra.mxu0 %v739
        %v1148 = vpop.f32.mrf.mxu0
        %v1149 = vadd.f32 0.0, %v1148
        %v1150 = vpop.f32.mrf.mxu0
        %1151 = vdwg.mxu0
        %1152 = vmatpush.bf16.msra.mxu0 %v996
        %1153 = vmatpush.bf16.msra.mxu0 %v988
        %1154 = vmatpush.bf16.msra.mxu0 %v980
        %1155 = vmatpush.bf16.msra.mxu0 %v972
        %1156 = vmatpush.bf16.msra.mxu0 %v964
        %1157 = vmatpush.bf16.msra.mxu0 %v956
        %1158 = vmatpush.bf16.msra.mxu0 %v948
        %1159 = vmatpush.bf16.msra.mxu0 %v940
        %1160 = vmatmul.bf16.gmra.mxu0 %v739
        %v1161 = vpop.f32.mrf.mxu0
        %v1162 = vadd.f32 0.0, %v1161
        %v1163 = vpop.f32.mrf.mxu0
        %1164 = vdwg.mxu0
        %v1173 = vrot.slane %v1084, 6
        %v1174 = vrot.slane %v1097, 4
        %v1175 = vrot.slane %v1110, 2
        %v1176 = vrot.slane %v1136, 6
        %v1177 = vrot.slane %v1149, 4
        %v1178 = vrot.slane %v1162, 2
        %vm1179 = vcmask 1041408
        %v1180 = vsel %vm1179, %v1071, %v1173
        %vm1181 = vcmask 1045508
        %v1182 = vsel %vm1181, %v1174, %v1175
        %vm1183 = vcmask 1043456
        %v1184 = vsel %vm1183, %v1180, %v1182
        %v1185 = vsel %vm1179, %v1123, %v1176
        %v1186 = vsel %vm1181, %v1177, %v1178
        %v1187 = vsel %vm1183, %v1185, %v1186
        %v1190 = vadd.f32 %v664, %v1184
        %v1191 = vadd.f32 %v665, %v1187
        %v1192 = vld [vmem:[%s350 + $0x200] sm:$0xff]
        %v1193 = vld [vmem:[%s350 + $0x208] sm:$0xff]
        %v1194 = vld [vmem:[%s350 + $0x210] sm:$0xff]
        %v1195 = vld [vmem:[%s350 + $0x218] sm:$0xff]
        %v1196 = vld [vmem:[%s350 + $0x220] sm:$0xff]
        %v1197 = vld [vmem:[%s350 + $0x228] sm:$0xff]
        %v1198 = vld [vmem:[%s350 + $0x230] sm:$0xff]
        %v1199 = vld [vmem:[%s350 + $0x238] sm:$0xff]
        %v1200 = vld [vmem:[%s350 + $0x240] sm:$0xff]
        %v1201 = vld [vmem:[%s350 + $0x248] sm:$0xff]
        %v1202 = vld [vmem:[%s350 + $0x250] sm:$0xff]
        %v1203 = vld [vmem:[%s350 + $0x258] sm:$0xff]
        %v1204 = vld [vmem:[%s350 + $0x260] sm:$0xff]
        %v1205 = vld [vmem:[%s350 + $0x268] sm:$0xff]
        %v1206 = vld [vmem:[%s350 + $0x270] sm:$0xff]
        %v1207 = vld [vmem:[%s350 + $0x278] sm:$0xff]
        %v1208 = vld [vmem:[%s350 + $0x280] sm:$0xff]
        %v1209 = vld [vmem:[%s350 + $0x288] sm:$0xff]
        %v1210 = vld [vmem:[%s350 + $0x290] sm:$0xff]
        %v1211 = vld [vmem:[%s350 + $0x298] sm:$0xff]
        %v1212 = vld [vmem:[%s350 + $0x2a0] sm:$0xff]
        %v1213 = vld [vmem:[%s350 + $0x2a8] sm:$0xff]
        %v1214 = vld [vmem:[%s350 + $0x2b0] sm:$0xff]
        %v1215 = vld [vmem:[%s350 + $0x2b8] sm:$0xff]
        %v1216 = vld [vmem:[%s350 + $0x2c0] sm:$0xff]
        %v1217 = vld [vmem:[%s350 + $0x2c8] sm:$0xff]
        %v1218 = vld [vmem:[%s350 + $0x2d0] sm:$0xff]
        %v1219 = vld [vmem:[%s350 + $0x2d8] sm:$0xff]
        %v1220 = vld [vmem:[%s350 + $0x2e0] sm:$0xff]
        %v1221 = vld [vmem:[%s350 + $0x2e8] sm:$0xff]
        %v1222 = vld [vmem:[%s350 + $0x2f0] sm:$0xff]
        %v1223 = vld [vmem:[%s350 + $0x2f8] sm:$0xff]
        %v1224 = vld [vmem:[%s350 + $0x300] sm:$0xff]
        %v1225 = vld [vmem:[%s350 + $0x308] sm:$0xff]
        %v1226 = vld [vmem:[%s350 + $0x310] sm:$0xff]
        %v1227 = vld [vmem:[%s350 + $0x318] sm:$0xff]
        %v1228 = vld [vmem:[%s350 + $0x320] sm:$0xff]
        %v1229 = vld [vmem:[%s350 + $0x328] sm:$0xff]
        %v1230 = vld [vmem:[%s350 + $0x330] sm:$0xff]
        %v1231 = vld [vmem:[%s350 + $0x338] sm:$0xff]
        %v1232 = vld [vmem:[%s350 + $0x340] sm:$0xff]
        %v1233 = vld [vmem:[%s350 + $0x348] sm:$0xff]
        %v1234 = vld [vmem:[%s350 + $0x350] sm:$0xff]
        %v1235 = vld [vmem:[%s350 + $0x358] sm:$0xff]
        %v1236 = vld [vmem:[%s350 + $0x360] sm:$0xff]
        %v1237 = vld [vmem:[%s350 + $0x368] sm:$0xff]
        %v1238 = vld [vmem:[%s350 + $0x370] sm:$0xff]
        %v1239 = vld [vmem:[%s350 + $0x378] sm:$0xff]
        %v1240 = vld [vmem:[%s350 + $0x380] sm:$0xff]
        %v1241 = vld [vmem:[%s350 + $0x388] sm:$0xff]
        %v1242 = vld [vmem:[%s350 + $0x390] sm:$0xff]
        %v1243 = vld [vmem:[%s350 + $0x398] sm:$0xff]
        %v1244 = vld [vmem:[%s350 + $0x3a0] sm:$0xff]
        %v1245 = vld [vmem:[%s350 + $0x3a8] sm:$0xff]
        %v1246 = vld [vmem:[%s350 + $0x3b0] sm:$0xff]
        %v1247 = vld [vmem:[%s350 + $0x3b8] sm:$0xff]
        %v1248 = vld [vmem:[%s350 + $0x3c0] sm:$0xff]
        %v1249 = vld [vmem:[%s350 + $0x3c8] sm:$0xff]
        %v1250 = vld [vmem:[%s350 + $0x3d0] sm:$0xff]
        %v1251 = vld [vmem:[%s350 + $0x3d8] sm:$0xff]
        %v1252 = vld [vmem:[%s350 + $0x3e0] sm:$0xff]
        %v1253 = vld [vmem:[%s350 + $0x3e8] sm:$0xff]
        %v1254 = vld [vmem:[%s350 + $0x3f0] sm:$0xff]
        %v1255 = vld [vmem:[%s350 + $0x3f8] sm:$0xff]
        %v1256 = vrot.slane %v734, 1
        %v1257 = vsel %vm737, %v735, %v1256
        %v1258 = vpack.c.b16 %v1257, %v1257
        %v1324 = vunpack.c.l.b16 %v1192
        %v1325 = vunpack.c.h.b16 %v1192
        %v1326 = vunpack.c.l.b16 %v1193
        %v1327 = vunpack.c.h.b16 %v1193
        %v1328 = vunpack.c.l.b16 %v1194
        %v1329 = vunpack.c.h.b16 %v1194
        %v1330 = vunpack.c.l.b16 %v1195
        %v1331 = vunpack.c.h.b16 %v1195
        %v1332 = vunpack.c.l.b16 %v1196
        %v1333 = vunpack.c.h.b16 %v1196
        %v1334 = vunpack.c.l.b16 %v1197
        %v1335 = vunpack.c.h.b16 %v1197
        %v1336 = vunpack.c.l.b16 %v1198
        %v1337 = vunpack.c.h.b16 %v1198
        %v1338 = vunpack.c.l.b16 %v1199
        %v1339 = vunpack.c.h.b16 %v1199
        %v1340 = vunpack.c.l.b16 %v1200
        %v1341 = vunpack.c.h.b16 %v1200
        %v1342 = vunpack.c.l.b16 %v1201
        %v1343 = vunpack.c.h.b16 %v1201
        %v1344 = vunpack.c.l.b16 %v1202
        %v1345 = vunpack.c.h.b16 %v1202
        %v1346 = vunpack.c.l.b16 %v1203
        %v1347 = vunpack.c.h.b16 %v1203
        %v1348 = vunpack.c.l.b16 %v1204
        %v1349 = vunpack.c.h.b16 %v1204
        %v1350 = vunpack.c.l.b16 %v1205
        %v1351 = vunpack.c.h.b16 %v1205
        %v1352 = vunpack.c.l.b16 %v1206
        %v1353 = vunpack.c.h.b16 %v1206
        %v1354 = vunpack.c.l.b16 %v1207
        %v1355 = vunpack.c.h.b16 %v1207
        %v1356 = vunpack.c.l.b16 %v1208
        %v1357 = vunpack.c.h.b16 %v1208
        %v1358 = vunpack.c.l.b16 %v1209
        %v1359 = vunpack.c.h.b16 %v1209
        %v1360 = vunpack.c.l.b16 %v1210
        %v1361 = vunpack.c.h.b16 %v1210
        %v1362 = vunpack.c.l.b16 %v1211
        %v1363 = vunpack.c.h.b16 %v1211
        %v1364 = vunpack.c.l.b16 %v1212
        %v1365 = vunpack.c.h.b16 %v1212
        %v1366 = vunpack.c.l.b16 %v1213
        %v1367 = vunpack.c.h.b16 %v1213
        %v1368 = vunpack.c.l.b16 %v1214
        %v1369 = vunpack.c.h.b16 %v1214
        %v1370 = vunpack.c.l.b16 %v1215
        %v1371 = vunpack.c.h.b16 %v1215
        %v1372 = vunpack.c.l.b16 %v1216
        %v1373 = vunpack.c.h.b16 %v1216
        %v1374 = vunpack.c.l.b16 %v1217
        %v1375 = vunpack.c.h.b16 %v1217
        %v1376 = vunpack.c.l.b16 %v1218
        %v1377 = vunpack.c.h.b16 %v1218
        %v1378 = vunpack.c.l.b16 %v1219
        %v1379 = vunpack.c.h.b16 %v1219
        %v1380 = vunpack.c.l.b16 %v1220
        %v1381 = vunpack.c.h.b16 %v1220
        %v1382 = vunpack.c.l.b16 %v1221
        %v1383 = vunpack.c.h.b16 %v1221
        %v1384 = vunpack.c.l.b16 %v1222
        %v1385 = vunpack.c.h.b16 %v1222
        %v1386 = vunpack.c.l.b16 %v1223
        %v1387 = vunpack.c.h.b16 %v1223
        %v1388 = vunpack.c.l.b16 %v1224
        %v1389 = vunpack.c.h.b16 %v1224
        %v1390 = vunpack.c.l.b16 %v1225
        %v1391 = vunpack.c.h.b16 %v1225
        %v1392 = vunpack.c.l.b16 %v1226
        %v1393 = vunpack.c.h.b16 %v1226
        %v1394 = vunpack.c.l.b16 %v1227
        %v1395 = vunpack.c.h.b16 %v1227
        %v1396 = vunpack.c.l.b16 %v1228
        %v1397 = vunpack.c.h.b16 %v1228
        %v1398 = vunpack.c.l.b16 %v1229
        %v1399 = vunpack.c.h.b16 %v1229
        %v1400 = vunpack.c.l.b16 %v1230
        %v1401 = vunpack.c.h.b16 %v1230
        %v1402 = vunpack.c.l.b16 %v1231
        %v1403 = vunpack.c.h.b16 %v1231
        %v1404 = vunpack.c.l.b16 %v1232
        %v1405 = vunpack.c.h.b16 %v1232
        %v1406 = vunpack.c.l.b16 %v1233
        %v1407 = vunpack.c.h.b16 %v1233
        %v1408 = vunpack.c.l.b16 %v1234
        %v1409 = vunpack.c.h.b16 %v1234
        %v1410 = vunpack.c.l.b16 %v1235
        %v1411 = vunpack.c.h.b16 %v1235
        %v1412 = vunpack.c.l.b16 %v1236
        %v1413 = vunpack.c.h.b16 %v1236
        %v1414 = vunpack.c.l.b16 %v1237
        %v1415 = vunpack.c.h.b16 %v1237
        %v1416 = vunpack.c.l.b16 %v1238
        %v1417 = vunpack.c.h.b16 %v1238
        %v1418 = vunpack.c.l.b16 %v1239
        %v1419 = vunpack.c.h.b16 %v1239
        %v1420 = vunpack.c.l.b16 %v1240
        %v1421 = vunpack.c.h.b16 %v1240
        %v1422 = vunpack.c.l.b16 %v1241
        %v1423 = vunpack.c.h.b16 %v1241
        %v1424 = vunpack.c.l.b16 %v1242
        %v1425 = vunpack.c.h.b16 %v1242
        %v1426 = vunpack.c.l.b16 %v1243
        %v1427 = vunpack.c.h.b16 %v1243
        %v1428 = vunpack.c.l.b16 %v1244
        %v1429 = vunpack.c.h.b16 %v1244
        %v1430 = vunpack.c.l.b16 %v1245
        %v1431 = vunpack.c.h.b16 %v1245
        %v1432 = vunpack.c.l.b16 %v1246
        %v1433 = vunpack.c.h.b16 %v1246
        %v1434 = vunpack.c.l.b16 %v1247
        %v1435 = vunpack.c.h.b16 %v1247
        %v1436 = vunpack.c.l.b16 %v1248
        %v1437 = vunpack.c.h.b16 %v1248
        %v1438 = vunpack.c.l.b16 %v1249
        %v1439 = vunpack.c.h.b16 %v1249
        %v1440 = vunpack.c.l.b16 %v1250
        %v1441 = vunpack.c.h.b16 %v1250
        %v1442 = vunpack.c.l.b16 %v1251
        %v1443 = vunpack.c.h.b16 %v1251
        %v1444 = vunpack.c.l.b16 %v1252
        %v1445 = vunpack.c.h.b16 %v1252
        %v1446 = vunpack.c.l.b16 %v1253
        %v1447 = vunpack.c.h.b16 %v1253
        %v1448 = vunpack.c.l.b16 %v1254
        %v1449 = vunpack.c.h.b16 %v1254
        %v1450 = vunpack.c.l.b16 %v1255
        %v1451 = vunpack.c.h.b16 %v1255
        %v1452 = vpack.c.b16 %v1332, %v1324
        %v1453 = vpack.c.b16 %v1333, %v1325
        %v1454 = vpack.c.b16 %v1334, %v1326
        %v1455 = vpack.c.b16 %v1335, %v1327
        %v1456 = vpack.c.b16 %v1336, %v1328
        %v1457 = vpack.c.b16 %v1337, %v1329
        %v1458 = vpack.c.b16 %v1338, %v1330
        %v1459 = vpack.c.b16 %v1339, %v1331
        %v1460 = vpack.c.b16 %v1348, %v1340
        %v1461 = vpack.c.b16 %v1349, %v1341
        %v1462 = vpack.c.b16 %v1350, %v1342
        %v1463 = vpack.c.b16 %v1351, %v1343
        %v1464 = vpack.c.b16 %v1352, %v1344
        %v1465 = vpack.c.b16 %v1353, %v1345
        %v1466 = vpack.c.b16 %v1354, %v1346
        %v1467 = vpack.c.b16 %v1355, %v1347
        %v1468 = vpack.c.b16 %v1364, %v1356
        %v1469 = vpack.c.b16 %v1365, %v1357
        %v1470 = vpack.c.b16 %v1366, %v1358
        %v1471 = vpack.c.b16 %v1367, %v1359
        %v1472 = vpack.c.b16 %v1368, %v1360
        %v1473 = vpack.c.b16 %v1369, %v1361
        %v1474 = vpack.c.b16 %v1370, %v1362
        %v1475 = vpack.c.b16 %v1371, %v1363
        %v1476 = vpack.c.b16 %v1380, %v1372
        %v1477 = vpack.c.b16 %v1381, %v1373
        %v1478 = vpack.c.b16 %v1382, %v1374
        %v1479 = vpack.c.b16 %v1383, %v1375
        %v1480 = vpack.c.b16 %v1384, %v1376
        %v1481 = vpack.c.b16 %v1385, %v1377
        %v1482 = vpack.c.b16 %v1386, %v1378
        %v1483 = vpack.c.b16 %v1387, %v1379
        %v1484 = vpack.c.b16 %v1396, %v1388
        %v1485 = vpack.c.b16 %v1397, %v1389
        %v1486 = vpack.c.b16 %v1398, %v1390
        %v1487 = vpack.c.b16 %v1399, %v1391
        %v1488 = vpack.c.b16 %v1400, %v1392
        %v1489 = vpack.c.b16 %v1401, %v1393
        %v1490 = vpack.c.b16 %v1402, %v1394
        %v1491 = vpack.c.b16 %v1403, %v1395
        %v1492 = vpack.c.b16 %v1412, %v1404
        %v1493 = vpack.c.b16 %v1413, %v1405
        %v1494 = vpack.c.b16 %v1414, %v1406
        %v1495 = vpack.c.b16 %v1415, %v1407
        %v1496 = vpack.c.b16 %v1416, %v1408
        %v1497 = vpack.c.b16 %v1417, %v1409
        %v1498 = vpack.c.b16 %v1418, %v1410
        %v1499 = vpack.c.b16 %v1419, %v1411
        %v1500 = vpack.c.b16 %v1428, %v1420
        %v1501 = vpack.c.b16 %v1429, %v1421
        %v1502 = vpack.c.b16 %v1430, %v1422
        %v1503 = vpack.c.b16 %v1431, %v1423
        %v1504 = vpack.c.b16 %v1432, %v1424
        %v1505 = vpack.c.b16 %v1433, %v1425
        %v1506 = vpack.c.b16 %v1434, %v1426
        %v1507 = vpack.c.b16 %v1435, %v1427
        %v1508 = vpack.c.b16 %v1444, %v1436
        %v1509 = vpack.c.b16 %v1445, %v1437
        %v1510 = vpack.c.b16 %v1446, %v1438
        %v1511 = vpack.c.b16 %v1447, %v1439
        %v1512 = vpack.c.b16 %v1448, %v1440
        %v1513 = vpack.c.b16 %v1449, %v1441
        %v1514 = vpack.c.b16 %v1450, %v1442
        %v1515 = vpack.c.b16 %v1451, %v1443
        %1580 = vmatpush.bf16.msra.mxu0 %v1508
        %1581 = vmatpush.bf16.msra.mxu0 %v1500
        %1582 = vmatpush.bf16.msra.mxu0 %v1492
        %1583 = vmatpush.bf16.msra.mxu0 %v1484
        %1584 = vmatpush.bf16.msra.mxu0 %v1476
        %1585 = vmatpush.bf16.msra.mxu0 %v1468
        %1586 = vmatpush.bf16.msra.mxu0 %v1460
        %1587 = vmatpush.bf16.msra.mxu0 %v1452
        %1588 = vmatmul.bf16.gmra.mxu0 %v1258
        %v1589 = vpop.f32.mrf.mxu0
        %v1590 = vadd.f32 0.0, %v1589
        %v1591 = vpop.f32.mrf.mxu0
        %1592 = vdwg.mxu0
        %1593 = vmatpush.bf16.msra.mxu0 %v1509
        %1594 = vmatpush.bf16.msra.mxu0 %v1501
        %1595 = vmatpush.bf16.msra.mxu0 %v1493
        %1596 = vmatpush.bf16.msra.mxu0 %v1485
        %1597 = vmatpush.bf16.msra.mxu0 %v1477
        %1598 = vmatpush.bf16.msra.mxu0 %v1469
        %1599 = vmatpush.bf16.msra.mxu0 %v1461
        %1600 = vmatpush.bf16.msra.mxu0 %v1453
        %1601 = vmatmul.bf16.gmra.mxu0 %v1258
        %v1602 = vpop.f32.mrf.mxu0
        %v1603 = vadd.f32 0.0, %v1602
        %v1604 = vpop.f32.mrf.mxu0
        %1605 = vdwg.mxu0
        %1606 = vmatpush.bf16.msra.mxu0 %v1510
        %1607 = vmatpush.bf16.msra.mxu0 %v1502
        %1608 = vmatpush.bf16.msra.mxu0 %v1494
        %1609 = vmatpush.bf16.msra.mxu0 %v1486
        %1610 = vmatpush.bf16.msra.mxu0 %v1478
        %1611 = vmatpush.bf16.msra.mxu0 %v1470
        %1612 = vmatpush.bf16.msra.mxu0 %v1462
        %1613 = vmatpush.bf16.msra.mxu0 %v1454
        %1614 = vmatmul.bf16.gmra.mxu0 %v1258
        %v1615 = vpop.f32.mrf.mxu0
        %v1616 = vadd.f32 0.0, %v1615
        %v1617 = vpop.f32.mrf.mxu0
        %1618 = vdwg.mxu0
        %1619 = vmatpush.bf16.msra.mxu0 %v1511
        %1620 = vmatpush.bf16.msra.mxu0 %v1503
        %1621 = vmatpush.bf16.msra.mxu0 %v1495
        %1622 = vmatpush.bf16.msra.mxu0 %v1487
        %1623 = vmatpush.bf16.msra.mxu0 %v1479
        %1624 = vmatpush.bf16.msra.mxu0 %v1471
        %1625 = vmatpush.bf16.msra.mxu0 %v1463
        %1626 = vmatpush.bf16.msra.mxu0 %v1455
        %1627 = vmatmul.bf16.gmra.mxu0 %v1258
        %v1628 = vpop.f32.mrf.mxu0
        %v1629 = vadd.f32 0.0, %v1628
        %v1630 = vpop.f32.mrf.mxu0
        %1631 = vdwg.mxu0
        %1632 = vmatpush.bf16.msra.mxu0 %v1512
        %1633 = vmatpush.bf16.msra.mxu0 %v1504
        %1634 = vmatpush.bf16.msra.mxu0 %v1496
        %1635 = vmatpush.bf16.msra.mxu0 %v1488
        %1636 = vmatpush.bf16.msra.mxu0 %v1480
        %1637 = vmatpush.bf16.msra.mxu0 %v1472
        %1638 = vmatpush.bf16.msra.mxu0 %v1464
        %1639 = vmatpush.bf16.msra.mxu0 %v1456
        %1640 = vmatmul.bf16.gmra.mxu0 %v1258
        %v1641 = vpop.f32.mrf.mxu0
        %v1642 = vadd.f32 0.0, %v1641
        %v1643 = vpop.f32.mrf.mxu0
        %1644 = vdwg.mxu0
        %1645 = vmatpush.bf16.msra.mxu0 %v1513
        %1646 = vmatpush.bf16.msra.mxu0 %v1505
        %1647 = vmatpush.bf16.msra.mxu0 %v1497
        %1648 = vmatpush.bf16.msra.mxu0 %v1489
        %1649 = vmatpush.bf16.msra.mxu0 %v1481
        %1650 = vmatpush.bf16.msra.mxu0 %v1473
        %1651 = vmatpush.bf16.msra.mxu0 %v1465
        %1652 = vmatpush.bf16.msra.mxu0 %v1457
        %1653 = vmatmul.bf16.gmra.mxu0 %v1258
        %v1654 = vpop.f32.mrf.mxu0
        %v1655 = vadd.f32 0.0, %v1654
        %v1656 = vpop.f32.mrf.mxu0
        %1657 = vdwg.mxu0
        %1658 = vmatpush.bf16.msra.mxu0 %v1514
        %1659 = vmatpush.bf16.msra.mxu0 %v1506
        %1660 = vmatpush.bf16.msra.mxu0 %v1498
        %1661 = vmatpush.bf16.msra.mxu0 %v1490
        %1662 = vmatpush.bf16.msra.mxu0 %v1482
        %1663 = vmatpush.bf16.msra.mxu0 %v1474
        %1664 = vmatpush.bf16.msra.mxu0 %v1466
        %1665 = vmatpush.bf16.msra.mxu0 %v1458
        %1666 = vmatmul.bf16.gmra.mxu0 %v1258
        %v1667 = vpop.f32.mrf.mxu0
        %v1668 = vadd.f32 0.0, %v1667
        %v1669 = vpop.f32.mrf.mxu0
        %1670 = vdwg.mxu0
        %1671 = vmatpush.bf16.msra.mxu0 %v1515
        %1672 = vmatpush.bf16.msra.mxu0 %v1507
        %1673 = vmatpush.bf16.msra.mxu0 %v1499
        %1674 = vmatpush.bf16.msra.mxu0 %v1491
        %1675 = vmatpush.bf16.msra.mxu0 %v1483
        %1676 = vmatpush.bf16.msra.mxu0 %v1475
        %1677 = vmatpush.bf16.msra.mxu0 %v1467
        %1678 = vmatpush.bf16.msra.mxu0 %v1459
        %1679 = vmatmul.bf16.gmra.mxu0 %v1258
        %v1680 = vpop.f32.mrf.mxu0
        %v1681 = vadd.f32 0.0, %v1680
        %v1682 = vpop.f32.mrf.mxu0
        %1683 = vdwg.mxu0
        %v1692 = vrot.slane %v1603, 6
        %v1693 = vrot.slane %v1616, 4
        %v1694 = vrot.slane %v1629, 2
        %v1695 = vrot.slane %v1655, 6
        %v1696 = vrot.slane %v1668, 4
        %v1697 = vrot.slane %v1681, 2
        %v1698 = vsel %vm1179, %v1590, %v1692
        %v1699 = vsel %vm1181, %v1693, %v1694
        %v1700 = vsel %vm1183, %v1698, %v1699
        %v1701 = vsel %vm1179, %v1642, %v1695
        %v1702 = vsel %vm1181, %v1696, %v1697
        %v1703 = vsel %vm1183, %v1701, %v1702
        %v1706 = vadd.f32 %v1190, %v1700
        %v1707 = vadd.f32 %v1191, %v1703
        %v1708 = vld [vmem:[%s350 + $0x400] sm:$0xff]
        %v1709 = vld [vmem:[%s350 + $0x408] sm:$0xff]
        %v1710 = vld [vmem:[%s350 + $0x410] sm:$0xff]
        %v1711 = vld [vmem:[%s350 + $0x418] sm:$0xff]
        %v1712 = vld [vmem:[%s350 + $0x420] sm:$0xff]
        %v1713 = vld [vmem:[%s350 + $0x428] sm:$0xff]
        %v1714 = vld [vmem:[%s350 + $0x430] sm:$0xff]
        %v1715 = vld [vmem:[%s350 + $0x438] sm:$0xff]
        %v1716 = vld [vmem:[%s350 + $0x440] sm:$0xff]
        %v1717 = vld [vmem:[%s350 + $0x448] sm:$0xff]
        %v1718 = vld [vmem:[%s350 + $0x450] sm:$0xff]
        %v1719 = vld [vmem:[%s350 + $0x458] sm:$0xff]
        %v1720 = vld [vmem:[%s350 + $0x460] sm:$0xff]
        %v1721 = vld [vmem:[%s350 + $0x468] sm:$0xff]
        %v1722 = vld [vmem:[%s350 + $0x470] sm:$0xff]
        %v1723 = vld [vmem:[%s350 + $0x478] sm:$0xff]
        %v1724 = vld [vmem:[%s350 + $0x480] sm:$0xff]
        %v1725 = vld [vmem:[%s350 + $0x488] sm:$0xff]
        %v1726 = vld [vmem:[%s350 + $0x490] sm:$0xff]
        %v1727 = vld [vmem:[%s350 + $0x498] sm:$0xff]
        %v1728 = vld [vmem:[%s350 + $0x4a0] sm:$0xff]
        %v1729 = vld [vmem:[%s350 + $0x4a8] sm:$0xff]
        %v1730 = vld [vmem:[%s350 + $0x4b0] sm:$0xff]
        %v1731 = vld [vmem:[%s350 + $0x4b8] sm:$0xff]
        %v1732 = vld [vmem:[%s350 + $0x4c0] sm:$0xff]
        %v1733 = vld [vmem:[%s350 + $0x4c8] sm:$0xff]
        %v1734 = vld [vmem:[%s350 + $0x4d0] sm:$0xff]
        %v1735 = vld [vmem:[%s350 + $0x4d8] sm:$0xff]
        %v1736 = vld [vmem:[%s350 + $0x4e0] sm:$0xff]
        %v1737 = vld [vmem:[%s350 + $0x4e8] sm:$0xff]
        %v1738 = vld [vmem:[%s350 + $0x4f0] sm:$0xff]
        %v1739 = vld [vmem:[%s350 + $0x4f8] sm:$0xff]
        %v1740 = vld [vmem:[%s350 + $0x500] sm:$0xff]
        %v1741 = vld [vmem:[%s350 + $0x508] sm:$0xff]
        %v1742 = vld [vmem:[%s350 + $0x510] sm:$0xff]
        %v1743 = vld [vmem:[%s350 + $0x518] sm:$0xff]
        %v1744 = vld [vmem:[%s350 + $0x520] sm:$0xff]
        %v1745 = vld [vmem:[%s350 + $0x528] sm:$0xff]
        %v1746 = vld [vmem:[%s350 + $0x530] sm:$0xff]
        %v1747 = vld [vmem:[%s350 + $0x538] sm:$0xff]
        %v1748 = vld [vmem:[%s350 + $0x540] sm:$0xff]
        %v1749 = vld [vmem:[%s350 + $0x548] sm:$0xff]
        %v1750 = vld [vmem:[%s350 + $0x550] sm:$0xff]
        %v1751 = vld [vmem:[%s350 + $0x558] sm:$0xff]
        %v1752 = vld [vmem:[%s350 + $0x560] sm:$0xff]
        %v1753 = vld [vmem:[%s350 + $0x568] sm:$0xff]
        %v1754 = vld [vmem:[%s350 + $0x570] sm:$0xff]
        %v1755 = vld [vmem:[%s350 + $0x578] sm:$0xff]
        %v1756 = vld [vmem:[%s350 + $0x580] sm:$0xff]
        %v1757 = vld [vmem:[%s350 + $0x588] sm:$0xff]
        %v1758 = vld [vmem:[%s350 + $0x590] sm:$0xff]
        %v1759 = vld [vmem:[%s350 + $0x598] sm:$0xff]
        %v1760 = vld [vmem:[%s350 + $0x5a0] sm:$0xff]
        %v1761 = vld [vmem:[%s350 + $0x5a8] sm:$0xff]
        %v1762 = vld [vmem:[%s350 + $0x5b0] sm:$0xff]
        %v1763 = vld [vmem:[%s350 + $0x5b8] sm:$0xff]
        %v1764 = vld [vmem:[%s350 + $0x5c0] sm:$0xff]
        %v1765 = vld [vmem:[%s350 + $0x5c8] sm:$0xff]
        %v1766 = vld [vmem:[%s350 + $0x5d0] sm:$0xff]
        %v1767 = vld [vmem:[%s350 + $0x5d8] sm:$0xff]
        %v1768 = vld [vmem:[%s350 + $0x5e0] sm:$0xff]
        %v1769 = vld [vmem:[%s350 + $0x5e8] sm:$0xff]
        %v1770 = vld [vmem:[%s350 + $0x5f0] sm:$0xff]
        %v1771 = vld [vmem:[%s350 + $0x5f8] sm:$0xff]
        %v1772 = vrot.slane %v734, 2
        %v1773 = vrot.slane %v735, 1
        %v1774 = vsel %vm737, %v1773, %v1772
        %v1775 = vpack.c.b16 %v1774, %v1774
        %v1841 = vunpack.c.l.b16 %v1708
        %v1842 = vunpack.c.h.b16 %v1708
        %v1843 = vunpack.c.l.b16 %v1709
        %v1844 = vunpack.c.h.b16 %v1709
        %v1845 = vunpack.c.l.b16 %v1710
        %v1846 = vunpack.c.h.b16 %v1710
        %v1847 = vunpack.c.l.b16 %v1711
        %v1848 = vunpack.c.h.b16 %v1711
        %v1849 = vunpack.c.l.b16 %v1712
        %v1850 = vunpack.c.h.b16 %v1712
        %v1851 = vunpack.c.l.b16 %v1713
        %v1852 = vunpack.c.h.b16 %v1713
        %v1853 = vunpack.c.l.b16 %v1714
        %v1854 = vunpack.c.h.b16 %v1714
        %v1855 = vunpack.c.l.b16 %v1715
        %v1856 = vunpack.c.h.b16 %v1715
        %v1857 = vunpack.c.l.b16 %v1716
        %v1858 = vunpack.c.h.b16 %v1716
        %v1859 = vunpack.c.l.b16 %v1717
        %v1860 = vunpack.c.h.b16 %v1717
        %v1861 = vunpack.c.l.b16 %v1718
        %v1862 = vunpack.c.h.b16 %v1718
        %v1863 = vunpack.c.l.b16 %v1719
        %v1864 = vunpack.c.h.b16 %v1719
        %v1865 = vunpack.c.l.b16 %v1720
        %v1866 = vunpack.c.h.b16 %v1720
        %v1867 = vunpack.c.l.b16 %v1721
        %v1868 = vunpack.c.h.b16 %v1721
        %v1869 = vunpack.c.l.b16 %v1722
        %v1870 = vunpack.c.h.b16 %v1722
        %v1871 = vunpack.c.l.b16 %v1723
        %v1872 = vunpack.c.h.b16 %v1723
        %v1873 = vunpack.c.l.b16 %v1724
        %v1874 = vunpack.c.h.b16 %v1724
        %v1875 = vunpack.c.l.b16 %v1725
        %v1876 = vunpack.c.h.b16 %v1725
        %v1877 = vunpack.c.l.b16 %v1726
        %v1878 = vunpack.c.h.b16 %v1726
        %v1879 = vunpack.c.l.b16 %v1727
        %v1880 = vunpack.c.h.b16 %v1727
        %v1881 = vunpack.c.l.b16 %v1728
        %v1882 = vunpack.c.h.b16 %v1728
        %v1883 = vunpack.c.l.b16 %v1729
        %v1884 = vunpack.c.h.b16 %v1729
        %v1885 = vunpack.c.l.b16 %v1730
        %v1886 = vunpack.c.h.b16 %v1730
        %v1887 = vunpack.c.l.b16 %v1731
        %v1888 = vunpack.c.h.b16 %v1731
        %v1889 = vunpack.c.l.b16 %v1732
        %v1890 = vunpack.c.h.b16 %v1732
        %v1891 = vunpack.c.l.b16 %v1733
        %v1892 = vunpack.c.h.b16 %v1733
        %v1893 = vunpack.c.l.b16 %v1734
        %v1894 = vunpack.c.h.b16 %v1734
        %v1895 = vunpack.c.l.b16 %v1735
        %v1896 = vunpack.c.h.b16 %v1735
        %v1897 = vunpack.c.l.b16 %v1736
        %v1898 = vunpack.c.h.b16 %v1736
        %v1899 = vunpack.c.l.b16 %v1737
        %v1900 = vunpack.c.h.b16 %v1737
        %v1901 = vunpack.c.l.b16 %v1738
        %v1902 = vunpack.c.h.b16 %v1738
        %v1903 = vunpack.c.l.b16 %v1739
        %v1904 = vunpack.c.h.b16 %v1739
        %v1905 = vunpack.c.l.b16 %v1740
        %v1906 = vunpack.c.h.b16 %v1740
        %v1907 = vunpack.c.l.b16 %v1741
        %v1908 = vunpack.c.h.b16 %v1741
        %v1909 = vunpack.c.l.b16 %v1742
        %v1910 = vunpack.c.h.b16 %v1742
        %v1911 = vunpack.c.l.b16 %v1743
        %v1912 = vunpack.c.h.b16 %v1743
        %v1913 = vunpack.c.l.b16 %v1744
        %v1914 = vunpack.c.h.b16 %v1744
        %v1915 = vunpack.c.l.b16 %v1745
        %v1916 = vunpack.c.h.b16 %v1745
        %v1917 = vunpack.c.l.b16 %v1746
        %v1918 = vunpack.c.h.b16 %v1746
        %v1919 = vunpack.c.l.b16 %v1747
        %v1920 = vunpack.c.h.b16 %v1747
        %v1921 = vunpack.c.l.b16 %v1748
        %v1922 = vunpack.c.h.b16 %v1748
        %v1923 = vunpack.c.l.b16 %v1749
        %v1924 = vunpack.c.h.b16 %v1749
        %v1925 = vunpack.c.l.b16 %v1750
        %v1926 = vunpack.c.h.b16 %v1750
        %v1927 = vunpack.c.l.b16 %v1751
        %v1928 = vunpack.c.h.b16 %v1751
        %v1929 = vunpack.c.l.b16 %v1752
        %v1930 = vunpack.c.h.b16 %v1752
        %v1931 = vunpack.c.l.b16 %v1753
        %v1932 = vunpack.c.h.b16 %v1753
        %v1933 = vunpack.c.l.b16 %v1754
        %v1934 = vunpack.c.h.b16 %v1754
        %v1935 = vunpack.c.l.b16 %v1755
        %v1936 = vunpack.c.h.b16 %v1755
        %v1937 = vunpack.c.l.b16 %v1756
        %v1938 = vunpack.c.h.b16 %v1756
        %v1939 = vunpack.c.l.b16 %v1757
        %v1940 = vunpack.c.h.b16 %v1757
        %v1941 = vunpack.c.l.b16 %v1758
        %v1942 = vunpack.c.h.b16 %v1758
        %v1943 = vunpack.c.l.b16 %v1759
        %v1944 = vunpack.c.h.b16 %v1759
        %v1945 = vunpack.c.l.b16 %v1760
        %v1946 = vunpack.c.h.b16 %v1760
        %v1947 = vunpack.c.l.b16 %v1761
        %v1948 = vunpack.c.h.b16 %v1761
        %v1949 = vunpack.c.l.b16 %v1762
        %v1950 = vunpack.c.h.b16 %v1762
        %v1951 = vunpack.c.l.b16 %v1763
        %v1952 = vunpack.c.h.b16 %v1763
        %v1953 = vunpack.c.l.b16 %v1764
        %v1954 = vunpack.c.h.b16 %v1764
        %v1955 = vunpack.c.l.b16 %v1765
        %v1956 = vunpack.c.h.b16 %v1765
        %v1957 = vunpack.c.l.b16 %v1766
        %v1958 = vunpack.c.h.b16 %v1766
        %v1959 = vunpack.c.l.b16 %v1767
        %v1960 = vunpack.c.h.b16 %v1767
        %v1961 = vunpack.c.l.b16 %v1768
        %v1962 = vunpack.c.h.b16 %v1768
        %v1963 = vunpack.c.l.b16 %v1769
        %v1964 = vunpack.c.h.b16 %v1769
        %v1965 = vunpack.c.l.b16 %v1770
        %v1966 = vunpack.c.h.b16 %v1770
        %v1967 = vunpack.c.l.b16 %v1771
        %v1968 = vunpack.c.h.b16 %v1771
        %v1969 = vpack.c.b16 %v1849, %v1841
        %v1970 = vpack.c.b16 %v1850, %v1842
        %v1971 = vpack.c.b16 %v1851, %v1843
        %v1972 = vpack.c.b16 %v1852, %v1844
        %v1973 = vpack.c.b16 %v1853, %v1845
        %v1974 = vpack.c.b16 %v1854, %v1846
        %v1975 = vpack.c.b16 %v1855, %v1847
        %v1976 = vpack.c.b16 %v1856, %v1848
        %v1977 = vpack.c.b16 %v1865, %v1857
        %v1978 = vpack.c.b16 %v1866, %v1858
        %v1979 = vpack.c.b16 %v1867, %v1859
        %v1980 = vpack.c.b16 %v1868, %v1860
        %v1981 = vpack.c.b16 %v1869, %v1861
        %v1982 = vpack.c.b16 %v1870, %v1862
        %v1983 = vpack.c.b16 %v1871, %v1863
        %v1984 = vpack.c.b16 %v1872, %v1864
        %v1985 = vpack.c.b16 %v1881, %v1873
        %v1986 = vpack.c.b16 %v1882, %v1874
        %v1987 = vpack.c.b16 %v1883, %v1875
        %v1988 = vpack.c.b16 %v1884, %v1876
        %v1989 = vpack.c.b16 %v1885, %v1877
        %v1990 = vpack.c.b16 %v1886, %v1878
        %v1991 = vpack.c.b16 %v1887, %v1879
        %v1992 = vpack.c.b16 %v1888, %v1880
        %v1993 = vpack.c.b16 %v1897, %v1889
        %v1994 = vpack.c.b16 %v1898, %v1890
        %v1995 = vpack.c.b16 %v1899, %v1891
        %v1996 = vpack.c.b16 %v1900, %v1892
        %v1997 = vpack.c.b16 %v1901, %v1893
        %v1998 = vpack.c.b16 %v1902, %v1894
        %v1999 = vpack.c.b16 %v1903, %v1895
        %v2000 = vpack.c.b16 %v1904, %v1896
        %v2001 = vpack.c.b16 %v1913, %v1905
        %v2002 = vpack.c.b16 %v1914, %v1906
        %v2003 = vpack.c.b16 %v1915, %v1907
        %v2004 = vpack.c.b16 %v1916, %v1908
        %v2005 = vpack.c.b16 %v1917, %v1909
        %v2006 = vpack.c.b16 %v1918, %v1910
        %v2007 = vpack.c.b16 %v1919, %v1911
        %v2008 = vpack.c.b16 %v1920, %v1912
        %v2009 = vpack.c.b16 %v1929, %v1921
        %v2010 = vpack.c.b16 %v1930, %v1922
        %v2011 = vpack.c.b16 %v1931, %v1923
        %v2012 = vpack.c.b16 %v1932, %v1924
        %v2013 = vpack.c.b16 %v1933, %v1925
        %v2014 = vpack.c.b16 %v1934, %v1926
        %v2015 = vpack.c.b16 %v1935, %v1927
        %v2016 = vpack.c.b16 %v1936, %v1928
        %v2017 = vpack.c.b16 %v1945, %v1937
        %v2018 = vpack.c.b16 %v1946, %v1938
        %v2019 = vpack.c.b16 %v1947, %v1939
        %v2020 = vpack.c.b16 %v1948, %v1940
        %v2021 = vpack.c.b16 %v1949, %v1941
        %v2022 = vpack.c.b16 %v1950, %v1942
        %v2023 = vpack.c.b16 %v1951, %v1943
        %v2024 = vpack.c.b16 %v1952, %v1944
        %v2025 = vpack.c.b16 %v1961, %v1953
        %v2026 = vpack.c.b16 %v1962, %v1954
        %v2027 = vpack.c.b16 %v1963, %v1955
        %v2028 = vpack.c.b16 %v1964, %v1956
        %v2029 = vpack.c.b16 %v1965, %v1957
        %v2030 = vpack.c.b16 %v1966, %v1958
        %v2031 = vpack.c.b16 %v1967, %v1959
        %v2032 = vpack.c.b16 %v1968, %v1960
        %2097 = vmatpush.bf16.msra.mxu0 %v2025
        %2098 = vmatpush.bf16.msra.mxu0 %v2017
        %2099 = vmatpush.bf16.msra.mxu0 %v2009
        %2100 = vmatpush.bf16.msra.mxu0 %v2001
        %2101 = vmatpush.bf16.msra.mxu0 %v1993
        %2102 = vmatpush.bf16.msra.mxu0 %v1985
        %2103 = vmatpush.bf16.msra.mxu0 %v1977
        %2104 = vmatpush.bf16.msra.mxu0 %v1969
        %2105 = vmatmul.bf16.gmra.mxu0 %v1775
        %v2106 = vpop.f32.mrf.mxu0
        %v2107 = vadd.f32 0.0, %v2106
        %v2108 = vpop.f32.mrf.mxu0
        %2109 = vdwg.mxu0
        %2110 = vmatpush.bf16.msra.mxu0 %v2026
        %2111 = vmatpush.bf16.msra.mxu0 %v2018
        %2112 = vmatpush.bf16.msra.mxu0 %v2010
        %2113 = vmatpush.bf16.msra.mxu0 %v2002
        %2114 = vmatpush.bf16.msra.mxu0 %v1994
        %2115 = vmatpush.bf16.msra.mxu0 %v1986
        %2116 = vmatpush.bf16.msra.mxu0 %v1978
        %2117 = vmatpush.bf16.msra.mxu0 %v1970
        %2118 = vmatmul.bf16.gmra.mxu0 %v1775
        %v2119 = vpop.f32.mrf.mxu0
        %v2120 = vadd.f32 0.0, %v2119
        %v2121 = vpop.f32.mrf.mxu0
        %2122 = vdwg.mxu0
        %2123 = vmatpush.bf16.msra.mxu0 %v2027
        %2124 = vmatpush.bf16.msra.mxu0 %v2019
        %2125 = vmatpush.bf16.msra.mxu0 %v2011
        %2126 = vmatpush.bf16.msra.mxu0 %v2003
        %2127 = vmatpush.bf16.msra.mxu0 %v1995
        %2128 = vmatpush.bf16.msra.mxu0 %v1987
        %2129 = vmatpush.bf16.msra.mxu0 %v1979
        %2130 = vmatpush.bf16.msra.mxu0 %v1971
        %2131 = vmatmul.bf16.gmra.mxu0 %v1775
        %v2132 = vpop.f32.mrf.mxu0
        %v2133 = vadd.f32 0.0, %v2132
        %v2134 = vpop.f32.mrf.mxu0
        %2135 = vdwg.mxu0
        %2136 = vmatpush.bf16.msra.mxu0 %v2028
        %2137 = vmatpush.bf16.msra.mxu0 %v2020
        %2138 = vmatpush.bf16.msra.mxu0 %v2012
        %2139 = vmatpush.bf16.msra.mxu0 %v2004
        %2140 = vmatpush.bf16.msra.mxu0 %v1996
        %2141 = vmatpush.bf16.msra.mxu0 %v1988
        %2142 = vmatpush.bf16.msra.mxu0 %v1980
        %2143 = vmatpush.bf16.msra.mxu0 %v1972
        %2144 = vmatmul.bf16.gmra.mxu0 %v1775
        %v2145 = vpop.f32.mrf.mxu0
        %v2146 = vadd.f32 0.0, %v2145
        %v2147 = vpop.f32.mrf.mxu0
        %2148 = vdwg.mxu0
        %2149 = vmatpush.bf16.msra.mxu0 %v2029
        %2150 = vmatpush.bf16.msra.mxu0 %v2021
        %2151 = vmatpush.bf16.msra.mxu0 %v2013
        %2152 = vmatpush.bf16.msra.mxu0 %v2005
        %2153 = vmatpush.bf16.msra.mxu0 %v1997
        %2154 = vmatpush.bf16.msra.mxu0 %v1989
        %2155 = vmatpush.bf16.msra.mxu0 %v1981
        %2156 = vmatpush.bf16.msra.mxu0 %v1973
        %2157 = vmatmul.bf16.gmra.mxu0 %v1775
        %v2158 = vpop.f32.mrf.mxu0
        %v2159 = vadd.f32 0.0, %v2158
        %v2160 = vpop.f32.mrf.mxu0
        %2161 = vdwg.mxu0
        %2162 = vmatpush.bf16.msra.mxu0 %v2030
        %2163 = vmatpush.bf16.msra.mxu0 %v2022
        %2164 = vmatpush.bf16.msra.mxu0 %v2014
        %2165 = vmatpush.bf16.msra.mxu0 %v2006
        %2166 = vmatpush.bf16.msra.mxu0 %v1998
        %2167 = vmatpush.bf16.msra.mxu0 %v1990
        %2168 = vmatpush.bf16.msra.mxu0 %v1982
        %2169 = vmatpush.bf16.msra.mxu0 %v1974
        %2170 = vmatmul.bf16.gmra.mxu0 %v1775
        %v2171 = vpop.f32.mrf.mxu0
        %v2172 = vadd.f32 0.0, %v2171
        %v2173 = vpop.f32.mrf.mxu0
        %2174 = vdwg.mxu0
        %2175 = vmatpush.bf16.msra.mxu0 %v2031
        %2176 = vmatpush.bf16.msra.mxu0 %v2023
        %2177 = vmatpush.bf16.msra.mxu0 %v2015
        %2178 = vmatpush.bf16.msra.mxu0 %v2007
        %2179 = vmatpush.bf16.msra.mxu0 %v1999
        %2180 = vmatpush.bf16.msra.mxu0 %v1991
        %2181 = vmatpush.bf16.msra.mxu0 %v1983
        %2182 = vmatpush.bf16.msra.mxu0 %v1975
        %2183 = vmatmul.bf16.gmra.mxu0 %v1775
        %v2184 = vpop.f32.mrf.mxu0
        %v2185 = vadd.f32 0.0, %v2184
        %v2186 = vpop.f32.mrf.mxu0
        %2187 = vdwg.mxu0
        %2188 = vmatpush.bf16.msra.mxu0 %v2032
        %2189 = vmatpush.bf16.msra.mxu0 %v2024
        %2190 = vmatpush.bf16.msra.mxu0 %v2016
        %2191 = vmatpush.bf16.msra.mxu0 %v2008
        %2192 = vmatpush.bf16.msra.mxu0 %v2000
        %2193 = vmatpush.bf16.msra.mxu0 %v1992
        %2194 = vmatpush.bf16.msra.mxu0 %v1984
        %2195 = vmatpush.bf16.msra.mxu0 %v1976
        %2196 = vmatmul.bf16.gmra.mxu0 %v1775
        %v2197 = vpop.f32.mrf.mxu0
        %v2198 = vadd.f32 0.0, %v2197
        %v2199 = vpop.f32.mrf.mxu0
        %2200 = vdwg.mxu0
        %v2209 = vrot.slane %v2120, 6
        %v2210 = vrot.slane %v2133, 4
        %v2211 = vrot.slane %v2146, 2
        %v2212 = vrot.slane %v2172, 6
        %v2213 = vrot.slane %v2185, 4
        %v2214 = vrot.slane %v2198, 2
        %v2215 = vsel %vm1179, %v2107, %v2209
        %v2216 = vsel %vm1181, %v2210, %v2211
        %v2217 = vsel %vm1183, %v2215, %v2216
        %v2218 = vsel %vm1179, %v2159, %v2212
        %v2219 = vsel %vm1181, %v2213, %v2214
        %v2220 = vsel %vm1183, %v2218, %v2219
        %v2223 = vadd.f32 %v1706, %v2217
        %v2224 = vadd.f32 %v1707, %v2220
        %v2225 = vld [vmem:[%s350 + $0x600] sm:$0xff]
        %v2226 = vld [vmem:[%s350 + $0x608] sm:$0xff]
        %v2227 = vld [vmem:[%s350 + $0x610] sm:$0xff]
        %v2228 = vld [vmem:[%s350 + $0x618] sm:$0xff]
        %v2229 = vld [vmem:[%s350 + $0x620] sm:$0xff]
        %v2230 = vld [vmem:[%s350 + $0x628] sm:$0xff]
        %v2231 = vld [vmem:[%s350 + $0x630] sm:$0xff]
        %v2232 = vld [vmem:[%s350 + $0x638] sm:$0xff]
        %v2233 = vld [vmem:[%s350 + $0x640] sm:$0xff]
        %v2234 = vld [vmem:[%s350 + $0x648] sm:$0xff]
        %v2235 = vld [vmem:[%s350 + $0x650] sm:$0xff]
        %v2236 = vld [vmem:[%s350 + $0x658] sm:$0xff]
        %v2237 = vld [vmem:[%s350 + $0x660] sm:$0xff]
        %v2238 = vld [vmem:[%s350 + $0x668] sm:$0xff]
        %v2239 = vld [vmem:[%s350 + $0x670] sm:$0xff]
        %v2240 = vld [vmem:[%s350 + $0x678] sm:$0xff]
        %v2241 = vld [vmem:[%s350 + $0x680] sm:$0xff]
        %v2242 = vld [vmem:[%s350 + $0x688] sm:$0xff]
        %v2243 = vld [vmem:[%s350 + $0x690] sm:$0xff]
        %v2244 = vld [vmem:[%s350 + $0x698] sm:$0xff]
        %v2245 = vld [vmem:[%s350 + $0x6a0] sm:$0xff]
        %v2246 = vld [vmem:[%s350 + $0x6a8] sm:$0xff]
        %v2247 = vld [vmem:[%s350 + $0x6b0] sm:$0xff]
        %v2248 = vld [vmem:[%s350 + $0x6b8] sm:$0xff]
        %v2249 = vld [vmem:[%s350 + $0x6c0] sm:$0xff]
        %v2250 = vld [vmem:[%s350 + $0x6c8] sm:$0xff]
        %v2251 = vld [vmem:[%s350 + $0x6d0] sm:$0xff]
        %v2252 = vld [vmem:[%s350 + $0x6d8] sm:$0xff]
        %v2253 = vld [vmem:[%s350 + $0x6e0] sm:$0xff]
        %v2254 = vld [vmem:[%s350 + $0x6e8] sm:$0xff]
        %v2255 = vld [vmem:[%s350 + $0x6f0] sm:$0xff]
        %v2256 = vld [vmem:[%s350 + $0x6f8] sm:$0xff]
        %v2257 = vld [vmem:[%s350 + $0x700] sm:$0xff]
        %v2258 = vld [vmem:[%s350 + $0x708] sm:$0xff]
        %v2259 = vld [vmem:[%s350 + $0x710] sm:$0xff]
        %v2260 = vld [vmem:[%s350 + $0x718] sm:$0xff]
        %v2261 = vld [vmem:[%s350 + $0x720] sm:$0xff]
        %v2262 = vld [vmem:[%s350 + $0x728] sm:$0xff]
        %v2263 = vld [vmem:[%s350 + $0x730] sm:$0xff]
        %v2264 = vld [vmem:[%s350 + $0x738] sm:$0xff]
        %v2265 = vld [vmem:[%s350 + $0x740] sm:$0xff]
        %v2266 = vld [vmem:[%s350 + $0x748] sm:$0xff]
        %v2267 = vld [vmem:[%s350 + $0x750] sm:$0xff]
        %v2268 = vld [vmem:[%s350 + $0x758] sm:$0xff]
        %v2269 = vld [vmem:[%s350 + $0x760] sm:$0xff]
        %v2270 = vld [vmem:[%s350 + $0x768] sm:$0xff]
        %v2271 = vld [vmem:[%s350 + $0x770] sm:$0xff]
        %v2272 = vld [vmem:[%s350 + $0x778] sm:$0xff]
        %v2273 = vld [vmem:[%s350 + $0x780] sm:$0xff]
        %v2274 = vld [vmem:[%s350 + $0x788] sm:$0xff]
        %v2275 = vld [vmem:[%s350 + $0x790] sm:$0xff]
        %v2276 = vld [vmem:[%s350 + $0x798] sm:$0xff]
        %v2277 = vld [vmem:[%s350 + $0x7a0] sm:$0xff]
        %v2278 = vld [vmem:[%s350 + $0x7a8] sm:$0xff]
        %v2279 = vld [vmem:[%s350 + $0x7b0] sm:$0xff]
        %v2280 = vld [vmem:[%s350 + $0x7b8] sm:$0xff]
        %v2281 = vld [vmem:[%s350 + $0x7c0] sm:$0xff]
        %v2282 = vld [vmem:[%s350 + $0x7c8] sm:$0xff]
        %v2283 = vld [vmem:[%s350 + $0x7d0] sm:$0xff]
        %v2284 = vld [vmem:[%s350 + $0x7d8] sm:$0xff]
        %v2285 = vld [vmem:[%s350 + $0x7e0] sm:$0xff]
        %v2286 = vld [vmem:[%s350 + $0x7e8] sm:$0xff]
        %v2287 = vld [vmem:[%s350 + $0x7f0] sm:$0xff]
        %v2288 = vld [vmem:[%s350 + $0x7f8] sm:$0xff]
        %v2289 = vrot.slane %v734, 3
        %v2290 = vrot.slane %v735, 2
        %v2291 = vsel %vm737, %v2290, %v2289
        %v2292 = vpack.c.b16 %v2291, %v2291
        %v2358 = vunpack.c.l.b16 %v2225
        %v2359 = vunpack.c.h.b16 %v2225
        %v2360 = vunpack.c.l.b16 %v2226
        %v2361 = vunpack.c.h.b16 %v2226
        %v2362 = vunpack.c.l.b16 %v2227
        %v2363 = vunpack.c.h.b16 %v2227
        %v2364 = vunpack.c.l.b16 %v2228
        %v2365 = vunpack.c.h.b16 %v2228
        %v2366 = vunpack.c.l.b16 %v2229
        %v2367 = vunpack.c.h.b16 %v2229
        %v2368 = vunpack.c.l.b16 %v2230
        %v2369 = vunpack.c.h.b16 %v2230
        %v2370 = vunpack.c.l.b16 %v2231
        %v2371 = vunpack.c.h.b16 %v2231
        %v2372 = vunpack.c.l.b16 %v2232
        %v2373 = vunpack.c.h.b16 %v2232
        %v2374 = vunpack.c.l.b16 %v2233
        %v2375 = vunpack.c.h.b16 %v2233
        %v2376 = vunpack.c.l.b16 %v2234
        %v2377 = vunpack.c.h.b16 %v2234
        %v2378 = vunpack.c.l.b16 %v2235
        %v2379 = vunpack.c.h.b16 %v2235
        %v2380 = vunpack.c.l.b16 %v2236
        %v2381 = vunpack.c.h.b16 %v2236
        %v2382 = vunpack.c.l.b16 %v2237
        %v2383 = vunpack.c.h.b16 %v2237
        %v2384 = vunpack.c.l.b16 %v2238
        %v2385 = vunpack.c.h.b16 %v2238
        %v2386 = vunpack.c.l.b16 %v2239
        %v2387 = vunpack.c.h.b16 %v2239
        %v2388 = vunpack.c.l.b16 %v2240
        %v2389 = vunpack.c.h.b16 %v2240
        %v2390 = vunpack.c.l.b16 %v2241
        %v2391 = vunpack.c.h.b16 %v2241
        %v2392 = vunpack.c.l.b16 %v2242
        %v2393 = vunpack.c.h.b16 %v2242
        %v2394 = vunpack.c.l.b16 %v2243
        %v2395 = vunpack.c.h.b16 %v2243
        %v2396 = vunpack.c.l.b16 %v2244
        %v2397 = vunpack.c.h.b16 %v2244
        %v2398 = vunpack.c.l.b16 %v2245
        %v2399 = vunpack.c.h.b16 %v2245
        %v2400 = vunpack.c.l.b16 %v2246
        %v2401 = vunpack.c.h.b16 %v2246
        %v2402 = vunpack.c.l.b16 %v2247
        %v2403 = vunpack.c.h.b16 %v2247
        %v2404 = vunpack.c.l.b16 %v2248
        %v2405 = vunpack.c.h.b16 %v2248
        %v2406 = vunpack.c.l.b16 %v2249
        %v2407 = vunpack.c.h.b16 %v2249
        %v2408 = vunpack.c.l.b16 %v2250
        %v2409 = vunpack.c.h.b16 %v2250
        %v2410 = vunpack.c.l.b16 %v2251
        %v2411 = vunpack.c.h.b16 %v2251
        %v2412 = vunpack.c.l.b16 %v2252
        %v2413 = vunpack.c.h.b16 %v2252
        %v2414 = vunpack.c.l.b16 %v2253
        %v2415 = vunpack.c.h.b16 %v2253
        %v2416 = vunpack.c.l.b16 %v2254
        %v2417 = vunpack.c.h.b16 %v2254
        %v2418 = vunpack.c.l.b16 %v2255
        %v2419 = vunpack.c.h.b16 %v2255
        %v2420 = vunpack.c.l.b16 %v2256
        %v2421 = vunpack.c.h.b16 %v2256
        %v2422 = vunpack.c.l.b16 %v2257
        %v2423 = vunpack.c.h.b16 %v2257
        %v2424 = vunpack.c.l.b16 %v2258
        %v2425 = vunpack.c.h.b16 %v2258
        %v2426 = vunpack.c.l.b16 %v2259
        %v2427 = vunpack.c.h.b16 %v2259
        %v2428 = vunpack.c.l.b16 %v2260
        %v2429 = vunpack.c.h.b16 %v2260
        %v2430 = vunpack.c.l.b16 %v2261
        %v2431 = vunpack.c.h.b16 %v2261
        %v2432 = vunpack.c.l.b16 %v2262
        %v2433 = vunpack.c.h.b16 %v2262
        %v2434 = vunpack.c.l.b16 %v2263
        %v2435 = vunpack.c.h.b16 %v2263
        %v2436 = vunpack.c.l.b16 %v2264
        %v2437 = vunpack.c.h.b16 %v2264
        %v2438 = vunpack.c.l.b16 %v2265
        %v2439 = vunpack.c.h.b16 %v2265
        %v2440 = vunpack.c.l.b16 %v2266
        %v2441 = vunpack.c.h.b16 %v2266
        %v2442 = vunpack.c.l.b16 %v2267
        %v2443 = vunpack.c.h.b16 %v2267
        %v2444 = vunpack.c.l.b16 %v2268
        %v2445 = vunpack.c.h.b16 %v2268
        %v2446 = vunpack.c.l.b16 %v2269
        %v2447 = vunpack.c.h.b16 %v2269
        %v2448 = vunpack.c.l.b16 %v2270
        %v2449 = vunpack.c.h.b16 %v2270
        %v2450 = vunpack.c.l.b16 %v2271
        %v2451 = vunpack.c.h.b16 %v2271
        %v2452 = vunpack.c.l.b16 %v2272
        %v2453 = vunpack.c.h.b16 %v2272
        %v2454 = vunpack.c.l.b16 %v2273
        %v2455 = vunpack.c.h.b16 %v2273
        %v2456 = vunpack.c.l.b16 %v2274
        %v2457 = vunpack.c.h.b16 %v2274
        %v2458 = vunpack.c.l.b16 %v2275
        %v2459 = vunpack.c.h.b16 %v2275
        %v2460 = vunpack.c.l.b16 %v2276
        %v2461 = vunpack.c.h.b16 %v2276
        %v2462 = vunpack.c.l.b16 %v2277
        %v2463 = vunpack.c.h.b16 %v2277
        %v2464 = vunpack.c.l.b16 %v2278
        %v2465 = vunpack.c.h.b16 %v2278
        %v2466 = vunpack.c.l.b16 %v2279
        %v2467 = vunpack.c.h.b16 %v2279
        %v2468 = vunpack.c.l.b16 %v2280
        %v2469 = vunpack.c.h.b16 %v2280
        %v2470 = vunpack.c.l.b16 %v2281
        %v2471 = vunpack.c.h.b16 %v2281
        %v2472 = vunpack.c.l.b16 %v2282
        %v2473 = vunpack.c.h.b16 %v2282
        %v2474 = vunpack.c.l.b16 %v2283
        %v2475 = vunpack.c.h.b16 %v2283
        %v2476 = vunpack.c.l.b16 %v2284
        %v2477 = vunpack.c.h.b16 %v2284
        %v2478 = vunpack.c.l.b16 %v2285
        %v2479 = vunpack.c.h.b16 %v2285
        %v2480 = vunpack.c.l.b16 %v2286
        %v2481 = vunpack.c.h.b16 %v2286
        %v2482 = vunpack.c.l.b16 %v2287
        %v2483 = vunpack.c.h.b16 %v2287
        %v2484 = vunpack.c.l.b16 %v2288
        %v2485 = vunpack.c.h.b16 %v2288
        %v2486 = vpack.c.b16 %v2366, %v2358
        %v2487 = vpack.c.b16 %v2367, %v2359
        %v2488 = vpack.c.b16 %v2368, %v2360
        %v2489 = vpack.c.b16 %v2369, %v2361
        %v2490 = vpack.c.b16 %v2370, %v2362
        %v2491 = vpack.c.b16 %v2371, %v2363
        %v2492 = vpack.c.b16 %v2372, %v2364
        %v2493 = vpack.c.b16 %v2373, %v2365
        %v2494 = vpack.c.b16 %v2382, %v2374
        %v2495 = vpack.c.b16 %v2383, %v2375
        %v2496 = vpack.c.b16 %v2384, %v2376
        %v2497 = vpack.c.b16 %v2385, %v2377
        %v2498 = vpack.c.b16 %v2386, %v2378
        %v2499 = vpack.c.b16 %v2387, %v2379
        %v2500 = vpack.c.b16 %v2388, %v2380
        %v2501 = vpack.c.b16 %v2389, %v2381
        %v2502 = vpack.c.b16 %v2398, %v2390
        %v2503 = vpack.c.b16 %v2399, %v2391
        %v2504 = vpack.c.b16 %v2400, %v2392
        %v2505 = vpack.c.b16 %v2401, %v2393
        %v2506 = vpack.c.b16 %v2402, %v2394
        %v2507 = vpack.c.b16 %v2403, %v2395
        %v2508 = vpack.c.b16 %v2404, %v2396
        %v2509 = vpack.c.b16 %v2405, %v2397
        %v2510 = vpack.c.b16 %v2414, %v2406
        %v2511 = vpack.c.b16 %v2415, %v2407
        %v2512 = vpack.c.b16 %v2416, %v2408
        %v2513 = vpack.c.b16 %v2417, %v2409
        %v2514 = vpack.c.b16 %v2418, %v2410
        %v2515 = vpack.c.b16 %v2419, %v2411
        %v2516 = vpack.c.b16 %v2420, %v2412
        %v2517 = vpack.c.b16 %v2421, %v2413
        %v2518 = vpack.c.b16 %v2430, %v2422
        %v2519 = vpack.c.b16 %v2431, %v2423
        %v2520 = vpack.c.b16 %v2432, %v2424
        %v2521 = vpack.c.b16 %v2433, %v2425
        %v2522 = vpack.c.b16 %v2434, %v2426
        %v2523 = vpack.c.b16 %v2435, %v2427
        %v2524 = vpack.c.b16 %v2436, %v2428
        %v2525 = vpack.c.b16 %v2437, %v2429
        %v2526 = vpack.c.b16 %v2446, %v2438
        %v2527 = vpack.c.b16 %v2447, %v2439
        %v2528 = vpack.c.b16 %v2448, %v2440
        %v2529 = vpack.c.b16 %v2449, %v2441
        %v2530 = vpack.c.b16 %v2450, %v2442
        %v2531 = vpack.c.b16 %v2451, %v2443
        %v2532 = vpack.c.b16 %v2452, %v2444
        %v2533 = vpack.c.b16 %v2453, %v2445
        %v2534 = vpack.c.b16 %v2462, %v2454
        %v2535 = vpack.c.b16 %v2463, %v2455
        %v2536 = vpack.c.b16 %v2464, %v2456
        %v2537 = vpack.c.b16 %v2465, %v2457
        %v2538 = vpack.c.b16 %v2466, %v2458
        %v2539 = vpack.c.b16 %v2467, %v2459
        %v2540 = vpack.c.b16 %v2468, %v2460
        %v2541 = vpack.c.b16 %v2469, %v2461
        %v2542 = vpack.c.b16 %v2478, %v2470
        %v2543 = vpack.c.b16 %v2479, %v2471
        %v2544 = vpack.c.b16 %v2480, %v2472
        %v2545 = vpack.c.b16 %v2481, %v2473
        %v2546 = vpack.c.b16 %v2482, %v2474
        %v2547 = vpack.c.b16 %v2483, %v2475
        %v2548 = vpack.c.b16 %v2484, %v2476
        %v2549 = vpack.c.b16 %v2485, %v2477
        %2614 = vmatpush.bf16.msra.mxu0 %v2542
        %2615 = vmatpush.bf16.msra.mxu0 %v2534
        %2616 = vmatpush.bf16.msra.mxu0 %v2526
        %2617 = vmatpush.bf16.msra.mxu0 %v2518
        %2618 = vmatpush.bf16.msra.mxu0 %v2510
        %2619 = vmatpush.bf16.msra.mxu0 %v2502
        %2620 = vmatpush.bf16.msra.mxu0 %v2494
        %2621 = vmatpush.bf16.msra.mxu0 %v2486
        %2622 = vmatmul.bf16.gmra.mxu0 %v2292
        %v2623 = vpop.f32.mrf.mxu0
        %v2624 = vadd.f32 0.0, %v2623
        %v2625 = vpop.f32.mrf.mxu0
        %2626 = vdwg.mxu0
        %2627 = vmatpush.bf16.msra.mxu0 %v2543
        %2628 = vmatpush.bf16.msra.mxu0 %v2535
        %2629 = vmatpush.bf16.msra.mxu0 %v2527
        %2630 = vmatpush.bf16.msra.mxu0 %v2519
        %2631 = vmatpush.bf16.msra.mxu0 %v2511
        %2632 = vmatpush.bf16.msra.mxu0 %v2503
        %2633 = vmatpush.bf16.msra.mxu0 %v2495
        %2634 = vmatpush.bf16.msra.mxu0 %v2487
        %2635 = vmatmul.bf16.gmra.mxu0 %v2292
        %v2636 = vpop.f32.mrf.mxu0
        %v2637 = vadd.f32 0.0, %v2636
        %v2638 = vpop.f32.mrf.mxu0
        %2639 = vdwg.mxu0
        %2640 = vmatpush.bf16.msra.mxu0 %v2544
        %2641 = vmatpush.bf16.msra.mxu0 %v2536
        %2642 = vmatpush.bf16.msra.mxu0 %v2528
        %2643 = vmatpush.bf16.msra.mxu0 %v2520
        %2644 = vmatpush.bf16.msra.mxu0 %v2512
        %2645 = vmatpush.bf16.msra.mxu0 %v2504
        %2646 = vmatpush.bf16.msra.mxu0 %v2496
        %2647 = vmatpush.bf16.msra.mxu0 %v2488
        %2648 = vmatmul.bf16.gmra.mxu0 %v2292
        %v2649 = vpop.f32.mrf.mxu0
        %v2650 = vadd.f32 0.0, %v2649
        %v2651 = vpop.f32.mrf.mxu0
        %2652 = vdwg.mxu0
        %2653 = vmatpush.bf16.msra.mxu0 %v2545
        %2654 = vmatpush.bf16.msra.mxu0 %v2537
        %2655 = vmatpush.bf16.msra.mxu0 %v2529
        %2656 = vmatpush.bf16.msra.mxu0 %v2521
        %2657 = vmatpush.bf16.msra.mxu0 %v2513
        %2658 = vmatpush.bf16.msra.mxu0 %v2505
        %2659 = vmatpush.bf16.msra.mxu0 %v2497
        %2660 = vmatpush.bf16.msra.mxu0 %v2489
        %2661 = vmatmul.bf16.gmra.mxu0 %v2292
        %v2662 = vpop.f32.mrf.mxu0
        %v2663 = vadd.f32 0.0, %v2662
        %v2664 = vpop.f32.mrf.mxu0
        %2665 = vdwg.mxu0
        %2666 = vmatpush.bf16.msra.mxu0 %v2546
        %2667 = vmatpush.bf16.msra.mxu0 %v2538
        %2668 = vmatpush.bf16.msra.mxu0 %v2530
        %2669 = vmatpush.bf16.msra.mxu0 %v2522
        %2670 = vmatpush.bf16.msra.mxu0 %v2514
        %2671 = vmatpush.bf16.msra.mxu0 %v2506
        %2672 = vmatpush.bf16.msra.mxu0 %v2498
        %2673 = vmatpush.bf16.msra.mxu0 %v2490
        %2674 = vmatmul.bf16.gmra.mxu0 %v2292
        %v2675 = vpop.f32.mrf.mxu0
        %v2676 = vadd.f32 0.0, %v2675
        %v2677 = vpop.f32.mrf.mxu0
        %2678 = vdwg.mxu0
        %2679 = vmatpush.bf16.msra.mxu0 %v2547
        %2680 = vmatpush.bf16.msra.mxu0 %v2539
        %2681 = vmatpush.bf16.msra.mxu0 %v2531
        %2682 = vmatpush.bf16.msra.mxu0 %v2523
        %2683 = vmatpush.bf16.msra.mxu0 %v2515
        %2684 = vmatpush.bf16.msra.mxu0 %v2507
        %2685 = vmatpush.bf16.msra.mxu0 %v2499
        %2686 = vmatpush.bf16.msra.mxu0 %v2491
        %2687 = vmatmul.bf16.gmra.mxu0 %v2292
        %v2688 = vpop.f32.mrf.mxu0
        %v2689 = vadd.f32 0.0, %v2688
        %v2690 = vpop.f32.mrf.mxu0
        %2691 = vdwg.mxu0
        %2692 = vmatpush.bf16.msra.mxu0 %v2548
        %2693 = vmatpush.bf16.msra.mxu0 %v2540
        %2694 = vmatpush.bf16.msra.mxu0 %v2532
        %2695 = vmatpush.bf16.msra.mxu0 %v2524
        %2696 = vmatpush.bf16.msra.mxu0 %v2516
        %2697 = vmatpush.bf16.msra.mxu0 %v2508
        %2698 = vmatpush.bf16.msra.mxu0 %v2500
        %2699 = vmatpush.bf16.msra.mxu0 %v2492
        %2700 = vmatmul.bf16.gmra.mxu0 %v2292
        %v2701 = vpop.f32.mrf.mxu0
        %v2702 = vadd.f32 0.0, %v2701
        %v2703 = vpop.f32.mrf.mxu0
        %2704 = vdwg.mxu0
        %2705 = vmatpush.bf16.msra.mxu0 %v2549
        %2706 = vmatpush.bf16.msra.mxu0 %v2541
        %2707 = vmatpush.bf16.msra.mxu0 %v2533
        %2708 = vmatpush.bf16.msra.mxu0 %v2525
        %2709 = vmatpush.bf16.msra.mxu0 %v2517
        %2710 = vmatpush.bf16.msra.mxu0 %v2509
        %2711 = vmatpush.bf16.msra.mxu0 %v2501
        %2712 = vmatpush.bf16.msra.mxu0 %v2493
        %2713 = vmatmul.bf16.gmra.mxu0 %v2292
        %v2714 = vpop.f32.mrf.mxu0
        %v2715 = vadd.f32 0.0, %v2714
        %v2716 = vpop.f32.mrf.mxu0
        %2717 = vdwg.mxu0
        %v2726 = vrot.slane %v2637, 6
        %v2727 = vrot.slane %v2650, 4
        %v2728 = vrot.slane %v2663, 2
        %v2729 = vrot.slane %v2689, 6
        %v2730 = vrot.slane %v2702, 4
        %v2731 = vrot.slane %v2715, 2
        %v2732 = vsel %vm1179, %v2624, %v2726
        %v2733 = vsel %vm1181, %v2727, %v2728
        %v2734 = vsel %vm1183, %v2732, %v2733
        %v2735 = vsel %vm1179, %v2676, %v2729
        %v2736 = vsel %vm1181, %v2730, %v2731
        %v2737 = vsel %vm1183, %v2735, %v2736
        %v2740 = vadd.f32 %v2223, %v2734
        %v2741 = vadd.f32 %v2224, %v2737
        %v2742 = vld [vmem:[%s350 + $0x800] sm:$0xff]
        %v2743 = vld [vmem:[%s350 + $0x808] sm:$0xff]
        %v2744 = vld [vmem:[%s350 + $0x810] sm:$0xff]
        %v2745 = vld [vmem:[%s350 + $0x818] sm:$0xff]
        %v2746 = vld [vmem:[%s350 + $0x820] sm:$0xff]
        %v2747 = vld [vmem:[%s350 + $0x828] sm:$0xff]
        %v2748 = vld [vmem:[%s350 + $0x830] sm:$0xff]
        %v2749 = vld [vmem:[%s350 + $0x838] sm:$0xff]
        %v2750 = vld [vmem:[%s350 + $0x840] sm:$0xff]
        %v2751 = vld [vmem:[%s350 + $0x848] sm:$0xff]
        %v2752 = vld [vmem:[%s350 + $0x850] sm:$0xff]
        %v2753 = vld [vmem:[%s350 + $0x858] sm:$0xff]
        %v2754 = vld [vmem:[%s350 + $0x860] sm:$0xff]
        %v2755 = vld [vmem:[%s350 + $0x868] sm:$0xff]
        %v2756 = vld [vmem:[%s350 + $0x870] sm:$0xff]
        %v2757 = vld [vmem:[%s350 + $0x878] sm:$0xff]
        %v2758 = vld [vmem:[%s350 + $0x880] sm:$0xff]
        %v2759 = vld [vmem:[%s350 + $0x888] sm:$0xff]
        %v2760 = vld [vmem:[%s350 + $0x890] sm:$0xff]
        %v2761 = vld [vmem:[%s350 + $0x898] sm:$0xff]
        %v2762 = vld [vmem:[%s350 + $0x8a0] sm:$0xff]
        %v2763 = vld [vmem:[%s350 + $0x8a8] sm:$0xff]
        %v2764 = vld [vmem:[%s350 + $0x8b0] sm:$0xff]
        %v2765 = vld [vmem:[%s350 + $0x8b8] sm:$0xff]
        %v2766 = vld [vmem:[%s350 + $0x8c0] sm:$0xff]
        %v2767 = vld [vmem:[%s350 + $0x8c8] sm:$0xff]
        %v2768 = vld [vmem:[%s350 + $0x8d0] sm:$0xff]
        %v2769 = vld [vmem:[%s350 + $0x8d8] sm:$0xff]
        %v2770 = vld [vmem:[%s350 + $0x8e0] sm:$0xff]
        %v2771 = vld [vmem:[%s350 + $0x8e8] sm:$0xff]
        %v2772 = vld [vmem:[%s350 + $0x8f0] sm:$0xff]
        %v2773 = vld [vmem:[%s350 + $0x8f8] sm:$0xff]
        %v2774 = vld [vmem:[%s350 + $0x900] sm:$0xff]
        %v2775 = vld [vmem:[%s350 + $0x908] sm:$0xff]
        %v2776 = vld [vmem:[%s350 + $0x910] sm:$0xff]
        %v2777 = vld [vmem:[%s350 + $0x918] sm:$0xff]
        %v2778 = vld [vmem:[%s350 + $0x920] sm:$0xff]
        %v2779 = vld [vmem:[%s350 + $0x928] sm:$0xff]
        %v2780 = vld [vmem:[%s350 + $0x930] sm:$0xff]
        %v2781 = vld [vmem:[%s350 + $0x938] sm:$0xff]
        %v2782 = vld [vmem:[%s350 + $0x940] sm:$0xff]
        %v2783 = vld [vmem:[%s350 + $0x948] sm:$0xff]
        %v2784 = vld [vmem:[%s350 + $0x950] sm:$0xff]
        %v2785 = vld [vmem:[%s350 + $0x958] sm:$0xff]
        %v2786 = vld [vmem:[%s350 + $0x960] sm:$0xff]
        %v2787 = vld [vmem:[%s350 + $0x968] sm:$0xff]
        %v2788 = vld [vmem:[%s350 + $0x970] sm:$0xff]
        %v2789 = vld [vmem:[%s350 + $0x978] sm:$0xff]
        %v2790 = vld [vmem:[%s350 + $0x980] sm:$0xff]
        %v2791 = vld [vmem:[%s350 + $0x988] sm:$0xff]
        %v2792 = vld [vmem:[%s350 + $0x990] sm:$0xff]
        %v2793 = vld [vmem:[%s350 + $0x998] sm:$0xff]
        %v2794 = vld [vmem:[%s350 + $0x9a0] sm:$0xff]
        %v2795 = vld [vmem:[%s350 + $0x9a8] sm:$0xff]
        %v2796 = vld [vmem:[%s350 + $0x9b0] sm:$0xff]
        %v2797 = vld [vmem:[%s350 + $0x9b8] sm:$0xff]
        %v2798 = vld [vmem:[%s350 + $0x9c0] sm:$0xff]
        %v2799 = vld [vmem:[%s350 + $0x9c8] sm:$0xff]
        %v2800 = vld [vmem:[%s350 + $0x9d0] sm:$0xff]
        %v2801 = vld [vmem:[%s350 + $0x9d8] sm:$0xff]
        %v2802 = vld [vmem:[%s350 + $0x9e0] sm:$0xff]
        %v2803 = vld [vmem:[%s350 + $0x9e8] sm:$0xff]
        %v2804 = vld [vmem:[%s350 + $0x9f0] sm:$0xff]
        %v2805 = vld [vmem:[%s350 + $0x9f8] sm:$0xff]
        %v2806 = vrot.slane %v734, 4
        %v2807 = vrot.slane %v735, 3
        %v2808 = vsel %vm737, %v2807, %v2806
        %v2809 = vpack.c.b16 %v2808, %v2808
        %v2875 = vunpack.c.l.b16 %v2742
        %v2876 = vunpack.c.h.b16 %v2742
        %v2877 = vunpack.c.l.b16 %v2743
        %v2878 = vunpack.c.h.b16 %v2743
        %v2879 = vunpack.c.l.b16 %v2744
        %v2880 = vunpack.c.h.b16 %v2744
        %v2881 = vunpack.c.l.b16 %v2745
        %v2882 = vunpack.c.h.b16 %v2745
        %v2883 = vunpack.c.l.b16 %v2746
        %v2884 = vunpack.c.h.b16 %v2746
        %v2885 = vunpack.c.l.b16 %v2747
        %v2886 = vunpack.c.h.b16 %v2747
        %v2887 = vunpack.c.l.b16 %v2748
        %v2888 = vunpack.c.h.b16 %v2748
        %v2889 = vunpack.c.l.b16 %v2749
        %v2890 = vunpack.c.h.b16 %v2749
        %v2891 = vunpack.c.l.b16 %v2750
        %v2892 = vunpack.c.h.b16 %v2750
        %v2893 = vunpack.c.l.b16 %v2751
        %v2894 = vunpack.c.h.b16 %v2751
        %v2895 = vunpack.c.l.b16 %v2752
        %v2896 = vunpack.c.h.b16 %v2752
        %v2897 = vunpack.c.l.b16 %v2753
        %v2898 = vunpack.c.h.b16 %v2753
        %v2899 = vunpack.c.l.b16 %v2754
        %v2900 = vunpack.c.h.b16 %v2754
        %v2901 = vunpack.c.l.b16 %v2755
        %v2902 = vunpack.c.h.b16 %v2755
        %v2903 = vunpack.c.l.b16 %v2756
        %v2904 = vunpack.c.h.b16 %v2756
        %v2905 = vunpack.c.l.b16 %v2757
        %v2906 = vunpack.c.h.b16 %v2757
        %v2907 = vunpack.c.l.b16 %v2758
        %v2908 = vunpack.c.h.b16 %v2758
        %v2909 = vunpack.c.l.b16 %v2759
        %v2910 = vunpack.c.h.b16 %v2759
        %v2911 = vunpack.c.l.b16 %v2760
        %v2912 = vunpack.c.h.b16 %v2760
        %v2913 = vunpack.c.l.b16 %v2761
        %v2914 = vunpack.c.h.b16 %v2761
        %v2915 = vunpack.c.l.b16 %v2762
        %v2916 = vunpack.c.h.b16 %v2762
        %v2917 = vunpack.c.l.b16 %v2763
        %v2918 = vunpack.c.h.b16 %v2763
        %v2919 = vunpack.c.l.b16 %v2764
        %v2920 = vunpack.c.h.b16 %v2764
        %v2921 = vunpack.c.l.b16 %v2765
        %v2922 = vunpack.c.h.b16 %v2765
        %v2923 = vunpack.c.l.b16 %v2766
        %v2924 = vunpack.c.h.b16 %v2766
        %v2925 = vunpack.c.l.b16 %v2767
        %v2926 = vunpack.c.h.b16 %v2767
        %v2927 = vunpack.c.l.b16 %v2768
        %v2928 = vunpack.c.h.b16 %v2768
        %v2929 = vunpack.c.l.b16 %v2769
        %v2930 = vunpack.c.h.b16 %v2769
        %v2931 = vunpack.c.l.b16 %v2770
        %v2932 = vunpack.c.h.b16 %v2770
        %v2933 = vunpack.c.l.b16 %v2771
        %v2934 = vunpack.c.h.b16 %v2771
        %v2935 = vunpack.c.l.b16 %v2772
        %v2936 = vunpack.c.h.b16 %v2772
        %v2937 = vunpack.c.l.b16 %v2773
        %v2938 = vunpack.c.h.b16 %v2773
        %v2939 = vunpack.c.l.b16 %v2774
        %v2940 = vunpack.c.h.b16 %v2774
        %v2941 = vunpack.c.l.b16 %v2775
        %v2942 = vunpack.c.h.b16 %v2775
        %v2943 = vunpack.c.l.b16 %v2776
        %v2944 = vunpack.c.h.b16 %v2776
        %v2945 = vunpack.c.l.b16 %v2777
        %v2946 = vunpack.c.h.b16 %v2777
        %v2947 = vunpack.c.l.b16 %v2778
        %v2948 = vunpack.c.h.b16 %v2778
        %v2949 = vunpack.c.l.b16 %v2779
        %v2950 = vunpack.c.h.b16 %v2779
        %v2951 = vunpack.c.l.b16 %v2780
        %v2952 = vunpack.c.h.b16 %v2780
        %v2953 = vunpack.c.l.b16 %v2781
        %v2954 = vunpack.c.h.b16 %v2781
        %v2955 = vunpack.c.l.b16 %v2782
        %v2956 = vunpack.c.h.b16 %v2782
        %v2957 = vunpack.c.l.b16 %v2783
        %v2958 = vunpack.c.h.b16 %v2783
        %v2959 = vunpack.c.l.b16 %v2784
        %v2960 = vunpack.c.h.b16 %v2784
        %v2961 = vunpack.c.l.b16 %v2785
        %v2962 = vunpack.c.h.b16 %v2785
        %v2963 = vunpack.c.l.b16 %v2786
        %v2964 = vunpack.c.h.b16 %v2786
        %v2965 = vunpack.c.l.b16 %v2787
        %v2966 = vunpack.c.h.b16 %v2787
        %v2967 = vunpack.c.l.b16 %v2788
        %v2968 = vunpack.c.h.b16 %v2788
        %v2969 = vunpack.c.l.b16 %v2789
        %v2970 = vunpack.c.h.b16 %v2789
        %v2971 = vunpack.c.l.b16 %v2790
        %v2972 = vunpack.c.h.b16 %v2790
        %v2973 = vunpack.c.l.b16 %v2791
        %v2974 = vunpack.c.h.b16 %v2791
        %v2975 = vunpack.c.l.b16 %v2792
        %v2976 = vunpack.c.h.b16 %v2792
        %v2977 = vunpack.c.l.b16 %v2793
        %v2978 = vunpack.c.h.b16 %v2793
        %v2979 = vunpack.c.l.b16 %v2794
        %v2980 = vunpack.c.h.b16 %v2794
        %v2981 = vunpack.c.l.b16 %v2795
        %v2982 = vunpack.c.h.b16 %v2795
        %v2983 = vunpack.c.l.b16 %v2796
        %v2984 = vunpack.c.h.b16 %v2796
        %v2985 = vunpack.c.l.b16 %v2797
        %v2986 = vunpack.c.h.b16 %v2797
        %v2987 = vunpack.c.l.b16 %v2798
        %v2988 = vunpack.c.h.b16 %v2798
        %v2989 = vunpack.c.l.b16 %v2799
        %v2990 = vunpack.c.h.b16 %v2799
        %v2991 = vunpack.c.l.b16 %v2800
        %v2992 = vunpack.c.h.b16 %v2800
        %v2993 = vunpack.c.l.b16 %v2801
        %v2994 = vunpack.c.h.b16 %v2801
        %v2995 = vunpack.c.l.b16 %v2802
        %v2996 = vunpack.c.h.b16 %v2802
        %v2997 = vunpack.c.l.b16 %v2803
        %v2998 = vunpack.c.h.b16 %v2803
        %v2999 = vunpack.c.l.b16 %v2804
        %v3000 = vunpack.c.h.b16 %v2804
        %v3001 = vunpack.c.l.b16 %v2805
        %v3002 = vunpack.c.h.b16 %v2805
        %v3003 = vpack.c.b16 %v2883, %v2875
        %v3004 = vpack.c.b16 %v2884, %v2876
        %v3005 = vpack.c.b16 %v2885, %v2877
        %v3006 = vpack.c.b16 %v2886, %v2878
        %v3007 = vpack.c.b16 %v2887, %v2879
        %v3008 = vpack.c.b16 %v2888, %v2880
        %v3009 = vpack.c.b16 %v2889, %v2881
        %v3010 = vpack.c.b16 %v2890, %v2882
        %v3011 = vpack.c.b16 %v2899, %v2891
        %v3012 = vpack.c.b16 %v2900, %v2892
        %v3013 = vpack.c.b16 %v2901, %v2893
        %v3014 = vpack.c.b16 %v2902, %v2894
        %v3015 = vpack.c.b16 %v2903, %v2895
        %v3016 = vpack.c.b16 %v2904, %v2896
        %v3017 = vpack.c.b16 %v2905, %v2897
        %v3018 = vpack.c.b16 %v2906, %v2898
        %v3019 = vpack.c.b16 %v2915, %v2907
        %v3020 = vpack.c.b16 %v2916, %v2908
        %v3021 = vpack.c.b16 %v2917, %v2909
        %v3022 = vpack.c.b16 %v2918, %v2910
        %v3023 = vpack.c.b16 %v2919, %v2911
        %v3024 = vpack.c.b16 %v2920, %v2912
        %v3025 = vpack.c.b16 %v2921, %v2913
        %v3026 = vpack.c.b16 %v2922, %v2914
        %v3027 = vpack.c.b16 %v2931, %v2923
        %v3028 = vpack.c.b16 %v2932, %v2924
        %v3029 = vpack.c.b16 %v2933, %v2925
        %v3030 = vpack.c.b16 %v2934, %v2926
        %v3031 = vpack.c.b16 %v2935, %v2927
        %v3032 = vpack.c.b16 %v2936, %v2928
        %v3033 = vpack.c.b16 %v2937, %v2929
        %v3034 = vpack.c.b16 %v2938, %v2930
        %v3035 = vpack.c.b16 %v2947, %v2939
        %v3036 = vpack.c.b16 %v2948, %v2940
        %v3037 = vpack.c.b16 %v2949, %v2941
        %v3038 = vpack.c.b16 %v2950, %v2942
        %v3039 = vpack.c.b16 %v2951, %v2943
        %v3040 = vpack.c.b16 %v2952, %v2944
        %v3041 = vpack.c.b16 %v2953, %v2945
        %v3042 = vpack.c.b16 %v2954, %v2946
        %v3043 = vpack.c.b16 %v2963, %v2955
        %v3044 = vpack.c.b16 %v2964, %v2956
        %v3045 = vpack.c.b16 %v2965, %v2957
        %v3046 = vpack.c.b16 %v2966, %v2958
        %v3047 = vpack.c.b16 %v2967, %v2959
        %v3048 = vpack.c.b16 %v2968, %v2960
        %v3049 = vpack.c.b16 %v2969, %v2961
        %v3050 = vpack.c.b16 %v2970, %v2962
        %v3051 = vpack.c.b16 %v2979, %v2971
        %v3052 = vpack.c.b16 %v2980, %v2972
        %v3053 = vpack.c.b16 %v2981, %v2973
        %v3054 = vpack.c.b16 %v2982, %v2974
        %v3055 = vpack.c.b16 %v2983, %v2975
        %v3056 = vpack.c.b16 %v2984, %v2976
        %v3057 = vpack.c.b16 %v2985, %v2977
        %v3058 = vpack.c.b16 %v2986, %v2978
        %v3059 = vpack.c.b16 %v2995, %v2987
        %v3060 = vpack.c.b16 %v2996, %v2988
        %v3061 = vpack.c.b16 %v2997, %v2989
        %v3062 = vpack.c.b16 %v2998, %v2990
        %v3063 = vpack.c.b16 %v2999, %v2991
        %v3064 = vpack.c.b16 %v3000, %v2992
        %v3065 = vpack.c.b16 %v3001, %v2993
        %v3066 = vpack.c.b16 %v3002, %v2994
        %3131 = vmatpush.bf16.msra.mxu0 %v3059
        %3132 = vmatpush.bf16.msra.mxu0 %v3051
        %3133 = vmatpush.bf16.msra.mxu0 %v3043
        %3134 = vmatpush.bf16.msra.mxu0 %v3035
        %3135 = vmatpush.bf16.msra.mxu0 %v3027
        %3136 = vmatpush.bf16.msra.mxu0 %v3019
        %3137 = vmatpush.bf16.msra.mxu0 %v3011
        %3138 = vmatpush.bf16.msra.mxu0 %v3003
        %3139 = vmatmul.bf16.gmra.mxu0 %v2809
        %v3140 = vpop.f32.mrf.mxu0
        %v3141 = vadd.f32 0.0, %v3140
        %v3142 = vpop.f32.mrf.mxu0
        %3143 = vdwg.mxu0
        %3144 = vmatpush.bf16.msra.mxu0 %v3060
        %3145 = vmatpush.bf16.msra.mxu0 %v3052
        %3146 = vmatpush.bf16.msra.mxu0 %v3044
        %3147 = vmatpush.bf16.msra.mxu0 %v3036
        %3148 = vmatpush.bf16.msra.mxu0 %v3028
        %3149 = vmatpush.bf16.msra.mxu0 %v3020
        %3150 = vmatpush.bf16.msra.mxu0 %v3012
        %3151 = vmatpush.bf16.msra.mxu0 %v3004
        %3152 = vmatmul.bf16.gmra.mxu0 %v2809
        %v3153 = vpop.f32.mrf.mxu0
        %v3154 = vadd.f32 0.0, %v3153
        %v3155 = vpop.f32.mrf.mxu0
        %3156 = vdwg.mxu0
        %3157 = vmatpush.bf16.msra.mxu0 %v3061
        %3158 = vmatpush.bf16.msra.mxu0 %v3053
        %3159 = vmatpush.bf16.msra.mxu0 %v3045
        %3160 = vmatpush.bf16.msra.mxu0 %v3037
        %3161 = vmatpush.bf16.msra.mxu0 %v3029
        %3162 = vmatpush.bf16.msra.mxu0 %v3021
        %3163 = vmatpush.bf16.msra.mxu0 %v3013
        %3164 = vmatpush.bf16.msra.mxu0 %v3005
        %3165 = vmatmul.bf16.gmra.mxu0 %v2809
        %v3166 = vpop.f32.mrf.mxu0
        %v3167 = vadd.f32 0.0, %v3166
        %v3168 = vpop.f32.mrf.mxu0
        %3169 = vdwg.mxu0
        %3170 = vmatpush.bf16.msra.mxu0 %v3062
        %3171 = vmatpush.bf16.msra.mxu0 %v3054
        %3172 = vmatpush.bf16.msra.mxu0 %v3046
        %3173 = vmatpush.bf16.msra.mxu0 %v3038
        %3174 = vmatpush.bf16.msra.mxu0 %v3030
        %3175 = vmatpush.bf16.msra.mxu0 %v3022
        %3176 = vmatpush.bf16.msra.mxu0 %v3014
        %3177 = vmatpush.bf16.msra.mxu0 %v3006
        %3178 = vmatmul.bf16.gmra.mxu0 %v2809
        %v3179 = vpop.f32.mrf.mxu0
        %v3180 = vadd.f32 0.0, %v3179
        %v3181 = vpop.f32.mrf.mxu0
        %3182 = vdwg.mxu0
        %3183 = vmatpush.bf16.msra.mxu0 %v3063
        %3184 = vmatpush.bf16.msra.mxu0 %v3055
        %3185 = vmatpush.bf16.msra.mxu0 %v3047
        %3186 = vmatpush.bf16.msra.mxu0 %v3039
        %3187 = vmatpush.bf16.msra.mxu0 %v3031
        %3188 = vmatpush.bf16.msra.mxu0 %v3023
        %3189 = vmatpush.bf16.msra.mxu0 %v3015
        %3190 = vmatpush.bf16.msra.mxu0 %v3007
        %3191 = vmatmul.bf16.gmra.mxu0 %v2809
        %v3192 = vpop.f32.mrf.mxu0
        %v3193 = vadd.f32 0.0, %v3192
        %v3194 = vpop.f32.mrf.mxu0
        %3195 = vdwg.mxu0
        %3196 = vmatpush.bf16.msra.mxu0 %v3064
        %3197 = vmatpush.bf16.msra.mxu0 %v3056
        %3198 = vmatpush.bf16.msra.mxu0 %v3048
        %3199 = vmatpush.bf16.msra.mxu0 %v3040
        %3200 = vmatpush.bf16.msra.mxu0 %v3032
        %3201 = vmatpush.bf16.msra.mxu0 %v3024
        %3202 = vmatpush.bf16.msra.mxu0 %v3016
        %3203 = vmatpush.bf16.msra.mxu0 %v3008
        %3204 = vmatmul.bf16.gmra.mxu0 %v2809
        %v3205 = vpop.f32.mrf.mxu0
        %v3206 = vadd.f32 0.0, %v3205
        %v3207 = vpop.f32.mrf.mxu0
        %3208 = vdwg.mxu0
        %3209 = vmatpush.bf16.msra.mxu0 %v3065
        %3210 = vmatpush.bf16.msra.mxu0 %v3057
        %3211 = vmatpush.bf16.msra.mxu0 %v3049
        %3212 = vmatpush.bf16.msra.mxu0 %v3041
        %3213 = vmatpush.bf16.msra.mxu0 %v3033
        %3214 = vmatpush.bf16.msra.mxu0 %v3025
        %3215 = vmatpush.bf16.msra.mxu0 %v3017
        %3216 = vmatpush.bf16.msra.mxu0 %v3009
        %3217 = vmatmul.bf16.gmra.mxu0 %v2809
        %v3218 = vpop.f32.mrf.mxu0
        %v3219 = vadd.f32 0.0, %v3218
        %v3220 = vpop.f32.mrf.mxu0
        %3221 = vdwg.mxu0
        %3222 = vmatpush.bf16.msra.mxu0 %v3066
        %3223 = vmatpush.bf16.msra.mxu0 %v3058
        %3224 = vmatpush.bf16.msra.mxu0 %v3050
        %3225 = vmatpush.bf16.msra.mxu0 %v3042
        %3226 = vmatpush.bf16.msra.mxu0 %v3034
        %3227 = vmatpush.bf16.msra.mxu0 %v3026
        %3228 = vmatpush.bf16.msra.mxu0 %v3018
        %3229 = vmatpush.bf16.msra.mxu0 %v3010
        %3230 = vmatmul.bf16.gmra.mxu0 %v2809
        %v3231 = vpop.f32.mrf.mxu0
        %v3232 = vadd.f32 0.0, %v3231
        %v3233 = vpop.f32.mrf.mxu0
        %3234 = vdwg.mxu0
        %v3243 = vrot.slane %v3154, 6
        %v3244 = vrot.slane %v3167, 4
        %v3245 = vrot.slane %v3180, 2
        %v3246 = vrot.slane %v3206, 6
        %v3247 = vrot.slane %v3219, 4
        %v3248 = vrot.slane %v3232, 2
        %v3249 = vsel %vm1179, %v3141, %v3243
        %v3250 = vsel %vm1181, %v3244, %v3245
        %v3251 = vsel %vm1183, %v3249, %v3250
        %v3252 = vsel %vm1179, %v3193, %v3246
        %v3253 = vsel %vm1181, %v3247, %v3248
        %v3254 = vsel %vm1183, %v3252, %v3253
        %v3257 = vadd.f32 %v2740, %v3251
        %v3258 = vadd.f32 %v2741, %v3254
        %v3259 = vld [vmem:[%s350 + $0xa00] sm:$0xff]
        %v3260 = vld [vmem:[%s350 + $0xa08] sm:$0xff]
        %v3261 = vld [vmem:[%s350 + $0xa10] sm:$0xff]
        %v3262 = vld [vmem:[%s350 + $0xa18] sm:$0xff]
        %v3263 = vld [vmem:[%s350 + $0xa20] sm:$0xff]
        %v3264 = vld [vmem:[%s350 + $0xa28] sm:$0xff]
        %v3265 = vld [vmem:[%s350 + $0xa30] sm:$0xff]
        %v3266 = vld [vmem:[%s350 + $0xa38] sm:$0xff]
        %v3267 = vld [vmem:[%s350 + $0xa40] sm:$0xff]
        %v3268 = vld [vmem:[%s350 + $0xa48] sm:$0xff]
        %v3269 = vld [vmem:[%s350 + $0xa50] sm:$0xff]
        %v3270 = vld [vmem:[%s350 + $0xa58] sm:$0xff]
        %v3271 = vld [vmem:[%s350 + $0xa60] sm:$0xff]
        %v3272 = vld [vmem:[%s350 + $0xa68] sm:$0xff]
        %v3273 = vld [vmem:[%s350 + $0xa70] sm:$0xff]
        %v3274 = vld [vmem:[%s350 + $0xa78] sm:$0xff]
        %v3275 = vld [vmem:[%s350 + $0xa80] sm:$0xff]
        %v3276 = vld [vmem:[%s350 + $0xa88] sm:$0xff]
        %v3277 = vld [vmem:[%s350 + $0xa90] sm:$0xff]
        %v3278 = vld [vmem:[%s350 + $0xa98] sm:$0xff]
        %v3279 = vld [vmem:[%s350 + $0xaa0] sm:$0xff]
        %v3280 = vld [vmem:[%s350 + $0xaa8] sm:$0xff]
        %v3281 = vld [vmem:[%s350 + $0xab0] sm:$0xff]
        %v3282 = vld [vmem:[%s350 + $0xab8] sm:$0xff]
        %v3283 = vld [vmem:[%s350 + $0xac0] sm:$0xff]
        %v3284 = vld [vmem:[%s350 + $0xac8] sm:$0xff]
        %v3285 = vld [vmem:[%s350 + $0xad0] sm:$0xff]
        %v3286 = vld [vmem:[%s350 + $0xad8] sm:$0xff]
        %v3287 = vld [vmem:[%s350 + $0xae0] sm:$0xff]
        %v3288 = vld [vmem:[%s350 + $0xae8] sm:$0xff]
        %v3289 = vld [vmem:[%s350 + $0xaf0] sm:$0xff]
        %v3290 = vld [vmem:[%s350 + $0xaf8] sm:$0xff]
        %v3291 = vld [vmem:[%s350 + $0xb00] sm:$0xff]
        %v3292 = vld [vmem:[%s350 + $0xb08] sm:$0xff]
        %v3293 = vld [vmem:[%s350 + $0xb10] sm:$0xff]
        %v3294 = vld [vmem:[%s350 + $0xb18] sm:$0xff]
        %v3295 = vld [vmem:[%s350 + $0xb20] sm:$0xff]
        %v3296 = vld [vmem:[%s350 + $0xb28] sm:$0xff]
        %v3297 = vld [vmem:[%s350 + $0xb30] sm:$0xff]
        %v3298 = vld [vmem:[%s350 + $0xb38] sm:$0xff]
        %v3299 = vld [vmem:[%s350 + $0xb40] sm:$0xff]
        %v3300 = vld [vmem:[%s350 + $0xb48] sm:$0xff]
        %v3301 = vld [vmem:[%s350 + $0xb50] sm:$0xff]
        %v3302 = vld [vmem:[%s350 + $0xb58] sm:$0xff]
        %v3303 = vld [vmem:[%s350 + $0xb60] sm:$0xff]
        %v3304 = vld [vmem:[%s350 + $0xb68] sm:$0xff]
        %v3305 = vld [vmem:[%s350 + $0xb70] sm:$0xff]
        %v3306 = vld [vmem:[%s350 + $0xb78] sm:$0xff]
        %v3307 = vld [vmem:[%s350 + $0xb80] sm:$0xff]
        %v3308 = vld [vmem:[%s350 + $0xb88] sm:$0xff]
        %v3309 = vld [vmem:[%s350 + $0xb90] sm:$0xff]
        %v3310 = vld [vmem:[%s350 + $0xb98] sm:$0xff]
        %v3311 = vld [vmem:[%s350 + $0xba0] sm:$0xff]
        %v3312 = vld [vmem:[%s350 + $0xba8] sm:$0xff]
        %v3313 = vld [vmem:[%s350 + $0xbb0] sm:$0xff]
        %v3314 = vld [vmem:[%s350 + $0xbb8] sm:$0xff]
        %v3315 = vld [vmem:[%s350 + $0xbc0] sm:$0xff]
        %v3316 = vld [vmem:[%s350 + $0xbc8] sm:$0xff]
        %v3317 = vld [vmem:[%s350 + $0xbd0] sm:$0xff]
        %v3318 = vld [vmem:[%s350 + $0xbd8] sm:$0xff]
        %v3319 = vld [vmem:[%s350 + $0xbe0] sm:$0xff]
        %v3320 = vld [vmem:[%s350 + $0xbe8] sm:$0xff]
        %v3321 = vld [vmem:[%s350 + $0xbf0] sm:$0xff]
        %v3322 = vld [vmem:[%s350 + $0xbf8] sm:$0xff]
        %v3323 = vrot.slane %v734, 5
        %v3324 = vrot.slane %v735, 4
        %v3325 = vsel %vm737, %v3324, %v3323
        %v3326 = vpack.c.b16 %v3325, %v3325
        %v3392 = vunpack.c.l.b16 %v3259
        %v3393 = vunpack.c.h.b16 %v3259
        %v3394 = vunpack.c.l.b16 %v3260
        %v3395 = vunpack.c.h.b16 %v3260
        %v3396 = vunpack.c.l.b16 %v3261
        %v3397 = vunpack.c.h.b16 %v3261
        %v3398 = vunpack.c.l.b16 %v3262
        %v3399 = vunpack.c.h.b16 %v3262
        %v3400 = vunpack.c.l.b16 %v3263
        %v3401 = vunpack.c.h.b16 %v3263
        %v3402 = vunpack.c.l.b16 %v3264
        %v3403 = vunpack.c.h.b16 %v3264
        %v3404 = vunpack.c.l.b16 %v3265
        %v3405 = vunpack.c.h.b16 %v3265
        %v3406 = vunpack.c.l.b16 %v3266
        %v3407 = vunpack.c.h.b16 %v3266
        %v3408 = vunpack.c.l.b16 %v3267
        %v3409 = vunpack.c.h.b16 %v3267
        %v3410 = vunpack.c.l.b16 %v3268
        %v3411 = vunpack.c.h.b16 %v3268
        %v3412 = vunpack.c.l.b16 %v3269
        %v3413 = vunpack.c.h.b16 %v3269
        %v3414 = vunpack.c.l.b16 %v3270
        %v3415 = vunpack.c.h.b16 %v3270
        %v3416 = vunpack.c.l.b16 %v3271
        %v3417 = vunpack.c.h.b16 %v3271
        %v3418 = vunpack.c.l.b16 %v3272
        %v3419 = vunpack.c.h.b16 %v3272
        %v3420 = vunpack.c.l.b16 %v3273
        %v3421 = vunpack.c.h.b16 %v3273
        %v3422 = vunpack.c.l.b16 %v3274
        %v3423 = vunpack.c.h.b16 %v3274
        %v3424 = vunpack.c.l.b16 %v3275
        %v3425 = vunpack.c.h.b16 %v3275
        %v3426 = vunpack.c.l.b16 %v3276
        %v3427 = vunpack.c.h.b16 %v3276
        %v3428 = vunpack.c.l.b16 %v3277
        %v3429 = vunpack.c.h.b16 %v3277
        %v3430 = vunpack.c.l.b16 %v3278
        %v3431 = vunpack.c.h.b16 %v3278
        %v3432 = vunpack.c.l.b16 %v3279
        %v3433 = vunpack.c.h.b16 %v3279
        %v3434 = vunpack.c.l.b16 %v3280
        %v3435 = vunpack.c.h.b16 %v3280
        %v3436 = vunpack.c.l.b16 %v3281
        %v3437 = vunpack.c.h.b16 %v3281
        %v3438 = vunpack.c.l.b16 %v3282
        %v3439 = vunpack.c.h.b16 %v3282
        %v3440 = vunpack.c.l.b16 %v3283
        %v3441 = vunpack.c.h.b16 %v3283
        %v3442 = vunpack.c.l.b16 %v3284
        %v3443 = vunpack.c.h.b16 %v3284
        %v3444 = vunpack.c.l.b16 %v3285
        %v3445 = vunpack.c.h.b16 %v3285
        %v3446 = vunpack.c.l.b16 %v3286
        %v3447 = vunpack.c.h.b16 %v3286
        %v3448 = vunpack.c.l.b16 %v3287
        %v3449 = vunpack.c.h.b16 %v3287
        %v3450 = vunpack.c.l.b16 %v3288
        %v3451 = vunpack.c.h.b16 %v3288
        %v3452 = vunpack.c.l.b16 %v3289
        %v3453 = vunpack.c.h.b16 %v3289
        %v3454 = vunpack.c.l.b16 %v3290
        %v3455 = vunpack.c.h.b16 %v3290
        %v3456 = vunpack.c.l.b16 %v3291
        %v3457 = vunpack.c.h.b16 %v3291
        %v3458 = vunpack.c.l.b16 %v3292
        %v3459 = vunpack.c.h.b16 %v3292
        %v3460 = vunpack.c.l.b16 %v3293
        %v3461 = vunpack.c.h.b16 %v3293
        %v3462 = vunpack.c.l.b16 %v3294
        %v3463 = vunpack.c.h.b16 %v3294
        %v3464 = vunpack.c.l.b16 %v3295
        %v3465 = vunpack.c.h.b16 %v3295
        %v3466 = vunpack.c.l.b16 %v3296
        %v3467 = vunpack.c.h.b16 %v3296
        %v3468 = vunpack.c.l.b16 %v3297
        %v3469 = vunpack.c.h.b16 %v3297
        %v3470 = vunpack.c.l.b16 %v3298
        %v3471 = vunpack.c.h.b16 %v3298
        %v3472 = vunpack.c.l.b16 %v3299
        %v3473 = vunpack.c.h.b16 %v3299
        %v3474 = vunpack.c.l.b16 %v3300
        %v3475 = vunpack.c.h.b16 %v3300
        %v3476 = vunpack.c.l.b16 %v3301
        %v3477 = vunpack.c.h.b16 %v3301
        %v3478 = vunpack.c.l.b16 %v3302
        %v3479 = vunpack.c.h.b16 %v3302
        %v3480 = vunpack.c.l.b16 %v3303
        %v3481 = vunpack.c.h.b16 %v3303
        %v3482 = vunpack.c.l.b16 %v3304
        %v3483 = vunpack.c.h.b16 %v3304
        %v3484 = vunpack.c.l.b16 %v3305
        %v3485 = vunpack.c.h.b16 %v3305
        %v3486 = vunpack.c.l.b16 %v3306
        %v3487 = vunpack.c.h.b16 %v3306
        %v3488 = vunpack.c.l.b16 %v3307
        %v3489 = vunpack.c.h.b16 %v3307
        %v3490 = vunpack.c.l.b16 %v3308
        %v3491 = vunpack.c.h.b16 %v3308
        %v3492 = vunpack.c.l.b16 %v3309
        %v3493 = vunpack.c.h.b16 %v3309
        %v3494 = vunpack.c.l.b16 %v3310
        %v3495 = vunpack.c.h.b16 %v3310
        %v3496 = vunpack.c.l.b16 %v3311
        %v3497 = vunpack.c.h.b16 %v3311
        %v3498 = vunpack.c.l.b16 %v3312
        %v3499 = vunpack.c.h.b16 %v3312
        %v3500 = vunpack.c.l.b16 %v3313
        %v3501 = vunpack.c.h.b16 %v3313
        %v3502 = vunpack.c.l.b16 %v3314
        %v3503 = vunpack.c.h.b16 %v3314
        %v3504 = vunpack.c.l.b16 %v3315
        %v3505 = vunpack.c.h.b16 %v3315
        %v3506 = vunpack.c.l.b16 %v3316
        %v3507 = vunpack.c.h.b16 %v3316
        %v3508 = vunpack.c.l.b16 %v3317
        %v3509 = vunpack.c.h.b16 %v3317
        %v3510 = vunpack.c.l.b16 %v3318
        %v3511 = vunpack.c.h.b16 %v3318
        %v3512 = vunpack.c.l.b16 %v3319
        %v3513 = vunpack.c.h.b16 %v3319
        %v3514 = vunpack.c.l.b16 %v3320
        %v3515 = vunpack.c.h.b16 %v3320
        %v3516 = vunpack.c.l.b16 %v3321
        %v3517 = vunpack.c.h.b16 %v3321
        %v3518 = vunpack.c.l.b16 %v3322
        %v3519 = vunpack.c.h.b16 %v3322
        %v3520 = vpack.c.b16 %v3400, %v3392
        %v3521 = vpack.c.b16 %v3401, %v3393
        %v3522 = vpack.c.b16 %v3402, %v3394
        %v3523 = vpack.c.b16 %v3403, %v3395
        %v3524 = vpack.c.b16 %v3404, %v3396
        %v3525 = vpack.c.b16 %v3405, %v3397
        %v3526 = vpack.c.b16 %v3406, %v3398
        %v3527 = vpack.c.b16 %v3407, %v3399
        %v3528 = vpack.c.b16 %v3416, %v3408
        %v3529 = vpack.c.b16 %v3417, %v3409
        %v3530 = vpack.c.b16 %v3418, %v3410
        %v3531 = vpack.c.b16 %v3419, %v3411
        %v3532 = vpack.c.b16 %v3420, %v3412
        %v3533 = vpack.c.b16 %v3421, %v3413
        %v3534 = vpack.c.b16 %v3422, %v3414
        %v3535 = vpack.c.b16 %v3423, %v3415
        %v3536 = vpack.c.b16 %v3432, %v3424
        %v3537 = vpack.c.b16 %v3433, %v3425
        %v3538 = vpack.c.b16 %v3434, %v3426
        %v3539 = vpack.c.b16 %v3435, %v3427
        %v3540 = vpack.c.b16 %v3436, %v3428
        %v3541 = vpack.c.b16 %v3437, %v3429
        %v3542 = vpack.c.b16 %v3438, %v3430
        %v3543 = vpack.c.b16 %v3439, %v3431
        %v3544 = vpack.c.b16 %v3448, %v3440
        %v3545 = vpack.c.b16 %v3449, %v3441
        %v3546 = vpack.c.b16 %v3450, %v3442
        %v3547 = vpack.c.b16 %v3451, %v3443
        %v3548 = vpack.c.b16 %v3452, %v3444
        %v3549 = vpack.c.b16 %v3453, %v3445
        %v3550 = vpack.c.b16 %v3454, %v3446
        %v3551 = vpack.c.b16 %v3455, %v3447
        %v3552 = vpack.c.b16 %v3464, %v3456
        %v3553 = vpack.c.b16 %v3465, %v3457
        %v3554 = vpack.c.b16 %v3466, %v3458
        %v3555 = vpack.c.b16 %v3467, %v3459
        %v3556 = vpack.c.b16 %v3468, %v3460
        %v3557 = vpack.c.b16 %v3469, %v3461
        %v3558 = vpack.c.b16 %v3470, %v3462
        %v3559 = vpack.c.b16 %v3471, %v3463
        %v3560 = vpack.c.b16 %v3480, %v3472
        %v3561 = vpack.c.b16 %v3481, %v3473
        %v3562 = vpack.c.b16 %v3482, %v3474
        %v3563 = vpack.c.b16 %v3483, %v3475
        %v3564 = vpack.c.b16 %v3484, %v3476
        %v3565 = vpack.c.b16 %v3485, %v3477
        %v3566 = vpack.c.b16 %v3486, %v3478
        %v3567 = vpack.c.b16 %v3487, %v3479
        %v3568 = vpack.c.b16 %v3496, %v3488
        %v3569 = vpack.c.b16 %v3497, %v3489
        %v3570 = vpack.c.b16 %v3498, %v3490
        %v3571 = vpack.c.b16 %v3499, %v3491
        %v3572 = vpack.c.b16 %v3500, %v3492
        %v3573 = vpack.c.b16 %v3501, %v3493
        %v3574 = vpack.c.b16 %v3502, %v3494
        %v3575 = vpack.c.b16 %v3503, %v3495
        %v3576 = vpack.c.b16 %v3512, %v3504
        %v3577 = vpack.c.b16 %v3513, %v3505
        %v3578 = vpack.c.b16 %v3514, %v3506
        %v3579 = vpack.c.b16 %v3515, %v3507
        %v3580 = vpack.c.b16 %v3516, %v3508
        %v3581 = vpack.c.b16 %v3517, %v3509
        %v3582 = vpack.c.b16 %v3518, %v3510
        %v3583 = vpack.c.b16 %v3519, %v3511
        %3648 = vmatpush.bf16.msra.mxu0 %v3576
        %3649 = vmatpush.bf16.msra.mxu0 %v3568
        %3650 = vmatpush.bf16.msra.mxu0 %v3560
        %3651 = vmatpush.bf16.msra.mxu0 %v3552
        %3652 = vmatpush.bf16.msra.mxu0 %v3544
        %3653 = vmatpush.bf16.msra.mxu0 %v3536
        %3654 = vmatpush.bf16.msra.mxu0 %v3528
        %3655 = vmatpush.bf16.msra.mxu0 %v3520
        %3656 = vmatmul.bf16.gmra.mxu0 %v3326
        %v3657 = vpop.f32.mrf.mxu0
        %v3658 = vadd.f32 0.0, %v3657
        %v3659 = vpop.f32.mrf.mxu0
        %3660 = vdwg.mxu0
        %3661 = vmatpush.bf16.msra.mxu0 %v3577
        %3662 = vmatpush.bf16.msra.mxu0 %v3569
        %3663 = vmatpush.bf16.msra.mxu0 %v3561
        %3664 = vmatpush.bf16.msra.mxu0 %v3553
        %3665 = vmatpush.bf16.msra.mxu0 %v3545
        %3666 = vmatpush.bf16.msra.mxu0 %v3537
        %3667 = vmatpush.bf16.msra.mxu0 %v3529
        %3668 = vmatpush.bf16.msra.mxu0 %v3521
        %3669 = vmatmul.bf16.gmra.mxu0 %v3326
        %v3670 = vpop.f32.mrf.mxu0
        %v3671 = vadd.f32 0.0, %v3670
        %v3672 = vpop.f32.mrf.mxu0
        %3673 = vdwg.mxu0
        %3674 = vmatpush.bf16.msra.mxu0 %v3578
        %3675 = vmatpush.bf16.msra.mxu0 %v3570
        %3676 = vmatpush.bf16.msra.mxu0 %v3562
        %3677 = vmatpush.bf16.msra.mxu0 %v3554
        %3678 = vmatpush.bf16.msra.mxu0 %v3546
        %3679 = vmatpush.bf16.msra.mxu0 %v3538
        %3680 = vmatpush.bf16.msra.mxu0 %v3530
        %3681 = vmatpush.bf16.msra.mxu0 %v3522
        %3682 = vmatmul.bf16.gmra.mxu0 %v3326
        %v3683 = vpop.f32.mrf.mxu0
        %v3684 = vadd.f32 0.0, %v3683
        %v3685 = vpop.f32.mrf.mxu0
        %3686 = vdwg.mxu0
        %3687 = vmatpush.bf16.msra.mxu0 %v3579
        %3688 = vmatpush.bf16.msra.mxu0 %v3571
        %3689 = vmatpush.bf16.msra.mxu0 %v3563
        %3690 = vmatpush.bf16.msra.mxu0 %v3555
        %3691 = vmatpush.bf16.msra.mxu0 %v3547
        %3692 = vmatpush.bf16.msra.mxu0 %v3539
        %3693 = vmatpush.bf16.msra.mxu0 %v3531
        %3694 = vmatpush.bf16.msra.mxu0 %v3523
        %3695 = vmatmul.bf16.gmra.mxu0 %v3326
        %v3696 = vpop.f32.mrf.mxu0
        %v3697 = vadd.f32 0.0, %v3696
        %v3698 = vpop.f32.mrf.mxu0
        %3699 = vdwg.mxu0
        %3700 = vmatpush.bf16.msra.mxu0 %v3580
        %3701 = vmatpush.bf16.msra.mxu0 %v3572
        %3702 = vmatpush.bf16.msra.mxu0 %v3564
        %3703 = vmatpush.bf16.msra.mxu0 %v3556
        %3704 = vmatpush.bf16.msra.mxu0 %v3548
        %3705 = vmatpush.bf16.msra.mxu0 %v3540
        %3706 = vmatpush.bf16.msra.mxu0 %v3532
        %3707 = vmatpush.bf16.msra.mxu0 %v3524
        %3708 = vmatmul.bf16.gmra.mxu0 %v3326
        %v3709 = vpop.f32.mrf.mxu0
        %v3710 = vadd.f32 0.0, %v3709
        %v3711 = vpop.f32.mrf.mxu0
        %3712 = vdwg.mxu0
        %3713 = vmatpush.bf16.msra.mxu0 %v3581
        %3714 = vmatpush.bf16.msra.mxu0 %v3573
        %3715 = vmatpush.bf16.msra.mxu0 %v3565
        %3716 = vmatpush.bf16.msra.mxu0 %v3557
        %3717 = vmatpush.bf16.msra.mxu0 %v3549
        %3718 = vmatpush.bf16.msra.mxu0 %v3541
        %3719 = vmatpush.bf16.msra.mxu0 %v3533
        %3720 = vmatpush.bf16.msra.mxu0 %v3525
        %3721 = vmatmul.bf16.gmra.mxu0 %v3326
        %v3722 = vpop.f32.mrf.mxu0
        %v3723 = vadd.f32 0.0, %v3722
        %v3724 = vpop.f32.mrf.mxu0
        %3725 = vdwg.mxu0
        %3726 = vmatpush.bf16.msra.mxu0 %v3582
        %3727 = vmatpush.bf16.msra.mxu0 %v3574
        %3728 = vmatpush.bf16.msra.mxu0 %v3566
        %3729 = vmatpush.bf16.msra.mxu0 %v3558
        %3730 = vmatpush.bf16.msra.mxu0 %v3550
        %3731 = vmatpush.bf16.msra.mxu0 %v3542
        %3732 = vmatpush.bf16.msra.mxu0 %v3534
        %3733 = vmatpush.bf16.msra.mxu0 %v3526
        %3734 = vmatmul.bf16.gmra.mxu0 %v3326
        %v3735 = vpop.f32.mrf.mxu0
        %v3736 = vadd.f32 0.0, %v3735
        %v3737 = vpop.f32.mrf.mxu0
        %3738 = vdwg.mxu0
        %3739 = vmatpush.bf16.msra.mxu0 %v3583
        %3740 = vmatpush.bf16.msra.mxu0 %v3575
        %3741 = vmatpush.bf16.msra.mxu0 %v3567
        %3742 = vmatpush.bf16.msra.mxu0 %v3559
        %3743 = vmatpush.bf16.msra.mxu0 %v3551
        %3744 = vmatpush.bf16.msra.mxu0 %v3543
        %3745 = vmatpush.bf16.msra.mxu0 %v3535
        %3746 = vmatpush.bf16.msra.mxu0 %v3527
        %3747 = vmatmul.bf16.gmra.mxu0 %v3326
        %v3748 = vpop.f32.mrf.mxu0
        %v3749 = vadd.f32 0.0, %v3748
        %v3750 = vpop.f32.mrf.mxu0
        %3751 = vdwg.mxu0
        %v3760 = vrot.slane %v3671, 6
        %v3761 = vrot.slane %v3684, 4
        %v3762 = vrot.slane %v3697, 2
        %v3763 = vrot.slane %v3723, 6
        %v3764 = vrot.slane %v3736, 4
        %v3765 = vrot.slane %v3749, 2
        %v3766 = vsel %vm1179, %v3658, %v3760
        %v3767 = vsel %vm1181, %v3761, %v3762
        %v3768 = vsel %vm1183, %v3766, %v3767
        %v3769 = vsel %vm1179, %v3710, %v3763
        %v3770 = vsel %vm1181, %v3764, %v3765
        %v3771 = vsel %vm1183, %v3769, %v3770
        %v3774 = vadd.f32 %v3257, %v3768
        %v3775 = vadd.f32 %v3258, %v3771
        %v3776 = vld [vmem:[%s350 + $0xc00] sm:$0xff]
        %v3777 = vld [vmem:[%s350 + $0xc08] sm:$0xff]
        %v3778 = vld [vmem:[%s350 + $0xc10] sm:$0xff]
        %v3779 = vld [vmem:[%s350 + $0xc18] sm:$0xff]
        %v3780 = vld [vmem:[%s350 + $0xc20] sm:$0xff]
        %v3781 = vld [vmem:[%s350 + $0xc28] sm:$0xff]
        %v3782 = vld [vmem:[%s350 + $0xc30] sm:$0xff]
        %v3783 = vld [vmem:[%s350 + $0xc38] sm:$0xff]
        %v3784 = vld [vmem:[%s350 + $0xc40] sm:$0xff]
        %v3785 = vld [vmem:[%s350 + $0xc48] sm:$0xff]
        %v3786 = vld [vmem:[%s350 + $0xc50] sm:$0xff]
        %v3787 = vld [vmem:[%s350 + $0xc58] sm:$0xff]
        %v3788 = vld [vmem:[%s350 + $0xc60] sm:$0xff]
        %v3789 = vld [vmem:[%s350 + $0xc68] sm:$0xff]
        %v3790 = vld [vmem:[%s350 + $0xc70] sm:$0xff]
        %v3791 = vld [vmem:[%s350 + $0xc78] sm:$0xff]
        %v3792 = vld [vmem:[%s350 + $0xc80] sm:$0xff]
        %v3793 = vld [vmem:[%s350 + $0xc88] sm:$0xff]
        %v3794 = vld [vmem:[%s350 + $0xc90] sm:$0xff]
        %v3795 = vld [vmem:[%s350 + $0xc98] sm:$0xff]
        %v3796 = vld [vmem:[%s350 + $0xca0] sm:$0xff]
        %v3797 = vld [vmem:[%s350 + $0xca8] sm:$0xff]
        %v3798 = vld [vmem:[%s350 + $0xcb0] sm:$0xff]
        %v3799 = vld [vmem:[%s350 + $0xcb8] sm:$0xff]
        %v3800 = vld [vmem:[%s350 + $0xcc0] sm:$0xff]
        %v3801 = vld [vmem:[%s350 + $0xcc8] sm:$0xff]
        %v3802 = vld [vmem:[%s350 + $0xcd0] sm:$0xff]
        %v3803 = vld [vmem:[%s350 + $0xcd8] sm:$0xff]
        %v3804 = vld [vmem:[%s350 + $0xce0] sm:$0xff]
        %v3805 = vld [vmem:[%s350 + $0xce8] sm:$0xff]
        %v3806 = vld [vmem:[%s350 + $0xcf0] sm:$0xff]
        %v3807 = vld [vmem:[%s350 + $0xcf8] sm:$0xff]
        %v3808 = vld [vmem:[%s350 + $0xd00] sm:$0xff]
        %v3809 = vld [vmem:[%s350 + $0xd08] sm:$0xff]
        %v3810 = vld [vmem:[%s350 + $0xd10] sm:$0xff]
        %v3811 = vld [vmem:[%s350 + $0xd18] sm:$0xff]
        %v3812 = vld [vmem:[%s350 + $0xd20] sm:$0xff]
        %v3813 = vld [vmem:[%s350 + $0xd28] sm:$0xff]
        %v3814 = vld [vmem:[%s350 + $0xd30] sm:$0xff]
        %v3815 = vld [vmem:[%s350 + $0xd38] sm:$0xff]
        %v3816 = vld [vmem:[%s350 + $0xd40] sm:$0xff]
        %v3817 = vld [vmem:[%s350 + $0xd48] sm:$0xff]
        %v3818 = vld [vmem:[%s350 + $0xd50] sm:$0xff]
        %v3819 = vld [vmem:[%s350 + $0xd58] sm:$0xff]
        %v3820 = vld [vmem:[%s350 + $0xd60] sm:$0xff]
        %v3821 = vld [vmem:[%s350 + $0xd68] sm:$0xff]
        %v3822 = vld [vmem:[%s350 + $0xd70] sm:$0xff]
        %v3823 = vld [vmem:[%s350 + $0xd78] sm:$0xff]
        %v3824 = vld [vmem:[%s350 + $0xd80] sm:$0xff]
        %v3825 = vld [vmem:[%s350 + $0xd88] sm:$0xff]
        %v3826 = vld [vmem:[%s350 + $0xd90] sm:$0xff]
        %v3827 = vld [vmem:[%s350 + $0xd98] sm:$0xff]
        %v3828 = vld [vmem:[%s350 + $0xda0] sm:$0xff]
        %v3829 = vld [vmem:[%s350 + $0xda8] sm:$0xff]
        %v3830 = vld [vmem:[%s350 + $0xdb0] sm:$0xff]
        %v3831 = vld [vmem:[%s350 + $0xdb8] sm:$0xff]
        %v3832 = vld [vmem:[%s350 + $0xdc0] sm:$0xff]
        %v3833 = vld [vmem:[%s350 + $0xdc8] sm:$0xff]
        %v3834 = vld [vmem:[%s350 + $0xdd0] sm:$0xff]
        %v3835 = vld [vmem:[%s350 + $0xdd8] sm:$0xff]
        %v3836 = vld [vmem:[%s350 + $0xde0] sm:$0xff]
        %v3837 = vld [vmem:[%s350 + $0xde8] sm:$0xff]
        %v3838 = vld [vmem:[%s350 + $0xdf0] sm:$0xff]
        %v3839 = vld [vmem:[%s350 + $0xdf8] sm:$0xff]
        %v3840 = vrot.slane %v734, 6
        %v3841 = vrot.slane %v735, 5
        %v3842 = vsel %vm737, %v3841, %v3840
        %v3843 = vpack.c.b16 %v3842, %v3842
        %v3909 = vunpack.c.l.b16 %v3776
        %v3910 = vunpack.c.h.b16 %v3776
        %v3911 = vunpack.c.l.b16 %v3777
        %v3912 = vunpack.c.h.b16 %v3777
        %v3913 = vunpack.c.l.b16 %v3778
        %v3914 = vunpack.c.h.b16 %v3778
        %v3915 = vunpack.c.l.b16 %v3779
        %v3916 = vunpack.c.h.b16 %v3779
        %v3917 = vunpack.c.l.b16 %v3780
        %v3918 = vunpack.c.h.b16 %v3780
        %v3919 = vunpack.c.l.b16 %v3781
        %v3920 = vunpack.c.h.b16 %v3781
        %v3921 = vunpack.c.l.b16 %v3782
        %v3922 = vunpack.c.h.b16 %v3782
        %v3923 = vunpack.c.l.b16 %v3783
        %v3924 = vunpack.c.h.b16 %v3783
        %v3925 = vunpack.c.l.b16 %v3784
        %v3926 = vunpack.c.h.b16 %v3784
        %v3927 = vunpack.c.l.b16 %v3785
        %v3928 = vunpack.c.h.b16 %v3785
        %v3929 = vunpack.c.l.b16 %v3786
        %v3930 = vunpack.c.h.b16 %v3786
        %v3931 = vunpack.c.l.b16 %v3787
        %v3932 = vunpack.c.h.b16 %v3787
        %v3933 = vunpack.c.l.b16 %v3788
        %v3934 = vunpack.c.h.b16 %v3788
        %v3935 = vunpack.c.l.b16 %v3789
        %v3936 = vunpack.c.h.b16 %v3789
        %v3937 = vunpack.c.l.b16 %v3790
        %v3938 = vunpack.c.h.b16 %v3790
        %v3939 = vunpack.c.l.b16 %v3791
        %v3940 = vunpack.c.h.b16 %v3791
        %v3941 = vunpack.c.l.b16 %v3792
        %v3942 = vunpack.c.h.b16 %v3792
        %v3943 = vunpack.c.l.b16 %v3793
        %v3944 = vunpack.c.h.b16 %v3793
        %v3945 = vunpack.c.l.b16 %v3794
        %v3946 = vunpack.c.h.b16 %v3794
        %v3947 = vunpack.c.l.b16 %v3795
        %v3948 = vunpack.c.h.b16 %v3795
        %v3949 = vunpack.c.l.b16 %v3796
        %v3950 = vunpack.c.h.b16 %v3796
        %v3951 = vunpack.c.l.b16 %v3797
        %v3952 = vunpack.c.h.b16 %v3797
        %v3953 = vunpack.c.l.b16 %v3798
        %v3954 = vunpack.c.h.b16 %v3798
        %v3955 = vunpack.c.l.b16 %v3799
        %v3956 = vunpack.c.h.b16 %v3799
        %v3957 = vunpack.c.l.b16 %v3800
        %v3958 = vunpack.c.h.b16 %v3800
        %v3959 = vunpack.c.l.b16 %v3801
        %v3960 = vunpack.c.h.b16 %v3801
        %v3961 = vunpack.c.l.b16 %v3802
        %v3962 = vunpack.c.h.b16 %v3802
        %v3963 = vunpack.c.l.b16 %v3803
        %v3964 = vunpack.c.h.b16 %v3803
        %v3965 = vunpack.c.l.b16 %v3804
        %v3966 = vunpack.c.h.b16 %v3804
        %v3967 = vunpack.c.l.b16 %v3805
        %v3968 = vunpack.c.h.b16 %v3805
        %v3969 = vunpack.c.l.b16 %v3806
        %v3970 = vunpack.c.h.b16 %v3806
        %v3971 = vunpack.c.l.b16 %v3807
        %v3972 = vunpack.c.h.b16 %v3807
        %v3973 = vunpack.c.l.b16 %v3808
        %v3974 = vunpack.c.h.b16 %v3808
        %v3975 = vunpack.c.l.b16 %v3809
        %v3976 = vunpack.c.h.b16 %v3809
        %v3977 = vunpack.c.l.b16 %v3810
        %v3978 = vunpack.c.h.b16 %v3810
        %v3979 = vunpack.c.l.b16 %v3811
        %v3980 = vunpack.c.h.b16 %v3811
        %v3981 = vunpack.c.l.b16 %v3812
        %v3982 = vunpack.c.h.b16 %v3812
        %v3983 = vunpack.c.l.b16 %v3813
        %v3984 = vunpack.c.h.b16 %v3813
        %v3985 = vunpack.c.l.b16 %v3814
        %v3986 = vunpack.c.h.b16 %v3814
        %v3987 = vunpack.c.l.b16 %v3815
        %v3988 = vunpack.c.h.b16 %v3815
        %v3989 = vunpack.c.l.b16 %v3816
        %v3990 = vunpack.c.h.b16 %v3816
        %v3991 = vunpack.c.l.b16 %v3817
        %v3992 = vunpack.c.h.b16 %v3817
        %v3993 = vunpack.c.l.b16 %v3818
        %v3994 = vunpack.c.h.b16 %v3818
        %v3995 = vunpack.c.l.b16 %v3819
        %v3996 = vunpack.c.h.b16 %v3819
        %v3997 = vunpack.c.l.b16 %v3820
        %v3998 = vunpack.c.h.b16 %v3820
        %v3999 = vunpack.c.l.b16 %v3821
        %v4000 = vunpack.c.h.b16 %v3821
        %v4001 = vunpack.c.l.b16 %v3822
        %v4002 = vunpack.c.h.b16 %v3822
        %v4003 = vunpack.c.l.b16 %v3823
        %v4004 = vunpack.c.h.b16 %v3823
        %v4005 = vunpack.c.l.b16 %v3824
        %v4006 = vunpack.c.h.b16 %v3824
        %v4007 = vunpack.c.l.b16 %v3825
        %v4008 = vunpack.c.h.b16 %v3825
        %v4009 = vunpack.c.l.b16 %v3826
        %v4010 = vunpack.c.h.b16 %v3826
        %v4011 = vunpack.c.l.b16 %v3827
        %v4012 = vunpack.c.h.b16 %v3827
        %v4013 = vunpack.c.l.b16 %v3828
        %v4014 = vunpack.c.h.b16 %v3828
        %v4015 = vunpack.c.l.b16 %v3829
        %v4016 = vunpack.c.h.b16 %v3829
        %v4017 = vunpack.c.l.b16 %v3830
        %v4018 = vunpack.c.h.b16 %v3830
        %v4019 = vunpack.c.l.b16 %v3831
        %v4020 = vunpack.c.h.b16 %v3831
        %v4021 = vunpack.c.l.b16 %v3832
        %v4022 = vunpack.c.h.b16 %v3832
        %v4023 = vunpack.c.l.b16 %v3833
        %v4024 = vunpack.c.h.b16 %v3833
        %v4025 = vunpack.c.l.b16 %v3834
        %v4026 = vunpack.c.h.b16 %v3834
        %v4027 = vunpack.c.l.b16 %v3835
        %v4028 = vunpack.c.h.b16 %v3835
        %v4029 = vunpack.c.l.b16 %v3836
        %v4030 = vunpack.c.h.b16 %v3836
        %v4031 = vunpack.c.l.b16 %v3837
        %v4032 = vunpack.c.h.b16 %v3837
        %v4033 = vunpack.c.l.b16 %v3838
        %v4034 = vunpack.c.h.b16 %v3838
        %v4035 = vunpack.c.l.b16 %v3839
        %v4036 = vunpack.c.h.b16 %v3839
        %v4037 = vpack.c.b16 %v3917, %v3909
        %v4038 = vpack.c.b16 %v3918, %v3910
        %v4039 = vpack.c.b16 %v3919, %v3911
        %v4040 = vpack.c.b16 %v3920, %v3912
        %v4041 = vpack.c.b16 %v3921, %v3913
        %v4042 = vpack.c.b16 %v3922, %v3914
        %v4043 = vpack.c.b16 %v3923, %v3915
        %v4044 = vpack.c.b16 %v3924, %v3916
        %v4045 = vpack.c.b16 %v3933, %v3925
        %v4046 = vpack.c.b16 %v3934, %v3926
        %v4047 = vpack.c.b16 %v3935, %v3927
        %v4048 = vpack.c.b16 %v3936, %v3928
        %v4049 = vpack.c.b16 %v3937, %v3929
        %v4050 = vpack.c.b16 %v3938, %v3930
        %v4051 = vpack.c.b16 %v3939, %v3931
        %v4052 = vpack.c.b16 %v3940, %v3932
        %v4053 = vpack.c.b16 %v3949, %v3941
        %v4054 = vpack.c.b16 %v3950, %v3942
        %v4055 = vpack.c.b16 %v3951, %v3943
        %v4056 = vpack.c.b16 %v3952, %v3944
        %v4057 = vpack.c.b16 %v3953, %v3945
        %v4058 = vpack.c.b16 %v3954, %v3946
        %v4059 = vpack.c.b16 %v3955, %v3947
        %v4060 = vpack.c.b16 %v3956, %v3948
        %v4061 = vpack.c.b16 %v3965, %v3957
        %v4062 = vpack.c.b16 %v3966, %v3958
        %v4063 = vpack.c.b16 %v3967, %v3959
        %v4064 = vpack.c.b16 %v3968, %v3960
        %v4065 = vpack.c.b16 %v3969, %v3961
        %v4066 = vpack.c.b16 %v3970, %v3962
        %v4067 = vpack.c.b16 %v3971, %v3963
        %v4068 = vpack.c.b16 %v3972, %v3964
        %v4069 = vpack.c.b16 %v3981, %v3973
        %v4070 = vpack.c.b16 %v3982, %v3974
        %v4071 = vpack.c.b16 %v3983, %v3975
        %v4072 = vpack.c.b16 %v3984, %v3976
        %v4073 = vpack.c.b16 %v3985, %v3977
        %v4074 = vpack.c.b16 %v3986, %v3978
        %v4075 = vpack.c.b16 %v3987, %v3979
        %v4076 = vpack.c.b16 %v3988, %v3980
        %v4077 = vpack.c.b16 %v3997, %v3989
        %v4078 = vpack.c.b16 %v3998, %v3990
        %v4079 = vpack.c.b16 %v3999, %v3991
        %v4080 = vpack.c.b16 %v4000, %v3992
        %v4081 = vpack.c.b16 %v4001, %v3993
        %v4082 = vpack.c.b16 %v4002, %v3994
        %v4083 = vpack.c.b16 %v4003, %v3995
        %v4084 = vpack.c.b16 %v4004, %v3996
        %v4085 = vpack.c.b16 %v4013, %v4005
        %v4086 = vpack.c.b16 %v4014, %v4006
        %v4087 = vpack.c.b16 %v4015, %v4007
        %v4088 = vpack.c.b16 %v4016, %v4008
        %v4089 = vpack.c.b16 %v4017, %v4009
        %v4090 = vpack.c.b16 %v4018, %v4010
        %v4091 = vpack.c.b16 %v4019, %v4011
        %v4092 = vpack.c.b16 %v4020, %v4012
        %v4093 = vpack.c.b16 %v4029, %v4021
        %v4094 = vpack.c.b16 %v4030, %v4022
        %v4095 = vpack.c.b16 %v4031, %v4023
        %v4096 = vpack.c.b16 %v4032, %v4024
        %v4097 = vpack.c.b16 %v4033, %v4025
        %v4098 = vpack.c.b16 %v4034, %v4026
        %v4099 = vpack.c.b16 %v4035, %v4027
        %v4100 = vpack.c.b16 %v4036, %v4028
        %4165 = vmatpush.bf16.msra.mxu0 %v4093
        %4166 = vmatpush.bf16.msra.mxu0 %v4085
        %4167 = vmatpush.bf16.msra.mxu0 %v4077
        %4168 = vmatpush.bf16.msra.mxu0 %v4069
        %4169 = vmatpush.bf16.msra.mxu0 %v4061
        %4170 = vmatpush.bf16.msra.mxu0 %v4053
        %4171 = vmatpush.bf16.msra.mxu0 %v4045
        %4172 = vmatpush.bf16.msra.mxu0 %v4037
        %4173 = vmatmul.bf16.gmra.mxu0 %v3843
        %v4174 = vpop.f32.mrf.mxu0
        %v4175 = vadd.f32 0.0, %v4174
        %v4176 = vpop.f32.mrf.mxu0
        %4177 = vdwg.mxu0
        %4178 = vmatpush.bf16.msra.mxu0 %v4094
        %4179 = vmatpush.bf16.msra.mxu0 %v4086
        %4180 = vmatpush.bf16.msra.mxu0 %v4078
        %4181 = vmatpush.bf16.msra.mxu0 %v4070
        %4182 = vmatpush.bf16.msra.mxu0 %v4062
        %4183 = vmatpush.bf16.msra.mxu0 %v4054
        %4184 = vmatpush.bf16.msra.mxu0 %v4046
        %4185 = vmatpush.bf16.msra.mxu0 %v4038
        %4186 = vmatmul.bf16.gmra.mxu0 %v3843
        %v4187 = vpop.f32.mrf.mxu0
        %v4188 = vadd.f32 0.0, %v4187
        %v4189 = vpop.f32.mrf.mxu0
        %4190 = vdwg.mxu0
        %4191 = vmatpush.bf16.msra.mxu0 %v4095
        %4192 = vmatpush.bf16.msra.mxu0 %v4087
        %4193 = vmatpush.bf16.msra.mxu0 %v4079
        %4194 = vmatpush.bf16.msra.mxu0 %v4071
        %4195 = vmatpush.bf16.msra.mxu0 %v4063
        %4196 = vmatpush.bf16.msra.mxu0 %v4055
        %4197 = vmatpush.bf16.msra.mxu0 %v4047
        %4198 = vmatpush.bf16.msra.mxu0 %v4039
        %4199 = vmatmul.bf16.gmra.mxu0 %v3843
        %v4200 = vpop.f32.mrf.mxu0
        %v4201 = vadd.f32 0.0, %v4200
        %v4202 = vpop.f32.mrf.mxu0
        %4203 = vdwg.mxu0
        %4204 = vmatpush.bf16.msra.mxu0 %v4096
        %4205 = vmatpush.bf16.msra.mxu0 %v4088
        %4206 = vmatpush.bf16.msra.mxu0 %v4080
        %4207 = vmatpush.bf16.msra.mxu0 %v4072
        %4208 = vmatpush.bf16.msra.mxu0 %v4064
        %4209 = vmatpush.bf16.msra.mxu0 %v4056
        %4210 = vmatpush.bf16.msra.mxu0 %v4048
        %4211 = vmatpush.bf16.msra.mxu0 %v4040
        %4212 = vmatmul.bf16.gmra.mxu0 %v3843
        %v4213 = vpop.f32.mrf.mxu0
        %v4214 = vadd.f32 0.0, %v4213
        %v4215 = vpop.f32.mrf.mxu0
        %4216 = vdwg.mxu0
        %4217 = vmatpush.bf16.msra.mxu0 %v4097
        %4218 = vmatpush.bf16.msra.mxu0 %v4089
        %4219 = vmatpush.bf16.msra.mxu0 %v4081
        %4220 = vmatpush.bf16.msra.mxu0 %v4073
        %4221 = vmatpush.bf16.msra.mxu0 %v4065
        %4222 = vmatpush.bf16.msra.mxu0 %v4057
        %4223 = vmatpush.bf16.msra.mxu0 %v4049
        %4224 = vmatpush.bf16.msra.mxu0 %v4041
        %4225 = vmatmul.bf16.gmra.mxu0 %v3843
        %v4226 = vpop.f32.mrf.mxu0
        %v4227 = vadd.f32 0.0, %v4226
        %v4228 = vpop.f32.mrf.mxu0
        %4229 = vdwg.mxu0
        %4230 = vmatpush.bf16.msra.mxu0 %v4098
        %4231 = vmatpush.bf16.msra.mxu0 %v4090
        %4232 = vmatpush.bf16.msra.mxu0 %v4082
        %4233 = vmatpush.bf16.msra.mxu0 %v4074
        %4234 = vmatpush.bf16.msra.mxu0 %v4066
        %4235 = vmatpush.bf16.msra.mxu0 %v4058
        %4236 = vmatpush.bf16.msra.mxu0 %v4050
        %4237 = vmatpush.bf16.msra.mxu0 %v4042
        %4238 = vmatmul.bf16.gmra.mxu0 %v3843
        %v4239 = vpop.f32.mrf.mxu0
        %v4240 = vadd.f32 0.0, %v4239
        %v4241 = vpop.f32.mrf.mxu0
        %4242 = vdwg.mxu0
        %4243 = vmatpush.bf16.msra.mxu0 %v4099
        %4244 = vmatpush.bf16.msra.mxu0 %v4091
        %4245 = vmatpush.bf16.msra.mxu0 %v4083
        %4246 = vmatpush.bf16.msra.mxu0 %v4075
        %4247 = vmatpush.bf16.msra.mxu0 %v4067
        %4248 = vmatpush.bf16.msra.mxu0 %v4059
        %4249 = vmatpush.bf16.msra.mxu0 %v4051
        %4250 = vmatpush.bf16.msra.mxu0 %v4043
        %4251 = vmatmul.bf16.gmra.mxu0 %v3843
        %v4252 = vpop.f32.mrf.mxu0
        %v4253 = vadd.f32 0.0, %v4252
        %v4254 = vpop.f32.mrf.mxu0
        %4255 = vdwg.mxu0
        %4256 = vmatpush.bf16.msra.mxu0 %v4100
        %4257 = vmatpush.bf16.msra.mxu0 %v4092
        %4258 = vmatpush.bf16.msra.mxu0 %v4084
        %4259 = vmatpush.bf16.msra.mxu0 %v4076
        %4260 = vmatpush.bf16.msra.mxu0 %v4068
        %4261 = vmatpush.bf16.msra.mxu0 %v4060
        %4262 = vmatpush.bf16.msra.mxu0 %v4052
        %4263 = vmatpush.bf16.msra.mxu0 %v4044
        %4264 = vmatmul.bf16.gmra.mxu0 %v3843
        %v4265 = vpop.f32.mrf.mxu0
        %v4266 = vadd.f32 0.0, %v4265
        %v4267 = vpop.f32.mrf.mxu0
        %4268 = vdwg.mxu0
        %v4277 = vrot.slane %v4188, 6
        %v4278 = vrot.slane %v4201, 4
        %v4279 = vrot.slane %v4214, 2
        %v4280 = vrot.slane %v4240, 6
        %v4281 = vrot.slane %v4253, 4
        %v4282 = vrot.slane %v4266, 2
        %v4283 = vsel %vm1179, %v4175, %v4277
        %v4284 = vsel %vm1181, %v4278, %v4279
        %v4285 = vsel %vm1183, %v4283, %v4284
        %v4286 = vsel %vm1179, %v4227, %v4280
        %v4287 = vsel %vm1181, %v4281, %v4282
        %v4288 = vsel %vm1183, %v4286, %v4287
        %v4291 = vadd.f32 %v3774, %v4285
        %v4292 = vadd.f32 %v3775, %v4288
        %v4293 = vld [vmem:[%s350 + $0xe00] sm:$0xff]
        %v4294 = vld [vmem:[%s350 + $0xe08] sm:$0xff]
        %v4295 = vld [vmem:[%s350 + $0xe10] sm:$0xff]
        %v4296 = vld [vmem:[%s350 + $0xe18] sm:$0xff]
        %v4297 = vld [vmem:[%s350 + $0xe20] sm:$0xff]
        %v4298 = vld [vmem:[%s350 + $0xe28] sm:$0xff]
        %v4299 = vld [vmem:[%s350 + $0xe30] sm:$0xff]
        %v4300 = vld [vmem:[%s350 + $0xe38] sm:$0xff]
        %v4301 = vld [vmem:[%s350 + $0xe40] sm:$0xff]
        %v4302 = vld [vmem:[%s350 + $0xe48] sm:$0xff]
        %v4303 = vld [vmem:[%s350 + $0xe50] sm:$0xff]
        %v4304 = vld [vmem:[%s350 + $0xe58] sm:$0xff]
        %v4305 = vld [vmem:[%s350 + $0xe60] sm:$0xff]
        %v4306 = vld [vmem:[%s350 + $0xe68] sm:$0xff]
        %v4307 = vld [vmem:[%s350 + $0xe70] sm:$0xff]
        %v4308 = vld [vmem:[%s350 + $0xe78] sm:$0xff]
        %v4309 = vld [vmem:[%s350 + $0xe80] sm:$0xff]
        %v4310 = vld [vmem:[%s350 + $0xe88] sm:$0xff]
        %v4311 = vld [vmem:[%s350 + $0xe90] sm:$0xff]
        %v4312 = vld [vmem:[%s350 + $0xe98] sm:$0xff]
        %v4313 = vld [vmem:[%s350 + $0xea0] sm:$0xff]
        %v4314 = vld [vmem:[%s350 + $0xea8] sm:$0xff]
        %v4315 = vld [vmem:[%s350 + $0xeb0] sm:$0xff]
        %v4316 = vld [vmem:[%s350 + $0xeb8] sm:$0xff]
        %v4317 = vld [vmem:[%s350 + $0xec0] sm:$0xff]
        %v4318 = vld [vmem:[%s350 + $0xec8] sm:$0xff]
        %v4319 = vld [vmem:[%s350 + $0xed0] sm:$0xff]
        %v4320 = vld [vmem:[%s350 + $0xed8] sm:$0xff]
        %v4321 = vld [vmem:[%s350 + $0xee0] sm:$0xff]
        %v4322 = vld [vmem:[%s350 + $0xee8] sm:$0xff]
        %v4323 = vld [vmem:[%s350 + $0xef0] sm:$0xff]
        %v4324 = vld [vmem:[%s350 + $0xef8] sm:$0xff]
        %v4325 = vld [vmem:[%s350 + $0xf00] sm:$0xff]
        %v4326 = vld [vmem:[%s350 + $0xf08] sm:$0xff]
        %v4327 = vld [vmem:[%s350 + $0xf10] sm:$0xff]
        %v4328 = vld [vmem:[%s350 + $0xf18] sm:$0xff]
        %v4329 = vld [vmem:[%s350 + $0xf20] sm:$0xff]
        %v4330 = vld [vmem:[%s350 + $0xf28] sm:$0xff]
        %v4331 = vld [vmem:[%s350 + $0xf30] sm:$0xff]
        %v4332 = vld [vmem:[%s350 + $0xf38] sm:$0xff]
        %v4333 = vld [vmem:[%s350 + $0xf40] sm:$0xff]
        %v4334 = vld [vmem:[%s350 + $0xf48] sm:$0xff]
        %v4335 = vld [vmem:[%s350 + $0xf50] sm:$0xff]
        %v4336 = vld [vmem:[%s350 + $0xf58] sm:$0xff]
        %v4337 = vld [vmem:[%s350 + $0xf60] sm:$0xff]
        %v4338 = vld [vmem:[%s350 + $0xf68] sm:$0xff]
        %v4339 = vld [vmem:[%s350 + $0xf70] sm:$0xff]
        %v4340 = vld [vmem:[%s350 + $0xf78] sm:$0xff]
        %v4341 = vld [vmem:[%s350 + $0xf80] sm:$0xff]
        %v4342 = vld [vmem:[%s350 + $0xf88] sm:$0xff]
        %v4343 = vld [vmem:[%s350 + $0xf90] sm:$0xff]
        %v4344 = vld [vmem:[%s350 + $0xf98] sm:$0xff]
        %v4345 = vld [vmem:[%s350 + $0xfa0] sm:$0xff]
        %v4346 = vld [vmem:[%s350 + $0xfa8] sm:$0xff]
        %v4347 = vld [vmem:[%s350 + $0xfb0] sm:$0xff]
        %v4348 = vld [vmem:[%s350 + $0xfb8] sm:$0xff]
        %v4349 = vld [vmem:[%s350 + $0xfc0] sm:$0xff]
        %v4350 = vld [vmem:[%s350 + $0xfc8] sm:$0xff]
        %v4351 = vld [vmem:[%s350 + $0xfd0] sm:$0xff]
        %v4352 = vld [vmem:[%s350 + $0xfd8] sm:$0xff]
        %v4353 = vld [vmem:[%s350 + $0xfe0] sm:$0xff]
        %v4354 = vld [vmem:[%s350 + $0xfe8] sm:$0xff]
        %v4355 = vld [vmem:[%s350 + $0xff0] sm:$0xff]
        %v4356 = vld [vmem:[%s350 + $0xff8] sm:$0xff]
        %v4357 = vrot.slane %v734, 7
        %v4358 = vrot.slane %v735, 6
        %v4359 = vsel %vm737, %v4358, %v4357
        %v4360 = vpack.c.b16 %v4359, %v4359
        %v4426 = vunpack.c.l.b16 %v4293
        %v4427 = vunpack.c.h.b16 %v4293
        %v4428 = vunpack.c.l.b16 %v4294
        %v4429 = vunpack.c.h.b16 %v4294
        %v4430 = vunpack.c.l.b16 %v4295
        %v4431 = vunpack.c.h.b16 %v4295
        %v4432 = vunpack.c.l.b16 %v4296
        %v4433 = vunpack.c.h.b16 %v4296
        %v4434 = vunpack.c.l.b16 %v4297
        %v4435 = vunpack.c.h.b16 %v4297
        %v4436 = vunpack.c.l.b16 %v4298
        %v4437 = vunpack.c.h.b16 %v4298
        %v4438 = vunpack.c.l.b16 %v4299
        %v4439 = vunpack.c.h.b16 %v4299
        %v4440 = vunpack.c.l.b16 %v4300
        %v4441 = vunpack.c.h.b16 %v4300
        %v4442 = vunpack.c.l.b16 %v4301
        %v4443 = vunpack.c.h.b16 %v4301
        %v4444 = vunpack.c.l.b16 %v4302
        %v4445 = vunpack.c.h.b16 %v4302
        %v4446 = vunpack.c.l.b16 %v4303
        %v4447 = vunpack.c.h.b16 %v4303
        %v4448 = vunpack.c.l.b16 %v4304
        %v4449 = vunpack.c.h.b16 %v4304
        %v4450 = vunpack.c.l.b16 %v4305
        %v4451 = vunpack.c.h.b16 %v4305
        %v4452 = vunpack.c.l.b16 %v4306
        %v4453 = vunpack.c.h.b16 %v4306
        %v4454 = vunpack.c.l.b16 %v4307
        %v4455 = vunpack.c.h.b16 %v4307
        %v4456 = vunpack.c.l.b16 %v4308
        %v4457 = vunpack.c.h.b16 %v4308
        %v4458 = vunpack.c.l.b16 %v4309
        %v4459 = vunpack.c.h.b16 %v4309
        %v4460 = vunpack.c.l.b16 %v4310
        %v4461 = vunpack.c.h.b16 %v4310
        %v4462 = vunpack.c.l.b16 %v4311
        %v4463 = vunpack.c.h.b16 %v4311
        %v4464 = vunpack.c.l.b16 %v4312
        %v4465 = vunpack.c.h.b16 %v4312
        %v4466 = vunpack.c.l.b16 %v4313
        %v4467 = vunpack.c.h.b16 %v4313
        %v4468 = vunpack.c.l.b16 %v4314
        %v4469 = vunpack.c.h.b16 %v4314
        %v4470 = vunpack.c.l.b16 %v4315
        %v4471 = vunpack.c.h.b16 %v4315
        %v4472 = vunpack.c.l.b16 %v4316
        %v4473 = vunpack.c.h.b16 %v4316
        %v4474 = vunpack.c.l.b16 %v4317
        %v4475 = vunpack.c.h.b16 %v4317
        %v4476 = vunpack.c.l.b16 %v4318
        %v4477 = vunpack.c.h.b16 %v4318
        %v4478 = vunpack.c.l.b16 %v4319
        %v4479 = vunpack.c.h.b16 %v4319
        %v4480 = vunpack.c.l.b16 %v4320
        %v4481 = vunpack.c.h.b16 %v4320
        %v4482 = vunpack.c.l.b16 %v4321
        %v4483 = vunpack.c.h.b16 %v4321
        %v4484 = vunpack.c.l.b16 %v4322
        %v4485 = vunpack.c.h.b16 %v4322
        %v4486 = vunpack.c.l.b16 %v4323
        %v4487 = vunpack.c.h.b16 %v4323
        %v4488 = vunpack.c.l.b16 %v4324
        %v4489 = vunpack.c.h.b16 %v4324
        %v4490 = vunpack.c.l.b16 %v4325
        %v4491 = vunpack.c.h.b16 %v4325
        %v4492 = vunpack.c.l.b16 %v4326
        %v4493 = vunpack.c.h.b16 %v4326
        %v4494 = vunpack.c.l.b16 %v4327
        %v4495 = vunpack.c.h.b16 %v4327
        %v4496 = vunpack.c.l.b16 %v4328
        %v4497 = vunpack.c.h.b16 %v4328
        %v4498 = vunpack.c.l.b16 %v4329
        %v4499 = vunpack.c.h.b16 %v4329
        %v4500 = vunpack.c.l.b16 %v4330
        %v4501 = vunpack.c.h.b16 %v4330
        %v4502 = vunpack.c.l.b16 %v4331
        %v4503 = vunpack.c.h.b16 %v4331
        %v4504 = vunpack.c.l.b16 %v4332
        %v4505 = vunpack.c.h.b16 %v4332
        %v4506 = vunpack.c.l.b16 %v4333
        %v4507 = vunpack.c.h.b16 %v4333
        %v4508 = vunpack.c.l.b16 %v4334
        %v4509 = vunpack.c.h.b16 %v4334
        %v4510 = vunpack.c.l.b16 %v4335
        %v4511 = vunpack.c.h.b16 %v4335
        %v4512 = vunpack.c.l.b16 %v4336
        %v4513 = vunpack.c.h.b16 %v4336
        %v4514 = vunpack.c.l.b16 %v4337
        %v4515 = vunpack.c.h.b16 %v4337
        %v4516 = vunpack.c.l.b16 %v4338
        %v4517 = vunpack.c.h.b16 %v4338
        %v4518 = vunpack.c.l.b16 %v4339
        %v4519 = vunpack.c.h.b16 %v4339
        %v4520 = vunpack.c.l.b16 %v4340
        %v4521 = vunpack.c.h.b16 %v4340
        %v4522 = vunpack.c.l.b16 %v4341
        %v4523 = vunpack.c.h.b16 %v4341
        %v4524 = vunpack.c.l.b16 %v4342
        %v4525 = vunpack.c.h.b16 %v4342
        %v4526 = vunpack.c.l.b16 %v4343
        %v4527 = vunpack.c.h.b16 %v4343
        %v4528 = vunpack.c.l.b16 %v4344
        %v4529 = vunpack.c.h.b16 %v4344
        %v4530 = vunpack.c.l.b16 %v4345
        %v4531 = vunpack.c.h.b16 %v4345
        %v4532 = vunpack.c.l.b16 %v4346
        %v4533 = vunpack.c.h.b16 %v4346
        %v4534 = vunpack.c.l.b16 %v4347
        %v4535 = vunpack.c.h.b16 %v4347
        %v4536 = vunpack.c.l.b16 %v4348
        %v4537 = vunpack.c.h.b16 %v4348
        %v4538 = vunpack.c.l.b16 %v4349
        %v4539 = vunpack.c.h.b16 %v4349
        %v4540 = vunpack.c.l.b16 %v4350
        %v4541 = vunpack.c.h.b16 %v4350
        %v4542 = vunpack.c.l.b16 %v4351
        %v4543 = vunpack.c.h.b16 %v4351
        %v4544 = vunpack.c.l.b16 %v4352
        %v4545 = vunpack.c.h.b16 %v4352
        %v4546 = vunpack.c.l.b16 %v4353
        %v4547 = vunpack.c.h.b16 %v4353
        %v4548 = vunpack.c.l.b16 %v4354
        %v4549 = vunpack.c.h.b16 %v4354
        %v4550 = vunpack.c.l.b16 %v4355
        %v4551 = vunpack.c.h.b16 %v4355
        %v4552 = vunpack.c.l.b16 %v4356
        %v4553 = vunpack.c.h.b16 %v4356
        %v4554 = vpack.c.b16 %v4434, %v4426
        %v4555 = vpack.c.b16 %v4435, %v4427
        %v4556 = vpack.c.b16 %v4436, %v4428
        %v4557 = vpack.c.b16 %v4437, %v4429
        %v4558 = vpack.c.b16 %v4438, %v4430
        %v4559 = vpack.c.b16 %v4439, %v4431
        %v4560 = vpack.c.b16 %v4440, %v4432
        %v4561 = vpack.c.b16 %v4441, %v4433
        %v4562 = vpack.c.b16 %v4450, %v4442
        %v4563 = vpack.c.b16 %v4451, %v4443
        %v4564 = vpack.c.b16 %v4452, %v4444
        %v4565 = vpack.c.b16 %v4453, %v4445
        %v4566 = vpack.c.b16 %v4454, %v4446
        %v4567 = vpack.c.b16 %v4455, %v4447
        %v4568 = vpack.c.b16 %v4456, %v4448
        %v4569 = vpack.c.b16 %v4457, %v4449
        %v4570 = vpack.c.b16 %v4466, %v4458
        %v4571 = vpack.c.b16 %v4467, %v4459
        %v4572 = vpack.c.b16 %v4468, %v4460
        %v4573 = vpack.c.b16 %v4469, %v4461
        %v4574 = vpack.c.b16 %v4470, %v4462
        %v4575 = vpack.c.b16 %v4471, %v4463
        %v4576 = vpack.c.b16 %v4472, %v4464
        %v4577 = vpack.c.b16 %v4473, %v4465
        %v4578 = vpack.c.b16 %v4482, %v4474
        %v4579 = vpack.c.b16 %v4483, %v4475
        %v4580 = vpack.c.b16 %v4484, %v4476
        %v4581 = vpack.c.b16 %v4485, %v4477
        %v4582 = vpack.c.b16 %v4486, %v4478
        %v4583 = vpack.c.b16 %v4487, %v4479
        %v4584 = vpack.c.b16 %v4488, %v4480
        %v4585 = vpack.c.b16 %v4489, %v4481
        %v4586 = vpack.c.b16 %v4498, %v4490
        %v4587 = vpack.c.b16 %v4499, %v4491
        %v4588 = vpack.c.b16 %v4500, %v4492
        %v4589 = vpack.c.b16 %v4501, %v4493
        %v4590 = vpack.c.b16 %v4502, %v4494
        %v4591 = vpack.c.b16 %v4503, %v4495
        %v4592 = vpack.c.b16 %v4504, %v4496
        %v4593 = vpack.c.b16 %v4505, %v4497
        %v4594 = vpack.c.b16 %v4514, %v4506
        %v4595 = vpack.c.b16 %v4515, %v4507
        %v4596 = vpack.c.b16 %v4516, %v4508
        %v4597 = vpack.c.b16 %v4517, %v4509
        %v4598 = vpack.c.b16 %v4518, %v4510
        %v4599 = vpack.c.b16 %v4519, %v4511
        %v4600 = vpack.c.b16 %v4520, %v4512
        %v4601 = vpack.c.b16 %v4521, %v4513
        %v4602 = vpack.c.b16 %v4530, %v4522
        %v4603 = vpack.c.b16 %v4531, %v4523
        %v4604 = vpack.c.b16 %v4532, %v4524
        %v4605 = vpack.c.b16 %v4533, %v4525
        %v4606 = vpack.c.b16 %v4534, %v4526
        %v4607 = vpack.c.b16 %v4535, %v4527
        %v4608 = vpack.c.b16 %v4536, %v4528
        %v4609 = vpack.c.b16 %v4537, %v4529
        %v4610 = vpack.c.b16 %v4546, %v4538
        %v4611 = vpack.c.b16 %v4547, %v4539
        %v4612 = vpack.c.b16 %v4548, %v4540
        %v4613 = vpack.c.b16 %v4549, %v4541
        %v4614 = vpack.c.b16 %v4550, %v4542
        %v4615 = vpack.c.b16 %v4551, %v4543
        %v4616 = vpack.c.b16 %v4552, %v4544
        %v4617 = vpack.c.b16 %v4553, %v4545
        %4682 = vmatpush.bf16.msra.mxu0 %v4610
        %4683 = vmatpush.bf16.msra.mxu0 %v4602
        %4684 = vmatpush.bf16.msra.mxu0 %v4594
        %4685 = vmatpush.bf16.msra.mxu0 %v4586
        %4686 = vmatpush.bf16.msra.mxu0 %v4578
        %4687 = vmatpush.bf16.msra.mxu0 %v4570
        %4688 = vmatpush.bf16.msra.mxu0 %v4562
        %4689 = vmatpush.bf16.msra.mxu0 %v4554
        %4690 = vmatmul.bf16.gmra.mxu0 %v4360
        %v4691 = vpop.f32.mrf.mxu0
        %v4692 = vadd.f32 0.0, %v4691
        %v4693 = vpop.f32.mrf.mxu0
        %4694 = vdwg.mxu0
        %4695 = vmatpush.bf16.msra.mxu0 %v4611
        %4696 = vmatpush.bf16.msra.mxu0 %v4603
        %4697 = vmatpush.bf16.msra.mxu0 %v4595
        %4698 = vmatpush.bf16.msra.mxu0 %v4587
        %4699 = vmatpush.bf16.msra.mxu0 %v4579
        %4700 = vmatpush.bf16.msra.mxu0 %v4571
        %4701 = vmatpush.bf16.msra.mxu0 %v4563
        %4702 = vmatpush.bf16.msra.mxu0 %v4555
        %4703 = vmatmul.bf16.gmra.mxu0 %v4360
        %v4704 = vpop.f32.mrf.mxu0
        %v4705 = vadd.f32 0.0, %v4704
        %v4706 = vpop.f32.mrf.mxu0
        %4707 = vdwg.mxu0
        %4708 = vmatpush.bf16.msra.mxu0 %v4612
        %4709 = vmatpush.bf16.msra.mxu0 %v4604
        %4710 = vmatpush.bf16.msra.mxu0 %v4596
        %4711 = vmatpush.bf16.msra.mxu0 %v4588
        %4712 = vmatpush.bf16.msra.mxu0 %v4580
        %4713 = vmatpush.bf16.msra.mxu0 %v4572
        %4714 = vmatpush.bf16.msra.mxu0 %v4564
        %4715 = vmatpush.bf16.msra.mxu0 %v4556
        %4716 = vmatmul.bf16.gmra.mxu0 %v4360
        %v4717 = vpop.f32.mrf.mxu0
        %v4718 = vadd.f32 0.0, %v4717
        %v4719 = vpop.f32.mrf.mxu0
        %4720 = vdwg.mxu0
        %4721 = vmatpush.bf16.msra.mxu0 %v4613
        %4722 = vmatpush.bf16.msra.mxu0 %v4605
        %4723 = vmatpush.bf16.msra.mxu0 %v4597
        %4724 = vmatpush.bf16.msra.mxu0 %v4589
        %4725 = vmatpush.bf16.msra.mxu0 %v4581
        %4726 = vmatpush.bf16.msra.mxu0 %v4573
        %4727 = vmatpush.bf16.msra.mxu0 %v4565
        %4728 = vmatpush.bf16.msra.mxu0 %v4557
        %4729 = vmatmul.bf16.gmra.mxu0 %v4360
        %v4730 = vpop.f32.mrf.mxu0
        %v4731 = vadd.f32 0.0, %v4730
        %v4732 = vpop.f32.mrf.mxu0
        %4733 = vdwg.mxu0
        %4734 = vmatpush.bf16.msra.mxu0 %v4614
        %4735 = vmatpush.bf16.msra.mxu0 %v4606
        %4736 = vmatpush.bf16.msra.mxu0 %v4598
        %4737 = vmatpush.bf16.msra.mxu0 %v4590
        %4738 = vmatpush.bf16.msra.mxu0 %v4582
        %4739 = vmatpush.bf16.msra.mxu0 %v4574
        %4740 = vmatpush.bf16.msra.mxu0 %v4566
        %4741 = vmatpush.bf16.msra.mxu0 %v4558
        %4742 = vmatmul.bf16.gmra.mxu0 %v4360
        %v4743 = vpop.f32.mrf.mxu0
        %v4744 = vadd.f32 0.0, %v4743
        %v4745 = vpop.f32.mrf.mxu0
        %4746 = vdwg.mxu0
        %4747 = vmatpush.bf16.msra.mxu0 %v4615
        %4748 = vmatpush.bf16.msra.mxu0 %v4607
        %4749 = vmatpush.bf16.msra.mxu0 %v4599
        %4750 = vmatpush.bf16.msra.mxu0 %v4591
        %4751 = vmatpush.bf16.msra.mxu0 %v4583
        %4752 = vmatpush.bf16.msra.mxu0 %v4575
        %4753 = vmatpush.bf16.msra.mxu0 %v4567
        %4754 = vmatpush.bf16.msra.mxu0 %v4559
        %4755 = vmatmul.bf16.gmra.mxu0 %v4360
        %v4756 = vpop.f32.mrf.mxu0
        %v4757 = vadd.f32 0.0, %v4756
        %v4758 = vpop.f32.mrf.mxu0
        %4759 = vdwg.mxu0
        %4760 = vmatpush.bf16.msra.mxu0 %v4616
        %4761 = vmatpush.bf16.msra.mxu0 %v4608
        %4762 = vmatpush.bf16.msra.mxu0 %v4600
        %4763 = vmatpush.bf16.msra.mxu0 %v4592
        %4764 = vmatpush.bf16.msra.mxu0 %v4584
        %4765 = vmatpush.bf16.msra.mxu0 %v4576
        %4766 = vmatpush.bf16.msra.mxu0 %v4568
        %4767 = vmatpush.bf16.msra.mxu0 %v4560
        %4768 = vmatmul.bf16.gmra.mxu0 %v4360
        %v4769 = vpop.f32.mrf.mxu0
        %v4770 = vadd.f32 0.0, %v4769
        %v4771 = vpop.f32.mrf.mxu0
        %4772 = vdwg.mxu0
        %4773 = vmatpush.bf16.msra.mxu0 %v4617
        %4774 = vmatpush.bf16.msra.mxu0 %v4609
        %4775 = vmatpush.bf16.msra.mxu0 %v4601
        %4776 = vmatpush.bf16.msra.mxu0 %v4593
        %4777 = vmatpush.bf16.msra.mxu0 %v4585
        %4778 = vmatpush.bf16.msra.mxu0 %v4577
        %4779 = vmatpush.bf16.msra.mxu0 %v4569
        %4780 = vmatpush.bf16.msra.mxu0 %v4561
        %4781 = vmatmul.bf16.gmra.mxu0 %v4360
        %v4782 = vpop.f32.mrf.mxu0
        %v4783 = vadd.f32 0.0, %v4782
        %v4784 = vpop.f32.mrf.mxu0
        %4785 = vdwg.mxu0
        %v4794 = vrot.slane %v4705, 6
        %v4795 = vrot.slane %v4718, 4
        %v4796 = vrot.slane %v4731, 2
        %v4797 = vrot.slane %v4757, 6
        %v4798 = vrot.slane %v4770, 4
        %v4799 = vrot.slane %v4783, 2
        %v4800 = vsel %vm1179, %v4692, %v4794
        %v4801 = vsel %vm1181, %v4795, %v4796
        %v4802 = vsel %vm1183, %v4800, %v4801
        %v4803 = vsel %vm1179, %v4744, %v4797
        %v4804 = vsel %vm1181, %v4798, %v4799
        %v4805 = vsel %vm1183, %v4803, %v4804
        %v4808 = vadd.f32 %v4291, %v4802
        %v4809 = vadd.f32 %v4292, %v4805
        %4810 = vst [vmem:[#allocation3] sm:$0xff] %v4808
        %4811 = vst [vmem:[#allocation3 + $0x8] sm:$0xff] %v4809
        %p4812 = scmp.eq.s32.totalorder %s26, 1
        // Predicated region
        $region81: #{inception_aux_forward.1} parent=51 // pred_check
          %p4813 = pneg %p4812
        $region82: #{inception_aux_forward.1} parent=51 // pred_check_branch
          %4815 = sbr.rel (%p4813) target = $region84
        $region83: #{inception_aux_forward.1} parent=51 // pred_region
          %v4816 = vld [vmem:[#allocation3] sm:$0xff]
          %v4817 = vld [vmem:[#allocation3 + $0x8] sm:$0xff]
          %v4818 = vmax.f32 %v4816, 0.0
          %v4819 = vmax.f32 %v4817, 0.0
          %4822 = vst [vmem:[#allocation1] ss:$4 sm:$0xff] %v4818
          %s4823 = scalar_lea.vmem [#allocation1], 32
          %4824 = vst [vmem:[%s4823] ss:$4 sm:$0xff] %v4819
          %v4825 = vld.sshfl [vmem:[#allocation1] sm:$0xff pattern:$0x73625140]
          %v4826 = vld.sshfl [vmem:[#allocation1 + $0x8] sm:$0xff pattern:$0x73625140]
          %v4827 = vld.sshfl [vmem:[#allocation1 + $0x10] sm:$0xff pattern:$0x73625140]
          %v4828 = vld.sshfl [vmem:[#allocation1 + $0x18] sm:$0xff pattern:$0x73625140]
          %v4829 = vld.sshfl [vmem:[#allocation1 + $0x20] sm:$0xff pattern:$0x73625140]
          %v4830 = vld.sshfl [vmem:[#allocation1 + $0x28] sm:$0xff pattern:$0x73625140]
          %v4831 = vld.sshfl [vmem:[#allocation1 + $0x30] sm:$0xff pattern:$0x73625140]
          %v4832 = vld.sshfl [vmem:[#allocation1 + $0x38] sm:$0xff pattern:$0x73625140]
          %v4841 = vpack.c.bf16 %v4825, %v4825
          %v4842 = vpack.c.bf16 %v4826, %v4826
          %v4843 = vpack.c.bf16 %v4827, %v4827
          %v4844 = vpack.c.bf16 %v4828, %v4828
          %v4845 = vpack.c.bf16 %v4829, %v4829
          %v4846 = vpack.c.bf16 %v4830, %v4830
          %v4847 = vpack.c.bf16 %v4831, %v4831
          %v4848 = vpack.c.bf16 %v4832, %v4832
          %v4849 = vld [vmem:[%s6] sm:$0xf]
          %v4850 = vld [vmem:[%s6 + $0x4] sm:$0xf]
          %v4851 = vld [vmem:[%s6 + $0x8] sm:$0xf]
          %v4852 = vld [vmem:[%s6 + $0xc] sm:$0xf]
          %v4853 = vld [vmem:[%s6 + $0x10] sm:$0xf]
          %v4854 = vld [vmem:[%s6 + $0x14] sm:$0xf]
          %v4855 = vld [vmem:[%s6 + $0x18] sm:$0xf]
          %v4856 = vld [vmem:[%s6 + $0x1c] sm:$0xf]
          %v4857 = vld [vmem:[%s6 + $0x20] sm:$0xf]
          %v4858 = vld [vmem:[%s6 + $0x24] sm:$0xf]
          %v4859 = vld [vmem:[%s6 + $0x28] sm:$0xf]
          %v4860 = vld [vmem:[%s6 + $0x2c] sm:$0xf]
          %v4861 = vld [vmem:[%s6 + $0x30] sm:$0xf]
          %v4862 = vld [vmem:[%s6 + $0x34] sm:$0xf]
          %v4863 = vld [vmem:[%s6 + $0x38] sm:$0xf]
          %v4864 = vld [vmem:[%s6 + $0x3c] sm:$0xf]
          %v4865 = vld [vmem:[%s6 + $0x40] sm:$0xf]
          %v4866 = vld [vmem:[%s6 + $0x44] sm:$0xf]
          %v4867 = vld [vmem:[%s6 + $0x48] sm:$0xf]
          %v4868 = vld [vmem:[%s6 + $0x4c] sm:$0xf]
          %v4869 = vld [vmem:[%s6 + $0x50] sm:$0xf]
          %v4870 = vld [vmem:[%s6 + $0x54] sm:$0xf]
          %v4871 = vld [vmem:[%s6 + $0x58] sm:$0xf]
          %v4872 = vld [vmem:[%s6 + $0x5c] sm:$0xf]
          %v4873 = vld [vmem:[%s6 + $0x60] sm:$0xf]
          %v4874 = vld [vmem:[%s6 + $0x64] sm:$0xf]
          %v4875 = vld [vmem:[%s6 + $0x68] sm:$0xf]
          %v4876 = vld [vmem:[%s6 + $0x6c] sm:$0xf]
          %v4877 = vld [vmem:[%s6 + $0x70] sm:$0xf]
          %v4878 = vld [vmem:[%s6 + $0x74] sm:$0xf]
          %v4879 = vld [vmem:[%s6 + $0x78] sm:$0xf]
          %v4880 = vld [vmem:[%s6 + $0x7c] sm:$0xf]
          %v4881 = vld [vmem:[%s6 + $0x80] sm:$0xf]
          %v4882 = vld [vmem:[%s6 + $0x84] sm:$0xf]
          %v4883 = vld [vmem:[%s6 + $0x88] sm:$0xf]
          %v4884 = vld [vmem:[%s6 + $0x8c] sm:$0xf]
          %v4885 = vld [vmem:[%s6 + $0x90] sm:$0xf]
          %v4886 = vld [vmem:[%s6 + $0x94] sm:$0xf]
          %v4887 = vld [vmem:[%s6 + $0x98] sm:$0xf]
          %v4888 = vld [vmem:[%s6 + $0x9c] sm:$0xf]
          %v4889 = vld [vmem:[%s6 + $0xa0] sm:$0xf]
          %v4890 = vld [vmem:[%s6 + $0xa4] sm:$0xf]
          %v4891 = vld [vmem:[%s6 + $0xa8] sm:$0xf]
          %v4892 = vld [vmem:[%s6 + $0xac] sm:$0xf]
          %v4893 = vld [vmem:[%s6 + $0xb0] sm:$0xf]
          %v4894 = vld [vmem:[%s6 + $0xb4] sm:$0xf]
          %v4895 = vld [vmem:[%s6 + $0xb8] sm:$0xf]
          %v4896 = vld [vmem:[%s6 + $0xbc] sm:$0xf]
          %v4897 = vld [vmem:[%s6 + $0xc0] sm:$0xf]
          %v4898 = vld [vmem:[%s6 + $0xc4] sm:$0xf]
          %v4899 = vld [vmem:[%s6 + $0xc8] sm:$0xf]
          %v4900 = vld [vmem:[%s6 + $0xcc] sm:$0xf]
          %v4901 = vld [vmem:[%s6 + $0xd0] sm:$0xf]
          %v4902 = vld [vmem:[%s6 + $0xd4] sm:$0xf]
          %v4903 = vld [vmem:[%s6 + $0xd8] sm:$0xf]
          %v4904 = vld [vmem:[%s6 + $0xdc] sm:$0xf]
          %v4905 = vld [vmem:[%s6 + $0xe0] sm:$0xf]
          %v4906 = vld [vmem:[%s6 + $0xe4] sm:$0xf]
          %v4907 = vld [vmem:[%s6 + $0xe8] sm:$0xf]
          %v4908 = vld [vmem:[%s6 + $0xec] sm:$0xf]
          %v4909 = vld [vmem:[%s6 + $0xf0] sm:$0xf]
          %v4910 = vld [vmem:[%s6 + $0xf4] sm:$0xf]
          %v4911 = vld [vmem:[%s6 + $0xf8] sm:$0xf]
          %v4912 = vld [vmem:[%s6 + $0xfc] sm:$0xf]
          %v4913 = vld [vmem:[%s6 + $0x100] sm:$0xf]
          %v4914 = vld [vmem:[%s6 + $0x104] sm:$0xf]
          %v4915 = vld [vmem:[%s6 + $0x108] sm:$0xf]
          %v4916 = vld [vmem:[%s6 + $0x10c] sm:$0xf]
          %v4917 = vld [vmem:[%s6 + $0x110] sm:$0xf]
          %v4918 = vld [vmem:[%s6 + $0x114] sm:$0xf]
          %v4919 = vld [vmem:[%s6 + $0x118] sm:$0xf]
          %v4920 = vld [vmem:[%s6 + $0x11c] sm:$0xf]
          %v4921 = vld [vmem:[%s6 + $0x120] sm:$0xf]
          %v4922 = vld [vmem:[%s6 + $0x124] sm:$0xf]
          %v4923 = vld [vmem:[%s6 + $0x128] sm:$0xf]
          %v4924 = vld [vmem:[%s6 + $0x12c] sm:$0xf]
          %v4925 = vld [vmem:[%s6 + $0x130] sm:$0xf]
          %v4926 = vld [vmem:[%s6 + $0x134] sm:$0xf]
          %v4927 = vld [vmem:[%s6 + $0x138] sm:$0xf]
          %v4928 = vld [vmem:[%s6 + $0x13c] sm:$0xf]
          %v4929 = vld [vmem:[%s6 + $0x140] sm:$0xf]
          %v4930 = vld [vmem:[%s6 + $0x144] sm:$0xf]
          %v4931 = vld [vmem:[%s6 + $0x148] sm:$0xf]
          %v4932 = vld [vmem:[%s6 + $0x14c] sm:$0xf]
          %v4933 = vld [vmem:[%s6 + $0x150] sm:$0xf]
          %v4934 = vld [vmem:[%s6 + $0x154] sm:$0xf]
          %v4935 = vld [vmem:[%s6 + $0x158] sm:$0xf]
          %v4936 = vld [vmem:[%s6 + $0x15c] sm:$0xf]
          %v4937 = vld [vmem:[%s6 + $0x160] sm:$0xf]
          %v4938 = vld [vmem:[%s6 + $0x164] sm:$0xf]
          %v4939 = vld [vmem:[%s6 + $0x168] sm:$0xf]
          %v4940 = vld [vmem:[%s6 + $0x16c] sm:$0xf]
          %v4941 = vld [vmem:[%s6 + $0x170] sm:$0xf]
          %v4942 = vld [vmem:[%s6 + $0x174] sm:$0xf]
          %v4943 = vld [vmem:[%s6 + $0x178] sm:$0xf]
          %v4944 = vld [vmem:[%s6 + $0x17c] sm:$0xf]
          %v4945 = vld [vmem:[%s6 + $0x180] sm:$0xf]
          %v4946 = vld [vmem:[%s6 + $0x184] sm:$0xf]
          %v4947 = vld [vmem:[%s6 + $0x188] sm:$0xf]
          %v4948 = vld [vmem:[%s6 + $0x18c] sm:$0xf]
          %v4949 = vld [vmem:[%s6 + $0x190] sm:$0xf]
          %v4950 = vld [vmem:[%s6 + $0x194] sm:$0xf]
          %v4951 = vld [vmem:[%s6 + $0x198] sm:$0xf]
          %v4952 = vld [vmem:[%s6 + $0x19c] sm:$0xf]
          %v4953 = vld [vmem:[%s6 + $0x1a0] sm:$0xf]
          %v4954 = vld [vmem:[%s6 + $0x1a4] sm:$0xf]
          %v4955 = vld [vmem:[%s6 + $0x1a8] sm:$0xf]
          %v4956 = vld [vmem:[%s6 + $0x1ac] sm:$0xf]
          %v4957 = vld [vmem:[%s6 + $0x1b0] sm:$0xf]
          %v4958 = vld [vmem:[%s6 + $0x1b4] sm:$0xf]
          %v4959 = vld [vmem:[%s6 + $0x1b8] sm:$0xf]
          %v4960 = vld [vmem:[%s6 + $0x1bc] sm:$0xf]
          %v4961 = vld [vmem:[%s6 + $0x1c0] sm:$0xf]
          %v4962 = vld [vmem:[%s6 + $0x1c4] sm:$0xf]
          %v4963 = vld [vmem:[%s6 + $0x1c8] sm:$0xf]
          %v4964 = vld [vmem:[%s6 + $0x1cc] sm:$0xf]
          %v4965 = vld [vmem:[%s6 + $0x1d0] sm:$0xf]
          %v4966 = vld [vmem:[%s6 + $0x1d4] sm:$0xf]
          %v4967 = vld [vmem:[%s6 + $0x1d8] sm:$0xf]
          %v4968 = vld [vmem:[%s6 + $0x1dc] sm:$0xf]
          %v4969 = vld [vmem:[%s6 + $0x1e0] sm:$0xf]
          %v4970 = vld [vmem:[%s6 + $0x1e4] sm:$0xf]
          %v4971 = vld [vmem:[%s6 + $0x1e8] sm:$0xf]
          %v4972 = vld [vmem:[%s6 + $0x1ec] sm:$0xf]
          %v4973 = vld [vmem:[%s6 + $0x1f0] sm:$0xf]
          %v4974 = vld [vmem:[%s6 + $0x1f4] sm:$0xf]
          %v4975 = vld [vmem:[%s6 + $0x1f8] sm:$0xf]
          %v4976 = vld [vmem:[%s6 + $0x1fc] sm:$0xf]
          %v4977 = vld [vmem:[#allocation13] sm:$0x1]
          %v4979 = vperm.slane %v4977, 0
          %v5109 = vunpack.c.l.b16 %v4849
          %v5110 = vunpack.c.l.b16 %v4850
          %v5111 = vunpack.c.l.b16 %v4851
          %v5112 = vunpack.c.l.b16 %v4852
          %v5113 = vunpack.c.l.b16 %v4853
          %v5114 = vunpack.c.l.b16 %v4854
          %v5115 = vunpack.c.l.b16 %v4855
          %v5116 = vunpack.c.l.b16 %v4856
          %v5117 = vunpack.c.l.b16 %v4857
          %v5118 = vunpack.c.l.b16 %v4858
          %v5119 = vunpack.c.l.b16 %v4859
          %v5120 = vunpack.c.l.b16 %v4860
          %v5121 = vunpack.c.l.b16 %v4861
          %v5122 = vunpack.c.l.b16 %v4862
          %v5123 = vunpack.c.l.b16 %v4863
          %v5124 = vunpack.c.l.b16 %v4864
          %v5125 = vunpack.c.l.b16 %v4865
          %v5126 = vunpack.c.l.b16 %v4866
          %v5127 = vunpack.c.l.b16 %v4867
          %v5128 = vunpack.c.l.b16 %v4868
          %v5129 = vunpack.c.l.b16 %v4869
          %v5130 = vunpack.c.l.b16 %v4870
          %v5131 = vunpack.c.l.b16 %v4871
          %v5132 = vunpack.c.l.b16 %v4872
          %v5133 = vunpack.c.l.b16 %v4873
          %v5134 = vunpack.c.l.b16 %v4874
          %v5135 = vunpack.c.l.b16 %v4875
          %v5136 = vunpack.c.l.b16 %v4876
          %v5137 = vunpack.c.l.b16 %v4877
          %v5138 = vunpack.c.l.b16 %v4878
          %v5139 = vunpack.c.l.b16 %v4879
          %v5140 = vunpack.c.l.b16 %v4880
          %v5141 = vunpack.c.l.b16 %v4881
          %v5142 = vunpack.c.l.b16 %v4882
          %v5143 = vunpack.c.l.b16 %v4883
          %v5144 = vunpack.c.l.b16 %v4884
          %v5145 = vunpack.c.l.b16 %v4885
          %v5146 = vunpack.c.l.b16 %v4886
          %v5147 = vunpack.c.l.b16 %v4887
          %v5148 = vunpack.c.l.b16 %v4888
          %v5149 = vunpack.c.l.b16 %v4889
          %v5150 = vunpack.c.l.b16 %v4890
          %v5151 = vunpack.c.l.b16 %v4891
          %v5152 = vunpack.c.l.b16 %v4892
          %v5153 = vunpack.c.l.b16 %v4893
          %v5154 = vunpack.c.l.b16 %v4894
          %v5155 = vunpack.c.l.b16 %v4895
          %v5156 = vunpack.c.l.b16 %v4896
          %v5157 = vunpack.c.l.b16 %v4897
          %v5158 = vunpack.c.l.b16 %v4898
          %v5159 = vunpack.c.l.b16 %v4899
          %v5160 = vunpack.c.l.b16 %v4900
          %v5161 = vunpack.c.l.b16 %v4901
          %v5162 = vunpack.c.l.b16 %v4902
          %v5163 = vunpack.c.l.b16 %v4903
          %v5164 = vunpack.c.l.b16 %v4904
          %v5165 = vunpack.c.l.b16 %v4905
          %v5166 = vunpack.c.l.b16 %v4906
          %v5167 = vunpack.c.l.b16 %v4907
          %v5168 = vunpack.c.l.b16 %v4908
          %v5169 = vunpack.c.l.b16 %v4909
          %v5170 = vunpack.c.l.b16 %v4910
          %v5171 = vunpack.c.l.b16 %v4911
          %v5172 = vunpack.c.l.b16 %v4912
          %v5173 = vunpack.c.l.b16 %v4913
          %v5174 = vunpack.c.l.b16 %v4914
          %v5175 = vunpack.c.l.b16 %v4915
          %v5176 = vunpack.c.l.b16 %v4916
          %v5177 = vunpack.c.l.b16 %v4917
          %v5178 = vunpack.c.l.b16 %v4918
          %v5179 = vunpack.c.l.b16 %v4919
          %v5180 = vunpack.c.l.b16 %v4920
          %v5181 = vunpack.c.l.b16 %v4921
          %v5182 = vunpack.c.l.b16 %v4922
          %v5183 = vunpack.c.l.b16 %v4923
          %v5184 = vunpack.c.l.b16 %v4924
          %v5185 = vunpack.c.l.b16 %v4925
          %v5186 = vunpack.c.l.b16 %v4926
          %v5187 = vunpack.c.l.b16 %v4927
          %v5188 = vunpack.c.l.b16 %v4928
          %v5189 = vunpack.c.l.b16 %v4929
          %v5190 = vunpack.c.l.b16 %v4930
          %v5191 = vunpack.c.l.b16 %v4931
          %v5192 = vunpack.c.l.b16 %v4932
          %v5193 = vunpack.c.l.b16 %v4933
          %v5194 = vunpack.c.l.b16 %v4934
          %v5195 = vunpack.c.l.b16 %v4935
          %v5196 = vunpack.c.l.b16 %v4936
          %v5197 = vunpack.c.l.b16 %v4937
          %v5198 = vunpack.c.l.b16 %v4938
          %v5199 = vunpack.c.l.b16 %v4939
          %v5200 = vunpack.c.l.b16 %v4940
          %v5201 = vunpack.c.l.b16 %v4941
          %v5202 = vunpack.c.l.b16 %v4942
          %v5203 = vunpack.c.l.b16 %v4943
          %v5204 = vunpack.c.l.b16 %v4944
          %v5205 = vunpack.c.l.b16 %v4945
          %v5206 = vunpack.c.l.b16 %v4946
          %v5207 = vunpack.c.l.b16 %v4947
          %v5208 = vunpack.c.l.b16 %v4948
          %v5209 = vunpack.c.l.b16 %v4949
          %v5210 = vunpack.c.l.b16 %v4950
          %v5211 = vunpack.c.l.b16 %v4951
          %v5212 = vunpack.c.l.b16 %v4952
          %v5213 = vunpack.c.l.b16 %v4953
          %v5214 = vunpack.c.l.b16 %v4954
          %v5215 = vunpack.c.l.b16 %v4955
          %v5216 = vunpack.c.l.b16 %v4956
          %v5217 = vunpack.c.l.b16 %v4957
          %v5218 = vunpack.c.l.b16 %v4958
          %v5219 = vunpack.c.l.b16 %v4959
          %v5220 = vunpack.c.l.b16 %v4960
          %v5221 = vunpack.c.l.b16 %v4961
          %v5222 = vunpack.c.l.b16 %v4962
          %v5223 = vunpack.c.l.b16 %v4963
          %v5224 = vunpack.c.l.b16 %v4964
          %v5225 = vunpack.c.l.b16 %v4965
          %v5226 = vunpack.c.l.b16 %v4966
          %v5227 = vunpack.c.l.b16 %v4967
          %v5228 = vunpack.c.l.b16 %v4968
          %v5229 = vunpack.c.l.b16 %v4969
          %v5230 = vunpack.c.l.b16 %v4970
          %v5231 = vunpack.c.l.b16 %v4971
          %v5232 = vunpack.c.l.b16 %v4972
          %v5233 = vunpack.c.l.b16 %v4973
          %v5234 = vunpack.c.l.b16 %v4974
          %v5235 = vunpack.c.l.b16 %v4975
          %v5236 = vunpack.c.l.b16 %v4976
          %v5237 = vpack.c.b16 %v5110, %v5109
          %v5238 = vpack.c.b16 %v5112, %v5111
          %v5239 = vpack.c.b16 %v5114, %v5113
          %v5240 = vpack.c.b16 %v5116, %v5115
          %v5241 = vpack.c.b16 %v5118, %v5117
          %v5242 = vpack.c.b16 %v5120, %v5119
          %v5243 = vpack.c.b16 %v5122, %v5121
          %v5244 = vpack.c.b16 %v5124, %v5123
          %v5245 = vpack.c.b16 %v5126, %v5125
          %v5246 = vpack.c.b16 %v5128, %v5127
          %v5247 = vpack.c.b16 %v5130, %v5129
          %v5248 = vpack.c.b16 %v5132, %v5131
          %v5249 = vpack.c.b16 %v5134, %v5133
          %v5250 = vpack.c.b16 %v5136, %v5135
          %v5251 = vpack.c.b16 %v5138, %v5137
          %v5252 = vpack.c.b16 %v5140, %v5139
          %v5253 = vpack.c.b16 %v5142, %v5141
          %v5254 = vpack.c.b16 %v5144, %v5143
          %v5255 = vpack.c.b16 %v5146, %v5145
          %v5256 = vpack.c.b16 %v5148, %v5147
          %v5257 = vpack.c.b16 %v5150, %v5149
          %v5258 = vpack.c.b16 %v5152, %v5151
          %v5259 = vpack.c.b16 %v5154, %v5153
          %v5260 = vpack.c.b16 %v5156, %v5155
          %v5261 = vpack.c.b16 %v5158, %v5157
          %v5262 = vpack.c.b16 %v5160, %v5159
          %v5263 = vpack.c.b16 %v5162, %v5161
          %v5264 = vpack.c.b16 %v5164, %v5163
          %v5265 = vpack.c.b16 %v5166, %v5165
          %v5266 = vpack.c.b16 %v5168, %v5167
          %v5267 = vpack.c.b16 %v5170, %v5169
          %v5268 = vpack.c.b16 %v5172, %v5171
          %v5269 = vpack.c.b16 %v5174, %v5173
          %v5270 = vpack.c.b16 %v5176, %v5175
          %v5271 = vpack.c.b16 %v5178, %v5177
          %v5272 = vpack.c.b16 %v5180, %v5179
          %v5273 = vpack.c.b16 %v5182, %v5181
          %v5274 = vpack.c.b16 %v5184, %v5183
          %v5275 = vpack.c.b16 %v5186, %v5185
          %v5276 = vpack.c.b16 %v5188, %v5187
          %v5277 = vpack.c.b16 %v5190, %v5189
          %v5278 = vpack.c.b16 %v5192, %v5191
          %v5279 = vpack.c.b16 %v5194, %v5193
          %v5280 = vpack.c.b16 %v5196, %v5195
          %v5281 = vpack.c.b16 %v5198, %v5197
          %v5282 = vpack.c.b16 %v5200, %v5199
          %v5283 = vpack.c.b16 %v5202, %v5201
          %v5284 = vpack.c.b16 %v5204, %v5203
          %v5285 = vpack.c.b16 %v5206, %v5205
          %v5286 = vpack.c.b16 %v5208, %v5207
          %v5287 = vpack.c.b16 %v5210, %v5209
          %v5288 = vpack.c.b16 %v5212, %v5211
          %v5289 = vpack.c.b16 %v5214, %v5213
          %v5290 = vpack.c.b16 %v5216, %v5215
          %v5291 = vpack.c.b16 %v5218, %v5217
          %v5292 = vpack.c.b16 %v5220, %v5219
          %v5293 = vpack.c.b16 %v5222, %v5221
          %v5294 = vpack.c.b16 %v5224, %v5223
          %v5295 = vpack.c.b16 %v5226, %v5225
          %v5296 = vpack.c.b16 %v5228, %v5227
          %v5297 = vpack.c.b16 %v5230, %v5229
          %v5298 = vpack.c.b16 %v5232, %v5231
          %v5299 = vpack.c.b16 %v5234, %v5233
          %v5300 = vpack.c.b16 %v5236, %v5235
          %5365 = vmatpush.bf16.msra.mxu0 %v5244
          %5366 = vmatpush.bf16.msra.mxu0 %v5243
          %5367 = vmatpush.bf16.msra.mxu0 %v5242
          %5368 = vmatpush.bf16.msra.mxu0 %v5241
          %5369 = vmatpush.bf16.msra.mxu0 %v5240
          %5370 = vmatpush.bf16.msra.mxu0 %v5239
          %5371 = vmatpush.bf16.msra.mxu0 %v5238
          %5372 = vmatpush.bf16.msra.mxu0 %v5237
          %5373 = vmatmul.bf16.gmra.mxu0 %v4841
          %v5374 = vpop.f32.mrf.mxu0
          %v5375 = vadd.f32 %v4979, %v5374
          %v5376 = vpop.f32.mrf.mxu0
          %5377 = vdwg.mxu0
          %5378 = vmatpush.bf16.msra.mxu0 %v5252
          %5379 = vmatpush.bf16.msra.mxu0 %v5251
          %5380 = vmatpush.bf16.msra.mxu0 %v5250
          %5381 = vmatpush.bf16.msra.mxu0 %v5249
          %5382 = vmatpush.bf16.msra.mxu0 %v5248
          %5383 = vmatpush.bf16.msra.mxu0 %v5247
          %5384 = vmatpush.bf16.msra.mxu0 %v5246
          %5385 = vmatpush.bf16.msra.mxu0 %v5245
          %5386 = vmatmul.bf16.gmra.mxu0 %v4842
          %v5387 = vpop.f32.mrf.mxu0
          %v5388 = vadd.f32 %v5375, %v5387
          %v5389 = vpop.f32.mrf.mxu0
          %5390 = vdwg.mxu0
          %5391 = vmatpush.bf16.msra.mxu0 %v5260
          %5392 = vmatpush.bf16.msra.mxu0 %v5259
          %5393 = vmatpush.bf16.msra.mxu0 %v5258
          %5394 = vmatpush.bf16.msra.mxu0 %v5257
          %5395 = vmatpush.bf16.msra.mxu0 %v5256
          %5396 = vmatpush.bf16.msra.mxu0 %v5255
          %5397 = vmatpush.bf16.msra.mxu0 %v5254
          %5398 = vmatpush.bf16.msra.mxu0 %v5253
          %5399 = vmatmul.bf16.gmra.mxu0 %v4843
          %v5400 = vpop.f32.mrf.mxu0
          %v5401 = vadd.f32 %v5388, %v5400
          %v5402 = vpop.f32.mrf.mxu0
          %5403 = vdwg.mxu0
          %5404 = vmatpush.bf16.msra.mxu0 %v5268
          %5405 = vmatpush.bf16.msra.mxu0 %v5267
          %5406 = vmatpush.bf16.msra.mxu0 %v5266
          %5407 = vmatpush.bf16.msra.mxu0 %v5265
          %5408 = vmatpush.bf16.msra.mxu0 %v5264
          %5409 = vmatpush.bf16.msra.mxu0 %v5263
          %5410 = vmatpush.bf16.msra.mxu0 %v5262
          %5411 = vmatpush.bf16.msra.mxu0 %v5261
          %5412 = vmatmul.bf16.gmra.mxu0 %v4844
          %v5413 = vpop.f32.mrf.mxu0
          %v5414 = vadd.f32 %v5401, %v5413
          %v5415 = vpop.f32.mrf.mxu0
          %5416 = vdwg.mxu0
          %5417 = vmatpush.bf16.msra.mxu0 %v5276
          %5418 = vmatpush.bf16.msra.mxu0 %v5275
          %5419 = vmatpush.bf16.msra.mxu0 %v5274
          %5420 = vmatpush.bf16.msra.mxu0 %v5273
          %5421 = vmatpush.bf16.msra.mxu0 %v5272
          %5422 = vmatpush.bf16.msra.mxu0 %v5271
          %5423 = vmatpush.bf16.msra.mxu0 %v5270
          %5424 = vmatpush.bf16.msra.mxu0 %v5269
          %5425 = vmatmul.bf16.gmra.mxu0 %v4845
          %v5426 = vpop.f32.mrf.mxu0
          %v5427 = vadd.f32 %v5414, %v5426
          %v5428 = vpop.f32.mrf.mxu0
          %5429 = vdwg.mxu0
          %5430 = vmatpush.bf16.msra.mxu0 %v5284
          %5431 = vmatpush.bf16.msra.mxu0 %v5283
          %5432 = vmatpush.bf16.msra.mxu0 %v5282
          %5433 = vmatpush.bf16.msra.mxu0 %v5281
          %5434 = vmatpush.bf16.msra.mxu0 %v5280
          %5435 = vmatpush.bf16.msra.mxu0 %v5279
          %5436 = vmatpush.bf16.msra.mxu0 %v5278
          %5437 = vmatpush.bf16.msra.mxu0 %v5277
          %5438 = vmatmul.bf16.gmra.mxu0 %v4846
          %v5439 = vpop.f32.mrf.mxu0
          %v5440 = vadd.f32 %v5427, %v5439
          %v5441 = vpop.f32.mrf.mxu0
          %5442 = vdwg.mxu0
          %5443 = vmatpush.bf16.msra.mxu0 %v5292
          %5444 = vmatpush.bf16.msra.mxu0 %v5291
          %5445 = vmatpush.bf16.msra.mxu0 %v5290
          %5446 = vmatpush.bf16.msra.mxu0 %v5289
          %5447 = vmatpush.bf16.msra.mxu0 %v5288
          %5448 = vmatpush.bf16.msra.mxu0 %v5287
          %5449 = vmatpush.bf16.msra.mxu0 %v5286
          %5450 = vmatpush.bf16.msra.mxu0 %v5285
          %5451 = vmatmul.bf16.gmra.mxu0 %v4847
          %v5452 = vpop.f32.mrf.mxu0
          %v5453 = vadd.f32 %v5440, %v5452
          %v5454 = vpop.f32.mrf.mxu0
          %5455 = vdwg.mxu0
          %5456 = vmatpush.bf16.msra.mxu0 %v5300
          %5457 = vmatpush.bf16.msra.mxu0 %v5299
          %5458 = vmatpush.bf16.msra.mxu0 %v5298
          %5459 = vmatpush.bf16.msra.mxu0 %v5297
          %5460 = vmatpush.bf16.msra.mxu0 %v5296
          %5461 = vmatpush.bf16.msra.mxu0 %v5295
          %5462 = vmatpush.bf16.msra.mxu0 %v5294
          %5463 = vmatpush.bf16.msra.mxu0 %v5293
          %5464 = vmatmul.bf16.gmra.mxu0 %v4848
          %v5465 = vpop.f32.mrf.mxu0
          %v5466 = vadd.f32 %v5453, %v5465
          %v5467 = vpop.f32.mrf.mxu0
          %5468 = vdwg.mxu0
          %vm5469 = vcmask 74752
          %5470 = vst.msk [vmem:[#allocation15] sm:$0x3] %vm5469, %v5466
        $region84: #{inception_aux_forward.1} parent=51 // pred_fallthru
          _
        // Predicated region
        $region85: #{inception_aux_forward.1} parent=51 // pred_check
          %p5471 = pneg %p212
        $region86: #{inception_aux_forward.1} parent=51 // pred_check_branch
          %5473 = sbr.rel (%p5471) target = $region88
        $region87: #{inception_aux_forward.1} parent=51 // pred_region
          %5475 = vsyncadd [#allocation6], 0
          %s5477 = sshll.u32 [#allocation15], 4
          %s5478 = int_to_ptr.vmem [resolvable:$true] %s5477
          %s5479 = sshll.u32 %s8, 4
          %s5480 = int_to_ptr.hbm [resolvable:$true] %s5479
          %5482 = dma.vmem_to_hbm [thread:$0]  %s5478, 32, %s5480, [#allocation6]
        $region88: #{inception_aux_forward.1} parent=51 // pred_fallthru
          _
        // Predicated region
        $region89: #{inception_aux_forward.1} parent=51 // pred_check
          %p5483 = pneg %p212
        $region90: #{inception_aux_forward.1} parent=51 // pred_check_branch
          %5485 = sbr.rel (%p5483) target = $region92
        $region91: #{inception_aux_forward.1} parent=51 // pred_region
          %5487 = dma.done [#allocation6], 32
        $region92: #{inception_aux_forward.1} parent=51 // pred_fallthru
          _
      $region52: #{inception_aux_forward.1} parent=5 // pred_fallthru
        _
      %p5488 = scmp.le.s32.totalorder 2, %s21
      // Predicated region
      $region93: #{inception_aux_forward.1} parent=5 // pred_check
        %p5489 = pneg %p5488
      $region94: #{inception_aux_forward.1} parent=5 // pred_check_branch
        %5491 = sbr.rel (%p5489) target = $region96
      $region95: #{inception_aux_forward.1} parent=5 // pred_region
        %s5492 = ssub.s32 %s21, 2
      $region96: #{inception_aux_forward.1} parent=5 // pred_fallthru
        _
    $region6: #{inception_aux_forward.1} parent=1 // loop_footer
      %s25 = sadd.s32 1, %s21
    $region7: #{inception_aux_forward.1} parent=1 // loop_footer_branch
      %20 = sbr.rel target = $region3
    $region8: #{inception_aux_forward.1} parent=1 // loop_exit
      _
    %5493 = vsyncpa [#allocation5], 1
    %s5494 = scalar_lea.sflag [#allocation5], 1
    %5495 = vsyncpa %s5494, 1
    %5496 = vsyncpa [#allocation8], 1
    %5497 = vsyncpa [#allocation11], 1
    %s5498 = scalar_lea.sflag [#allocation11], 1
    %5499 = vsyncpa %s5498, 1
    %5500 = vsyncpa [#allocation14], 1
    %5501 = vsyncpa [#allocation6], 1
    %s5502 = scalar_lea.sflag [#allocation6], 1
    %5503 = vsyncpa %s5502, 1

</llo_original>
